<compile_context>
chip_gen: v7x
topology: tpu7x:2x2x1
jax: 0.10.0
libtpu: 0.0.40
codegen_flags: <defaults>
</compile_context>

<pallas_src>
import functools

import jax
import jax.numpy as jnp
from jax.experimental import pallas as pl
from jax.experimental.pallas import tpu as pltpu


# ---------------------------------------------------------------------------
# Kernel
# ---------------------------------------------------------------------------
def gru_fc_kernel(num_layers, gi0_ref, *refs):
    """Multi-layer GRU recurrence + last-step FC on one batch tile.

    gi0_ref : (T, BT, 3H) layer-0 gate pre-activations, fused [r|z|n]:
              x @ W_ih0 + emb @ W_ih0_emb + b_ih0 + [b_hh0_r | b_hh0_z | 0]
              (computed lane-dense in the wrapper).
    refs    : [w_hh0, b_hn0]
              + [w_ih_l, w_hh_l, b_i_l, b_hn_l] for each layer l >= 1
              + [fc_w, fc_b, out_ref]
    w_ih    : (H, 3H) fused input weights (layers >= 1), possibly bf16.
    w_hh    : (H, 3H) fused hidden weights, possibly bf16.
    b_i     : (1, 3H) = b_ih + [b_hh_r, b_hh_z, 0] (folded), f32.
    b_hn    : (1, H)  = b_hh_n, f32.
    """
    T, BT, H3 = gi0_ref.shape
    H = H3 // 3

    w_hh_refs = [refs[0]]
    b_hn_refs = [refs[1]]
    w_ih_refs = [None]
    b_i_refs = [None]
    idx = 2
    for _ in range(1, num_layers):
        w_ih_refs.append(refs[idx])
        w_hh_refs.append(refs[idx + 1])
        b_i_refs.append(refs[idx + 2])
        b_hn_refs.append(refs[idx + 3])
        idx += 4
    fc_w_ref, fc_b_ref, out_ref = refs[idx], refs[idx + 1], refs[idx + 2]

    # Load weights once (VMEM-resident values); dtype may be bf16 (MXU-native).
    w_hh = [r[...] for r in w_hh_refs]
    w_ih = [None] + [r[...] for r in w_ih_refs[1:]]
    mx = w_hh[0].dtype

    # Hoist (1,*) -> (BT,*) broadcasts out of the time loop (no CSE for
    # broadcast_in_dim inside the loop body).
    b_i_bt = [None] + [jnp.broadcast_to(r[...], (BT, H3)) for r in b_i_refs[1:]]
    b_hn_bt = [jnp.broadcast_to(r[...], (BT, H)) for r in b_hn_refs]

    def step(t, hs):
        gi = gi0_ref[t]                                          # (BT, 3H) f32
        new_hs = []
        inp = None
        for l in range(num_layers):                              # small; unrolled
            if l > 0:
                gi = jnp.dot(inp.astype(mx), w_ih[l],
                             preferred_element_type=jnp.float32) + b_i_bt[l]
            gh = jnp.dot(hs[l].astype(mx), w_hh[l],
                         preferred_element_type=jnp.float32)     # (BT, 3H) f32
            # One EUP sigmoid over the fused (BT, 2H) r|z slab; f32 VPU/EUP math.
            # TODO(synk): if bundle dumps show XLU lane-realignment on these
            # sub-128 gate slices (H % 128 != 0), pad each gate to 128 lanes in
            # the fused weight layout.
            rz = jax.nn.sigmoid(gi[:, : 2 * H] + gh[:, : 2 * H])
            r = rz[:, :H]
            z = rz[:, H:]
            n = jnp.tanh(gi[:, 2 * H:] + r * (gh[:, 2 * H:] + b_hn_bt[l]))
            h_new = (1.0 - z) * n + z * hs[l]
            new_hs.append(h_new)
            inp = h_new
        return tuple(new_hs)

    hs = tuple(jnp.zeros((BT, H), jnp.float32) for _ in range(num_layers))
    if T <= 16:
        # Tiny trip count: full static unroll (max LLO scheduler visibility).
        for t in range(T):
            hs = step(t, hs)
    else:
        # Larger T: bounded unroll keeps vreg pressure / compile time in check.
        hs = jax.lax.fori_loop(0, T, step, hs, unroll=8)

    # Final FC on the last hidden state of the top layer (== out[:, -1, :]).
    out_ref[...] = (
        jnp.dot(hs[-1], fc_w_ref[...], preferred_element_type=jnp.float32)
        + fc_b_ref[...]
    ).astype(out_ref.dtype)


# ---------------------------------------------------------------------------
# Wrapper (embedding lookup, layer-0 projection, pad, pallas_call)
# ---------------------------------------------------------------------------
def _round_up(n, m):
    return ((n + m - 1) // m) * m


def heart_rate_gru_forward(x, sport, fused, batch_tile=128):
    """x: (B, T, input_size) f32; sport: (B,) int. Returns (B, output_size)."""
    B, T, _ = x.shape
    emb = fused["embedding"][sport].astype(jnp.float32)          # (B, E)

    # Layer-0 projection hoisted to the wrapper (plain XLA):
    #   * lane-dense (last dim 3H) kernel input instead of the narrow F dim,
    #   * time-invariant embedding term computed once per row (not per step),
    #   * no (B, T, E) broadcast / concat intermediates materialized.
    gi0 = (
        jnp.einsum("bti,ig->btg", x.astype(jnp.float32), fused["w_ih0_x"])
        + (emb @ fused["w_ih0_e"] + fused["b_i0"])[:, None, :]
    )                                                            # (B, T, 3H) f32
    H3 = gi0.shape[-1]

    num_layers = len(fused["gru"])
    O = fused["fc_w"].shape[1]

    # Batch tile: as large as possible (MXU rows / vreg sublanes), but always
    # >= 2 grid steps so v7x's second TensorCore gets work ("parallel" axis).
    bt = max(8, min(batch_tile, _round_up(pl.cdiv(B, 2), 8)))
    n_tiles = max(2, pl.cdiv(B, bt))
    Bp = n_tiles * bt
    if Bp != B:
        gi0 = jnp.pad(gi0, ((0, Bp - B), (0, 0), (0, 0)))
    # Time-major so gi0_ref[t] is a contiguous (BT, 3H) sublane/lane-dense tile.
    gi0_tm = jnp.transpose(gi0, (1, 0, 2))                       # (T, Bp, 3H)

    weights = list(fused["gru"][0])                              # w_hh0, b_hn0
    for layer in fused["gru"][1:]:
        weights += list(layer)                                   # w_ih,w_hh,b_i,b_hn
    weights += [fused["fc_w"], fused["fc_b"]]

    # Weights/biases: full-array blocks with constant index_maps -> fetched once
    # and VMEM-resident across every batch-tile grid step.
    # TODO(synk): single-buffer these (pipeline_mode=pl.Buffered(1)) to halve
    # weight VMEM on v7x once that path is verified on the target jaxlib.
    w_specs = [pl.BlockSpec(w.shape, lambda b: (0, 0)) for w in weights]

    # TODO(synk): for large T, add an "arbitrary" time-chunk grid axis with a
    # hidden-state VMEM scratch carry so the streamed (T, bt, 3H) block stays
    # inside v7x's 64 MiB VMEM.
    out_padded = pl.pallas_call(
        functools.partial(gru_fc_kernel, num_layers),
        out_shape=jax.ShapeDtypeStruct((Bp, O), jnp.float32),
        grid=(n_tiles,),
        in_specs=[pl.BlockSpec((T, bt, H3), lambda b: (0, b, 0))] + w_specs,
        out_specs=pl.BlockSpec((bt, O), lambda b: (b, 0)),
        compiler_params=pltpu.CompilerParams(
            dimension_semantics=("parallel",),
            vmem_limit_bytes=64 * 1024 * 1024),
    )(gi0_tm, *weights)
    return out_padded[:B]


# ---------------------------------------------------------------------------
# Parameter init (raw PyTorch-like layout) + fusion into kernel layout
# ---------------------------------------------------------------------------
def init_params(key, input_size, hidden_size, num_layers, output_size,
                num_sports, embedding_dim):
    n_keys = 1 + 4 * num_layers + 2
    keys = list(jax.random.split(key, n_keys))
    k = 1.0 / jnp.sqrt(hidden_size)

    params = {}
    params["embedding"] = jax.random.normal(
        keys.pop(0), (num_sports, embedding_dim), jnp.float32
    )

    gru = []
    f_in = input_size + embedding_dim
    for _ in range(num_layers):
        # PyTorch gate order [r, z, n]; stored per gate, transposed for x @ w.
        w_ih = jax.random.uniform(
            keys.pop(0), (3, f_in, hidden_size), jnp.float32, -k, k)
        w_hh = jax.random.uniform(
            keys.pop(0), (3, hidden_size, hidden_size), jnp.float32, -k, k)
        b_ih = jax.random.uniform(
            keys.pop(0), (3, 1, hidden_size), jnp.float32, -k, k)
        b_hh = jax.random.uniform(
            keys.pop(0), (3, 1, hidden_size), jnp.float32, -k, k)
        gru.append((w_ih, w_hh, b_ih, b_hh))
        f_in = hidden_size
    params["gru"] = gru

    params["fc_w"] = jax.random.uniform(
        keys.pop(0), (hidden_size, output_size), jnp.float32, -k, k)
    params["fc_b"] = jax.random.uniform(
        keys.pop(0), (1, output_size), jnp.float32, -k, k)
    return params


def fuse_gru_params(params, mxu_dtype=jnp.float32):
    """Fuse [r,z,n] gates along lanes, fold biases, split layer-0 x/emb weights.

    mxu_dtype: dtype of the in-kernel matmul operands. Use jnp.bfloat16 on
    real shapes (MXU-native, ~3x fewer passes, half the weight bytes;
    accumulation stays f32). Default f32 preserves strict 1e-4 parity.
    """
    E = params["embedding"].shape[1]
    fused = {
        "embedding": params["embedding"],
        "fc_w": params["fc_w"].astype(jnp.float32),   # single matmul off the chain
        "fc_b": params["fc_b"],
        "gru": [],
    }
    for l, (w_ih, w_hh, b_ih, b_hh) in enumerate(params["gru"]):
        w_ih_f = jnp.concatenate([w_ih[0], w_ih[1], w_ih[2]], axis=1)  # (F,3H)
        w_hh_f = jnp.concatenate([w_hh[0], w_hh[1], w_hh[2]], axis=1)  # (H,3H)
        b_i = jnp.concatenate(
            [b_ih[0] + b_hh[0], b_ih[1] + b_hh[1], b_ih[2]], axis=1)   # (1,3H)
        b_hn = b_hh[2]                                                 # (1,H)
        if l == 0:
            in_sz = w_ih_f.shape[0] - E
            # Used by the wrapper's XLA projection (kept f32).
            fused["w_ih0_x"] = w_ih_f[:in_sz]
            fused["w_ih0_e"] = w_ih_f[in_sz:]
            fused["b_i0"] = b_i
            fused["gru"].append((w_hh_f.astype(mxu_dtype), b_hn))
        else:
            fused["gru"].append((w_ih_f.astype(mxu_dtype),
                                 w_hh_f.astype(mxu_dtype), b_i, b_hn))
    return fused


# ---------------------------------------------------------------------------
# Pure-JAX reference (unfused PyTorch GRU math) for the correctness check
# ---------------------------------------------------------------------------
def reference_forward(x, sport, params):
    emb = params["embedding"][sport]
    B, T, _ = x.shape
    E = emb.shape[-1]
    x_cat = jnp.concatenate([x, jnp.broadcast_to(emb[:, None, :], (B, T, E))], 2)
    num_layers = len(params["gru"])
    H = params["fc_w"].shape[0]
    hs = [jnp.zeros((B, H), jnp.float32) for _ in range(num_layers)]
    for t in range(T):
        inp = x_cat[:, t, :]
        for l in range(num_layers):
            w_ih, w_hh, b_ih, b_hh = params["gru"][l]
            r = jax.nn.sigmoid(inp @ w_ih[0] + b_ih[0] + hs[l] @ w_hh[0] + b_hh[0])
            z = jax.nn.sigmoid(inp @ w_ih[1] + b_ih[1] + hs[l] @ w_hh[1] + b_hh[1])
            n = jnp.tanh(inp @ w_ih[2] + b_ih[2] + r * (hs[l] @ w_hh[2] + b_hh[2]))
            hs[l] = (1.0 - z) * n + z * hs[l]
            inp = hs[l]
    return hs[-1] @ params["fc_w"] + params["fc_b"]


if __name__ == "__main__":
    # Small shapes consistent with the module's forward.
    B, T = 2, 8
    input_size, hidden_size, num_layers = 4, 32, 2
    output_size, num_sports, embedding_dim = 1, 5, 4

    key = jax.random.PRNGKey(0)
    k_x, k_s, k_p, k_x2 = jax.random.split(key, 4)

    x = jax.random.normal(k_x, (B, T, input_size), jnp.float32)
    sport = jax.random.randint(k_s, (B,), 0, num_sports, jnp.int32)
    params = init_params(k_p, input_size, hidden_size, num_layers,
                         output_size, num_sports, embedding_dim)
    ref = reference_forward(x, sport, params)

    # 1) f32 MXU path: strict parity with the PyTorch-equivalent reference.
    fused_f32 = fuse_gru_params(params, mxu_dtype=jnp.float32)
    out = jax.block_until_ready(heart_rate_gru_forward(x, sport, fused_f32))
    assert out.shape == (B, output_size)
    assert jnp.allclose(out, ref, atol=1e-4, rtol=1e-4)

    # 2) bf16 MXU-input path (perf config for real shapes; f32 accumulation).
    fused_bf16 = fuse_gru_params(params, mxu_dtype=jnp.bfloat16)
    out_bf16 = jax.block_until_ready(heart_rate_gru_forward(x, sport, fused_bf16))
    assert jnp.allclose(out_bf16, ref, atol=2e-2, rtol=2e-2)

    # 3) Longer sequence exercises the fori_loop(unroll=8) time loop.
    T_long = 40
    x_long = jax.random.normal(k_x2, (B, T_long, input_size), jnp.float32)
    ref_long = reference_forward(x_long, sport, params)
    out_long = jax.block_until_ready(
        heart_rate_gru_forward(x_long, sport, fused_f32))
    assert jnp.allclose(out_long, ref_long, atol=1e-4, rtol=1e-4)

    print("KERNEL_OK")
</pallas_src>

<mosaic_0001>
module attributes {stable_mosaic.version = 11 : i64} {
  func.func @gru_fc_kernel(%arg0: i32, %arg1: memref<8x8x96xf32, #tpu.memory_space<vmem>>, %arg2: memref<32x96xf32, #tpu.memory_space<vmem>>, %arg3: memref<1x32xf32, #tpu.memory_space<vmem>>, %arg4: memref<32x96xf32, #tpu.memory_space<vmem>>, %arg5: memref<32x96xf32, #tpu.memory_space<vmem>>, %arg6: memref<1x96xf32, #tpu.memory_space<vmem>>, %arg7: memref<1x32xf32, #tpu.memory_space<vmem>>, %arg8: memref<32x1xf32, #tpu.memory_space<vmem>>, %arg9: memref<1x1xf32, #tpu.memory_space<vmem>>, %arg10: memref<8x1xf32, #tpu.memory_space<vmem>>) attributes {dimension_semantics = [#tpu.dimension_semantics<parallel>], iteration_bounds = array<i64: 2>, scalar_prefetch = 0 : i64, scratch_operands = 0 : i64, tpu.core_type = #tpu.core_type<tc>, window_params = [{transform_indices = @transform_0, window_bounds = array<i64: 8, 8, 96>}, {pipeline_mode = #tpu.pipeline_mode<synchronous>, transform_indices = @transform_1, window_bounds = array<i64: 32, 96>}, {pipeline_mode = #tpu.pipeline_mode<synchronous>, transform_indices = @transform_2, window_bounds = array<i64: 1, 32>}, {pipeline_mode = #tpu.pipeline_mode<synchronous>, transform_indices = @transform_3, window_bounds = array<i64: 32, 96>}, {pipeline_mode = #tpu.pipeline_mode<synchronous>, transform_indices = @transform_4, window_bounds = array<i64: 32, 96>}, {pipeline_mode = #tpu.pipeline_mode<synchronous>, transform_indices = @transform_5, window_bounds = array<i64: 1, 96>}, {pipeline_mode = #tpu.pipeline_mode<synchronous>, transform_indices = @transform_6, window_bounds = array<i64: 1, 32>}, {pipeline_mode = #tpu.pipeline_mode<synchronous>, transform_indices = @transform_7, window_bounds = array<i64: 32, 1>}, {pipeline_mode = #tpu.pipeline_mode<synchronous>, transform_indices = @transform_8, window_bounds = array<i64: 1, 1>}, {transform_indices = @transform_9, window_bounds = array<i64: 8, 1>}]} {
    %c0 = arith.constant 0 : index
    %c0_0 = arith.constant 0 : index
    %0 = vector.load %arg2[%c0, %c0_0] : memref<32x96xf32, #tpu.memory_space<vmem>>, vector<32x96xf32>
    %c0_1 = arith.constant 0 : index
    %c0_2 = arith.constant 0 : index
    %1 = vector.load %arg5[%c0_1, %c0_2] : memref<32x96xf32, #tpu.memory_space<vmem>>, vector<32x96xf32>
    %c0_3 = arith.constant 0 : index
    %c0_4 = arith.constant 0 : index
    %2 = vector.load %arg4[%c0_3, %c0_4] : memref<32x96xf32, #tpu.memory_space<vmem>>, vector<32x96xf32>
    %c0_5 = arith.constant 0 : index
    %c0_6 = arith.constant 0 : index
    %3 = vector.load %arg6[%c0_5, %c0_6] : memref<1x96xf32, #tpu.memory_space<vmem>>, vector<1x96xf32>
    %4 = vector.shape_cast %3 : vector<1x96xf32> to vector<1x96xf32>
    %5 = vector.broadcast %4 : vector<1x96xf32> to vector<8x96xf32>
    %c0_7 = arith.constant 0 : index
    %c0_8 = arith.constant 0 : index
    %6 = vector.load %arg3[%c0_7, %c0_8] : memref<1x32xf32, #tpu.memory_space<vmem>>, vector<1x32xf32>
    %7 = vector.shape_cast %6 : vector<1x32xf32> to vector<1x32xf32>
    %8 = vector.broadcast %7 : vector<1x32xf32> to vector<8x32xf32>
    %c0_9 = arith.constant 0 : index
    %c0_10 = arith.constant 0 : index
    %9 = vector.load %arg7[%c0_9, %c0_10] : memref<1x32xf32, #tpu.memory_space<vmem>>, vector<1x32xf32>
    %10 = vector.shape_cast %9 : vector<1x32xf32> to vector<1x32xf32>
    %11 = vector.broadcast %10 : vector<1x32xf32> to vector<8x32xf32>
    %cst = arith.constant 0.000000e+00 : f32
    %12 = vector.broadcast %cst : f32 to vector<8x32xf32>
    %cst_11 = arith.constant 0.000000e+00 : f32
    %13 = vector.broadcast %cst_11 : f32 to vector<8x32xf32>
    %c0_12 = arith.constant 0 : index
    %c0_13 = arith.constant 0 : index
    %c0_14 = arith.constant 0 : index
    %14 = vector.load %arg1[%c0_12, %c0_13, %c0_14] : memref<8x8x96xf32, #tpu.memory_space<vmem>>, vector<1x8x96xf32>
    %15 = vector.shape_cast %14 : vector<1x8x96xf32> to vector<8x96xf32>
    %cst_15 = arith.constant dense<0.000000e+00> : vector<8x96xf32>
    %16 = tpu.matmul %12, %0, %cst_15 {dimension_numbers = #tpu.dot_dimension_numbers<[1], [0], [0], [1], [0, 0, 1, 1], [], []>} : vector<8x32xf32>, vector<32x96xf32>, vector<8x96xf32> -> vector<8x96xf32>
    %17 = vector.extract_strided_slice %15 {offsets = [0, 0], sizes = [8, 64], strides = [1, 1]} : vector<8x96xf32> to vector<8x64xf32>
    %18 = vector.extract_strided_slice %16 {offsets = [0, 0], sizes = [8, 64], strides = [1, 1]} : vector<8x96xf32> to vector<8x64xf32>
    %19 = arith.addf %17, %18 : vector<8x64xf32>
    %20 = arith.negf %19 : vector<8x64xf32>
    %21 = math.exp %20 : vector<8x64xf32>
    %cst_16 = arith.constant 1.000000e+00 : f32
    %22 = vector.broadcast %cst_16 : f32 to vector<8x64xf32>
    %23 = arith.addf %22, %21 : vector<8x64xf32>
    %24 = arith.divf %22, %23 : vector<8x64xf32>
    %25 = vector.extract_strided_slice %24 {offsets = [0, 0], sizes = [8, 32], strides = [1, 1]} : vector<8x64xf32> to vector<8x32xf32>
    %26 = vector.extract_strided_slice %24 {offsets = [0, 32], sizes = [8, 32], strides = [1, 1]} : vector<8x64xf32> to vector<8x32xf32>
    %27 = vector.extract_strided_slice %15 {offsets = [0, 64], sizes = [8, 32], strides = [1, 1]} : vector<8x96xf32> to vector<8x32xf32>
    %28 = vector.extract_strided_slice %16 {offsets = [0, 64], sizes = [8, 32], strides = [1, 1]} : vector<8x96xf32> to vector<8x32xf32>
    %29 = arith.addf %28, %8 : vector<8x32xf32>
    %30 = arith.mulf %25, %29 : vector<8x32xf32>
    %31 = arith.addf %27, %30 : vector<8x32xf32>
    %32 = math.tanh %31 : vector<8x32xf32>
    %cst_17 = arith.constant 1.000000e+00 : f32
    %33 = vector.broadcast %cst_17 : f32 to vector<8x32xf32>
    %34 = arith.subf %33, %26 : vector<8x32xf32>
    %35 = arith.mulf %34, %32 : vector<8x32xf32>
    %36 = arith.mulf %26, %12 : vector<8x32xf32>
    %37 = arith.addf %35, %36 : vector<8x32xf32>
    %cst_18 = arith.constant dense<0.000000e+00> : vector<8x96xf32>
    %38 = tpu.matmul %37, %2, %cst_18 {dimension_numbers = #tpu.dot_dimension_numbers<[1], [0], [0], [1], [0, 0, 1, 1], [], []>} : vector<8x32xf32>, vector<32x96xf32>, vector<8x96xf32> -> vector<8x96xf32>
    %39 = arith.addf %38, %5 : vector<8x96xf32>
    %cst_19 = arith.constant dense<0.000000e+00> : vector<8x96xf32>
    %40 = tpu.matmul %13, %1, %cst_19 {dimension_numbers = #tpu.dot_dimension_numbers<[1], [0], [0], [1], [0, 0, 1, 1], [], []>} : vector<8x32xf32>, vector<32x96xf32>, vector<8x96xf32> -> vector<8x96xf32>
    %41 = vector.extract_strided_slice %39 {offsets = [0, 0], sizes = [8, 64], strides = [1, 1]} : vector<8x96xf32> to vector<8x64xf32>
    %42 = vector.extract_strided_slice %40 {offsets = [0, 0], sizes = [8, 64], strides = [1, 1]} : vector<8x96xf32> to vector<8x64xf32>
    %43 = arith.addf %41, %42 : vector<8x64xf32>
    %44 = arith.negf %43 : vector<8x64xf32>
    %45 = math.exp %44 : vector<8x64xf32>
    %cst_20 = arith.constant 1.000000e+00 : f32
    %46 = vector.broadcast %cst_20 : f32 to vector<8x64xf32>
    %47 = arith.addf %46, %45 : vector<8x64xf32>
    %48 = arith.divf %46, %47 : vector<8x64xf32>
    %49 = vector.extract_strided_slice %48 {offsets = [0, 0], sizes = [8, 32], strides = [1, 1]} : vector<8x64xf32> to vector<8x32xf32>
    %50 = vector.extract_strided_slice %48 {offsets = [0, 32], sizes = [8, 32], strides = [1, 1]} : vector<8x64xf32> to vector<8x32xf32>
    %51 = vector.extract_strided_slice %39 {offsets = [0, 64], sizes = [8, 32], strides = [1, 1]} : vector<8x96xf32> to vector<8x32xf32>
    %52 = vector.extract_strided_slice %40 {offsets = [0, 64], sizes = [8, 32], strides = [1, 1]} : vector<8x96xf32> to vector<8x32xf32>
    %53 = arith.addf %52, %11 : vector<8x32xf32>
    %54 = arith.mulf %49, %53 : vector<8x32xf32>
    %55 = arith.addf %51, %54 : vector<8x32xf32>
    %56 = math.tanh %55 : vector<8x32xf32>
    %cst_21 = arith.constant 1.000000e+00 : f32
    %57 = vector.broadcast %cst_21 : f32 to vector<8x32xf32>
    %58 = arith.subf %57, %50 : vector<8x32xf32>
    %59 = arith.mulf %58, %56 : vector<8x32xf32>
    %60 = arith.mulf %50, %13 : vector<8x32xf32>
    %61 = arith.addf %59, %60 : vector<8x32xf32>
    %c1 = arith.constant 1 : index
    %c0_22 = arith.constant 0 : index
    %c0_23 = arith.constant 0 : index
    %62 = vector.load %arg1[%c1, %c0_22, %c0_23] : memref<8x8x96xf32, #tpu.memory_space<vmem>>, vector<1x8x96xf32>
    %63 = vector.shape_cast %62 : vector<1x8x96xf32> to vector<8x96xf32>
    %cst_24 = arith.constant dense<0.000000e+00> : vector<8x96xf32>
    %64 = tpu.matmul %37, %0, %cst_24 {dimension_numbers = #tpu.dot_dimension_numbers<[1], [0], [0], [1], [0, 0, 1, 1], [], []>} : vector<8x32xf32>, vector<32x96xf32>, vector<8x96xf32> -> vector<8x96xf32>
    %65 = vector.extract_strided_slice %63 {offsets = [0, 0], sizes = [8, 64], strides = [1, 1]} : vector<8x96xf32> to vector<8x64xf32>
    %66 = vector.extract_strided_slice %64 {offsets = [0, 0], sizes = [8, 64], strides = [1, 1]} : vector<8x96xf32> to vector<8x64xf32>
    %67 = arith.addf %65, %66 : vector<8x64xf32>
    %68 = arith.negf %67 : vector<8x64xf32>
    %69 = math.exp %68 : vector<8x64xf32>
    %cst_25 = arith.constant 1.000000e+00 : f32
    %70 = vector.broadcast %cst_25 : f32 to vector<8x64xf32>
    %71 = arith.addf %70, %69 : vector<8x64xf32>
    %72 = arith.divf %70, %71 : vector<8x64xf32>
    %73 = vector.extract_strided_slice %72 {offsets = [0, 0], sizes = [8, 32], strides = [1, 1]} : vector<8x64xf32> to vector<8x32xf32>
    %74 = vector.extract_strided_slice %72 {offsets = [0, 32], sizes = [8, 32], strides = [1, 1]} : vector<8x64xf32> to vector<8x32xf32>
    %75 = vector.extract_strided_slice %63 {offsets = [0, 64], sizes = [8, 32], strides = [1, 1]} : vector<8x96xf32> to vector<8x32xf32>
    %76 = vector.extract_strided_slice %64 {offsets = [0, 64], sizes = [8, 32], strides = [1, 1]} : vector<8x96xf32> to vector<8x32xf32>
    %77 = arith.addf %76, %8 : vector<8x32xf32>
    %78 = arith.mulf %73, %77 : vector<8x32xf32>
    %79 = arith.addf %75, %78 : vector<8x32xf32>
    %80 = math.tanh %79 : vector<8x32xf32>
    %cst_26 = arith.constant 1.000000e+00 : f32
    %81 = vector.broadcast %cst_26 : f32 to vector<8x32xf32>
    %82 = arith.subf %81, %74 : vector<8x32xf32>
    %83 = arith.mulf %82, %80 : vector<8x32xf32>
    %84 = arith.mulf %74, %37 : vector<8x32xf32>
    %85 = arith.addf %83, %84 : vector<8x32xf32>
    %cst_27 = arith.constant dense<0.000000e+00> : vector<8x96xf32>
    %86 = tpu.matmul %85, %2, %cst_27 {dimension_numbers = #tpu.dot_dimension_numbers<[1], [0], [0], [1], [0, 0, 1, 1], [], []>} : vector<8x32xf32>, vector<32x96xf32>, vector<8x96xf32> -> vector<8x96xf32>
    %87 = arith.addf %86, %5 : vector<8x96xf32>
    %cst_28 = arith.constant dense<0.000000e+00> : vector<8x96xf32>
    %88 = tpu.matmul %61, %1, %cst_28 {dimension_numbers = #tpu.dot_dimension_numbers<[1], [0], [0], [1], [0, 0, 1, 1], [], []>} : vector<8x32xf32>, vector<32x96xf32>, vector<8x96xf32> -> vector<8x96xf32>
    %89 = vector.extract_strided_slice %87 {offsets = [0, 0], sizes = [8, 64], strides = [1, 1]} : vector<8x96xf32> to vector<8x64xf32>
    %90 = vector.extract_strided_slice %88 {offsets = [0, 0], sizes = [8, 64], strides = [1, 1]} : vector<8x96xf32> to vector<8x64xf32>
    %91 = arith.addf %89, %90 : vector<8x64xf32>
    %92 = arith.negf %91 : vector<8x64xf32>
    %93 = math.exp %92 : vector<8x64xf32>
    %cst_29 = arith.constant 1.000000e+00 : f32
    %94 = vector.broadcast %cst_29 : f32 to vector<8x64xf32>
    %95 = arith.addf %94, %93 : vector<8x64xf32>
    %96 = arith.divf %94, %95 : vector<8x64xf32>
    %97 = vector.extract_strided_slice %96 {offsets = [0, 0], sizes = [8, 32], strides = [1, 1]} : vector<8x64xf32> to vector<8x32xf32>
    %98 = vector.extract_strided_slice %96 {offsets = [0, 32], sizes = [8, 32], strides = [1, 1]} : vector<8x64xf32> to vector<8x32xf32>
    %99 = vector.extract_strided_slice %87 {offsets = [0, 64], sizes = [8, 32], strides = [1, 1]} : vector<8x96xf32> to vector<8x32xf32>
    %100 = vector.extract_strided_slice %88 {offsets = [0, 64], sizes = [8, 32], strides = [1, 1]} : vector<8x96xf32> to vector<8x32xf32>
    %101 = arith.addf %100, %11 : vector<8x32xf32>
    %102 = arith.mulf %97, %101 : vector<8x32xf32>
    %103 = arith.addf %99, %102 : vector<8x32xf32>
    %104 = math.tanh %103 : vector<8x32xf32>
    %cst_30 = arith.constant 1.000000e+00 : f32
    %105 = vector.broadcast %cst_30 : f32 to vector<8x32xf32>
    %106 = arith.subf %105, %98 : vector<8x32xf32>
    %107 = arith.mulf %106, %104 : vector<8x32xf32>
    %108 = arith.mulf %98, %61 : vector<8x32xf32>
    %109 = arith.addf %107, %108 : vector<8x32xf32>
    %c2 = arith.constant 2 : index
    %c0_31 = arith.constant 0 : index
    %c0_32 = arith.constant 0 : index
    %110 = vector.load %arg1[%c2, %c0_31, %c0_32] : memref<8x8x96xf32, #tpu.memory_space<vmem>>, vector<1x8x96xf32>
    %111 = vector.shape_cast %110 : vector<1x8x96xf32> to vector<8x96xf32>
    %cst_33 = arith.constant dense<0.000000e+00> : vector<8x96xf32>
    %112 = tpu.matmul %85, %0, %cst_33 {dimension_numbers = #tpu.dot_dimension_numbers<[1], [0], [0], [1], [0, 0, 1, 1], [], []>} : vector<8x32xf32>, vector<32x96xf32>, vector<8x96xf32> -> vector<8x96xf32>
    %113 = vector.extract_strided_slice %111 {offsets = [0, 0], sizes = [8, 64], strides = [1, 1]} : vector<8x96xf32> to vector<8x64xf32>
    %114 = vector.extract_strided_slice %112 {offsets = [0, 0], sizes = [8, 64], strides = [1, 1]} : vector<8x96xf32> to vector<8x64xf32>
    %115 = arith.addf %113, %114 : vector<8x64xf32>
    %116 = arith.negf %115 : vector<8x64xf32>
    %117 = math.exp %116 : vector<8x64xf32>
    %cst_34 = arith.constant 1.000000e+00 : f32
    %118 = vector.broadcast %cst_34 : f32 to vector<8x64xf32>
    %119 = arith.addf %118, %117 : vector<8x64xf32>
    %120 = arith.divf %118, %119 : vector<8x64xf32>
    %121 = vector.extract_strided_slice %120 {offsets = [0, 0], sizes = [8, 32], strides = [1, 1]} : vector<8x64xf32> to vector<8x32xf32>
    %122 = vector.extract_strided_slice %120 {offsets = [0, 32], sizes = [8, 32], strides = [1, 1]} : vector<8x64xf32> to vector<8x32xf32>
    %123 = vector.extract_strided_slice %111 {offsets = [0, 64], sizes = [8, 32], strides = [1, 1]} : vector<8x96xf32> to vector<8x32xf32>
    %124 = vector.extract_strided_slice %112 {offsets = [0, 64], sizes = [8, 32], strides = [1, 1]} : vector<8x96xf32> to vector<8x32xf32>
    %125 = arith.addf %124, %8 : vector<8x32xf32>
    %126 = arith.mulf %121, %125 : vector<8x32xf32>
    %127 = arith.addf %123, %126 : vector<8x32xf32>
    %128 = math.tanh %127 : vector<8x32xf32>
    %cst_35 = arith.constant 1.000000e+00 : f32
    %129 = vector.broadcast %cst_35 : f32 to vector<8x32xf32>
    %130 = arith.subf %129, %122 : vector<8x32xf32>
    %131 = arith.mulf %130, %128 : vector<8x32xf32>
    %132 = arith.mulf %122, %85 : vector<8x32xf32>
    %133 = arith.addf %131, %132 : vector<8x32xf32>
    %cst_36 = arith.constant dense<0.000000e+00> : vector<8x96xf32>
    %134 = tpu.matmul %133, %2, %cst_36 {dimension_numbers = #tpu.dot_dimension_numbers<[1], [0], [0], [1], [0, 0, 1, 1], [], []>} : vector<8x32xf32>, vector<32x96xf32>, vector<8x96xf32> -> vector<8x96xf32>
    %135 = arith.addf %134, %5 : vector<8x96xf32>
    %cst_37 = arith.constant dense<0.000000e+00> : vector<8x96xf32>
    %136 = tpu.matmul %109, %1, %cst_37 {dimension_numbers = #tpu.dot_dimension_numbers<[1], [0], [0], [1], [0, 0, 1, 1], [], []>} : vector<8x32xf32>, vector<32x96xf32>, vector<8x96xf32> -> vector<8x96xf32>
    %137 = vector.extract_strided_slice %135 {offsets = [0, 0], sizes = [8, 64], strides = [1, 1]} : vector<8x96xf32> to vector<8x64xf32>
    %138 = vector.extract_strided_slice %136 {offsets = [0, 0], sizes = [8, 64], strides = [1, 1]} : vector<8x96xf32> to vector<8x64xf32>
    %139 = arith.addf %137, %138 : vector<8x64xf32>
    %140 = arith.negf %139 : vector<8x64xf32>
    %141 = math.exp %140 : vector<8x64xf32>
    %cst_38 = arith.constant 1.000000e+00 : f32
    %142 = vector.broadcast %cst_38 : f32 to vector<8x64xf32>
    %143 = arith.addf %142, %141 : vector<8x64xf32>
    %144 = arith.divf %142, %143 : vector<8x64xf32>
    %145 = vector.extract_strided_slice %144 {offsets = [0, 0], sizes = [8, 32], strides = [1, 1]} : vector<8x64xf32> to vector<8x32xf32>
    %146 = vector.extract_strided_slice %144 {offsets = [0, 32], sizes = [8, 32], strides = [1, 1]} : vector<8x64xf32> to vector<8x32xf32>
    %147 = vector.extract_strided_slice %135 {offsets = [0, 64], sizes = [8, 32], strides = [1, 1]} : vector<8x96xf32> to vector<8x32xf32>
    %148 = vector.extract_strided_slice %136 {offsets = [0, 64], sizes = [8, 32], strides = [1, 1]} : vector<8x96xf32> to vector<8x32xf32>
    %149 = arith.addf %148, %11 : vector<8x32xf32>
    %150 = arith.mulf %145, %149 : vector<8x32xf32>
    %151 = arith.addf %147, %150 : vector<8x32xf32>
    %152 = math.tanh %151 : vector<8x32xf32>
    %cst_39 = arith.constant 1.000000e+00 : f32
    %153 = vector.broadcast %cst_39 : f32 to vector<8x32xf32>
    %154 = arith.subf %153, %146 : vector<8x32xf32>
    %155 = arith.mulf %154, %152 : vector<8x32xf32>
    %156 = arith.mulf %146, %109 : vector<8x32xf32>
    %157 = arith.addf %155, %156 : vector<8x32xf32>
    %c3 = arith.constant 3 : index
    %c0_40 = arith.constant 0 : index
    %c0_41 = arith.constant 0 : index
    %158 = vector.load %arg1[%c3, %c0_40, %c0_41] : memref<8x8x96xf32, #tpu.memory_space<vmem>>, vector<1x8x96xf32>
    %159 = vector.shape_cast %158 : vector<1x8x96xf32> to vector<8x96xf32>
    %cst_42 = arith.constant dense<0.000000e+00> : vector<8x96xf32>
    %160 = tpu.matmul %133, %0, %cst_42 {dimension_numbers = #tpu.dot_dimension_numbers<[1], [0], [0], [1], [0, 0, 1, 1], [], []>} : vector<8x32xf32>, vector<32x96xf32>, vector<8x96xf32> -> vector<8x96xf32>
    %161 = vector.extract_strided_slice %159 {offsets = [0, 0], sizes = [8, 64], strides = [1, 1]} : vector<8x96xf32> to vector<8x64xf32>
    %162 = vector.extract_strided_slice %160 {offsets = [0, 0], sizes = [8, 64], strides = [1, 1]} : vector<8x96xf32> to vector<8x64xf32>
    %163 = arith.addf %161, %162 : vector<8x64xf32>
    %164 = arith.negf %163 : vector<8x64xf32>
    %165 = math.exp %164 : vector<8x64xf32>
    %cst_43 = arith.constant 1.000000e+00 : f32
    %166 = vector.broadcast %cst_43 : f32 to vector<8x64xf32>
    %167 = arith.addf %166, %165 : vector<8x64xf32>
    %168 = arith.divf %166, %167 : vector<8x64xf32>
    %169 = vector.extract_strided_slice %168 {offsets = [0, 0], sizes = [8, 32], strides = [1, 1]} : vector<8x64xf32> to vector<8x32xf32>
    %170 = vector.extract_strided_slice %168 {offsets = [0, 32], sizes = [8, 32], strides = [1, 1]} : vector<8x64xf32> to vector<8x32xf32>
    %171 = vector.extract_strided_slice %159 {offsets = [0, 64], sizes = [8, 32], strides = [1, 1]} : vector<8x96xf32> to vector<8x32xf32>
    %172 = vector.extract_strided_slice %160 {offsets = [0, 64], sizes = [8, 32], strides = [1, 1]} : vector<8x96xf32> to vector<8x32xf32>
    %173 = arith.addf %172, %8 : vector<8x32xf32>
    %174 = arith.mulf %169, %173 : vector<8x32xf32>
    %175 = arith.addf %171, %174 : vector<8x32xf32>
    %176 = math.tanh %175 : vector<8x32xf32>
    %cst_44 = arith.constant 1.000000e+00 : f32
    %177 = vector.broadcast %cst_44 : f32 to vector<8x32xf32>
    %178 = arith.subf %177, %170 : vector<8x32xf32>
    %179 = arith.mulf %178, %176 : vector<8x32xf32>
    %180 = arith.mulf %170, %133 : vector<8x32xf32>
    %181 = arith.addf %179, %180 : vector<8x32xf32>
    %cst_45 = arith.constant dense<0.000000e+00> : vector<8x96xf32>
    %182 = tpu.matmul %181, %2, %cst_45 {dimension_numbers = #tpu.dot_dimension_numbers<[1], [0], [0], [1], [0, 0, 1, 1], [], []>} : vector<8x32xf32>, vector<32x96xf32>, vector<8x96xf32> -> vector<8x96xf32>
    %183 = arith.addf %182, %5 : vector<8x96xf32>
    %cst_46 = arith.constant dense<0.000000e+00> : vector<8x96xf32>
    %184 = tpu.matmul %157, %1, %cst_46 {dimension_numbers = #tpu.dot_dimension_numbers<[1], [0], [0], [1], [0, 0, 1, 1], [], []>} : vector<8x32xf32>, vector<32x96xf32>, vector<8x96xf32> -> vector<8x96xf32>
    %185 = vector.extract_strided_slice %183 {offsets = [0, 0], sizes = [8, 64], strides = [1, 1]} : vector<8x96xf32> to vector<8x64xf32>
    %186 = vector.extract_strided_slice %184 {offsets = [0, 0], sizes = [8, 64], strides = [1, 1]} : vector<8x96xf32> to vector<8x64xf32>
    %187 = arith.addf %185, %186 : vector<8x64xf32>
    %188 = arith.negf %187 : vector<8x64xf32>
    %189 = math.exp %188 : vector<8x64xf32>
    %cst_47 = arith.constant 1.000000e+00 : f32
    %190 = vector.broadcast %cst_47 : f32 to vector<8x64xf32>
    %191 = arith.addf %190, %189 : vector<8x64xf32>
    %192 = arith.divf %190, %191 : vector<8x64xf32>
    %193 = vector.extract_strided_slice %192 {offsets = [0, 0], sizes = [8, 32], strides = [1, 1]} : vector<8x64xf32> to vector<8x32xf32>
    %194 = vector.extract_strided_slice %192 {offsets = [0, 32], sizes = [8, 32], strides = [1, 1]} : vector<8x64xf32> to vector<8x32xf32>
    %195 = vector.extract_strided_slice %183 {offsets = [0, 64], sizes = [8, 32], strides = [1, 1]} : vector<8x96xf32> to vector<8x32xf32>
    %196 = vector.extract_strided_slice %184 {offsets = [0, 64], sizes = [8, 32], strides = [1, 1]} : vector<8x96xf32> to vector<8x32xf32>
    %197 = arith.addf %196, %11 : vector<8x32xf32>
    %198 = arith.mulf %193, %197 : vector<8x32xf32>
    %199 = arith.addf %195, %198 : vector<8x32xf32>
    %200 = math.tanh %199 : vector<8x32xf32>
    %cst_48 = arith.constant 1.000000e+00 : f32
    %201 = vector.broadcast %cst_48 : f32 to vector<8x32xf32>
    %202 = arith.subf %201, %194 : vector<8x32xf32>
    %203 = arith.mulf %202, %200 : vector<8x32xf32>
    %204 = arith.mulf %194, %157 : vector<8x32xf32>
    %205 = arith.addf %203, %204 : vector<8x32xf32>
    %c4 = arith.constant 4 : index
    %c0_49 = arith.constant 0 : index
    %c0_50 = arith.constant 0 : index
    %206 = vector.load %arg1[%c4, %c0_49, %c0_50] : memref<8x8x96xf32, #tpu.memory_space<vmem>>, vector<1x8x96xf32>
    %207 = vector.shape_cast %206 : vector<1x8x96xf32> to vector<8x96xf32>
    %cst_51 = arith.constant dense<0.000000e+00> : vector<8x96xf32>
    %208 = tpu.matmul %181, %0, %cst_51 {dimension_numbers = #tpu.dot_dimension_numbers<[1], [0], [0], [1], [0, 0, 1, 1], [], []>} : vector<8x32xf32>, vector<32x96xf32>, vector<8x96xf32> -> vector<8x96xf32>
    %209 = vector.extract_strided_slice %207 {offsets = [0, 0], sizes = [8, 64], strides = [1, 1]} : vector<8x96xf32> to vector<8x64xf32>
    %210 = vector.extract_strided_slice %208 {offsets = [0, 0], sizes = [8, 64], strides = [1, 1]} : vector<8x96xf32> to vector<8x64xf32>
    %211 = arith.addf %209, %210 : vector<8x64xf32>
    %212 = arith.negf %211 : vector<8x64xf32>
    %213 = math.exp %212 : vector<8x64xf32>
    %cst_52 = arith.constant 1.000000e+00 : f32
    %214 = vector.broadcast %cst_52 : f32 to vector<8x64xf32>
    %215 = arith.addf %214, %213 : vector<8x64xf32>
    %216 = arith.divf %214, %215 : vector<8x64xf32>
    %217 = vector.extract_strided_slice %216 {offsets = [0, 0], sizes = [8, 32], strides = [1, 1]} : vector<8x64xf32> to vector<8x32xf32>
    %218 = vector.extract_strided_slice %216 {offsets = [0, 32], sizes = [8, 32], strides = [1, 1]} : vector<8x64xf32> to vector<8x32xf32>
    %219 = vector.extract_strided_slice %207 {offsets = [0, 64], sizes = [8, 32], strides = [1, 1]} : vector<8x96xf32> to vector<8x32xf32>
    %220 = vector.extract_strided_slice %208 {offsets = [0, 64], sizes = [8, 32], strides = [1, 1]} : vector<8x96xf32> to vector<8x32xf32>
    %221 = arith.addf %220, %8 : vector<8x32xf32>
    %222 = arith.mulf %217, %221 : vector<8x32xf32>
    %223 = arith.addf %219, %222 : vector<8x32xf32>
    %224 = math.tanh %223 : vector<8x32xf32>
    %cst_53 = arith.constant 1.000000e+00 : f32
    %225 = vector.broadcast %cst_53 : f32 to vector<8x32xf32>
    %226 = arith.subf %225, %218 : vector<8x32xf32>
    %227 = arith.mulf %226, %224 : vector<8x32xf32>
    %228 = arith.mulf %218, %181 : vector<8x32xf32>
    %229 = arith.addf %227, %228 : vector<8x32xf32>
    %cst_54 = arith.constant dense<0.000000e+00> : vector<8x96xf32>
    %230 = tpu.matmul %229, %2, %cst_54 {dimension_numbers = #tpu.dot_dimension_numbers<[1], [0], [0], [1], [0, 0, 1, 1], [], []>} : vector<8x32xf32>, vector<32x96xf32>, vector<8x96xf32> -> vector<8x96xf32>
    %231 = arith.addf %230, %5 : vector<8x96xf32>
    %cst_55 = arith.constant dense<0.000000e+00> : vector<8x96xf32>
    %232 = tpu.matmul %205, %1, %cst_55 {dimension_numbers = #tpu.dot_dimension_numbers<[1], [0], [0], [1], [0, 0, 1, 1], [], []>} : vector<8x32xf32>, vector<32x96xf32>, vector<8x96xf32> -> vector<8x96xf32>
    %233 = vector.extract_strided_slice %231 {offsets = [0, 0], sizes = [8, 64], strides = [1, 1]} : vector<8x96xf32> to vector<8x64xf32>
    %234 = vector.extract_strided_slice %232 {offsets = [0, 0], sizes = [8, 64], strides = [1, 1]} : vector<8x96xf32> to vector<8x64xf32>
    %235 = arith.addf %233, %234 : vector<8x64xf32>
    %236 = arith.negf %235 : vector<8x64xf32>
    %237 = math.exp %236 : vector<8x64xf32>
    %cst_56 = arith.constant 1.000000e+00 : f32
    %238 = vector.broadcast %cst_56 : f32 to vector<8x64xf32>
    %239 = arith.addf %238, %237 : vector<8x64xf32>
    %240 = arith.divf %238, %239 : vector<8x64xf32>
    %241 = vector.extract_strided_slice %240 {offsets = [0, 0], sizes = [8, 32], strides = [1, 1]} : vector<8x64xf32> to vector<8x32xf32>
    %242 = vector.extract_strided_slice %240 {offsets = [0, 32], sizes = [8, 32], strides = [1, 1]} : vector<8x64xf32> to vector<8x32xf32>
    %243 = vector.extract_strided_slice %231 {offsets = [0, 64], sizes = [8, 32], strides = [1, 1]} : vector<8x96xf32> to vector<8x32xf32>
    %244 = vector.extract_strided_slice %232 {offsets = [0, 64], sizes = [8, 32], strides = [1, 1]} : vector<8x96xf32> to vector<8x32xf32>
    %245 = arith.addf %244, %11 : vector<8x32xf32>
    %246 = arith.mulf %241, %245 : vector<8x32xf32>
    %247 = arith.addf %243, %246 : vector<8x32xf32>
    %248 = math.tanh %247 : vector<8x32xf32>
    %cst_57 = arith.constant 1.000000e+00 : f32
    %249 = vector.broadcast %cst_57 : f32 to vector<8x32xf32>
    %250 = arith.subf %249, %242 : vector<8x32xf32>
    %251 = arith.mulf %250, %248 : vector<8x32xf32>
    %252 = arith.mulf %242, %205 : vector<8x32xf32>
    %253 = arith.addf %251, %252 : vector<8x32xf32>
    %c5 = arith.constant 5 : index
    %c0_58 = arith.constant 0 : index
    %c0_59 = arith.constant 0 : index
    %254 = vector.load %arg1[%c5, %c0_58, %c0_59] : memref<8x8x96xf32, #tpu.memory_space<vmem>>, vector<1x8x96xf32>
    %255 = vector.shape_cast %254 : vector<1x8x96xf32> to vector<8x96xf32>
    %cst_60 = arith.constant dense<0.000000e+00> : vector<8x96xf32>
    %256 = tpu.matmul %229, %0, %cst_60 {dimension_numbers = #tpu.dot_dimension_numbers<[1], [0], [0], [1], [0, 0, 1, 1], [], []>} : vector<8x32xf32>, vector<32x96xf32>, vector<8x96xf32> -> vector<8x96xf32>
    %257 = vector.extract_strided_slice %255 {offsets = [0, 0], sizes = [8, 64], strides = [1, 1]} : vector<8x96xf32> to vector<8x64xf32>
    %258 = vector.extract_strided_slice %256 {offsets = [0, 0], sizes = [8, 64], strides = [1, 1]} : vector<8x96xf32> to vector<8x64xf32>
    %259 = arith.addf %257, %258 : vector<8x64xf32>
    %260 = arith.negf %259 : vector<8x64xf32>
    %261 = math.exp %260 : vector<8x64xf32>
    %cst_61 = arith.constant 1.000000e+00 : f32
    %262 = vector.broadcast %cst_61 : f32 to vector<8x64xf32>
    %263 = arith.addf %262, %261 : vector<8x64xf32>
    %264 = arith.divf %262, %263 : vector<8x64xf32>
    %265 = vector.extract_strided_slice %264 {offsets = [0, 0], sizes = [8, 32], strides = [1, 1]} : vector<8x64xf32> to vector<8x32xf32>
    %266 = vector.extract_strided_slice %264 {offsets = [0, 32], sizes = [8, 32], strides = [1, 1]} : vector<8x64xf32> to vector<8x32xf32>
    %267 = vector.extract_strided_slice %255 {offsets = [0, 64], sizes = [8, 32], strides = [1, 1]} : vector<8x96xf32> to vector<8x32xf32>
    %268 = vector.extract_strided_slice %256 {offsets = [0, 64], sizes = [8, 32], strides = [1, 1]} : vector<8x96xf32> to vector<8x32xf32>
    %269 = arith.addf %268, %8 : vector<8x32xf32>
    %270 = arith.mulf %265, %269 : vector<8x32xf32>
    %271 = arith.addf %267, %270 : vector<8x32xf32>
    %272 = math.tanh %271 : vector<8x32xf32>
    %cst_62 = arith.constant 1.000000e+00 : f32
    %273 = vector.broadcast %cst_62 : f32 to vector<8x32xf32>
    %274 = arith.subf %273, %266 : vector<8x32xf32>
    %275 = arith.mulf %274, %272 : vector<8x32xf32>
    %276 = arith.mulf %266, %229 : vector<8x32xf32>
    %277 = arith.addf %275, %276 : vector<8x32xf32>
    %cst_63 = arith.constant dense<0.000000e+00> : vector<8x96xf32>
    %278 = tpu.matmul %277, %2, %cst_63 {dimension_numbers = #tpu.dot_dimension_numbers<[1], [0], [0], [1], [0, 0, 1, 1], [], []>} : vector<8x32xf32>, vector<32x96xf32>, vector<8x96xf32> -> vector<8x96xf32>
    %279 = arith.addf %278, %5 : vector<8x96xf32>
    %cst_64 = arith.constant dense<0.000000e+00> : vector<8x96xf32>
    %280 = tpu.matmul %253, %1, %cst_64 {dimension_numbers = #tpu.dot_dimension_numbers<[1], [0], [0], [1], [0, 0, 1, 1], [], []>} : vector<8x32xf32>, vector<32x96xf32>, vector<8x96xf32> -> vector<8x96xf32>
    %281 = vector.extract_strided_slice %279 {offsets = [0, 0], sizes = [8, 64], strides = [1, 1]} : vector<8x96xf32> to vector<8x64xf32>
    %282 = vector.extract_strided_slice %280 {offsets = [0, 0], sizes = [8, 64], strides = [1, 1]} : vector<8x96xf32> to vector<8x64xf32>
    %283 = arith.addf %281, %282 : vector<8x64xf32>
    %284 = arith.negf %283 : vector<8x64xf32>
    %285 = math.exp %284 : vector<8x64xf32>
    %cst_65 = arith.constant 1.000000e+00 : f32
    %286 = vector.broadcast %cst_65 : f32 to vector<8x64xf32>
    %287 = arith.addf %286, %285 : vector<8x64xf32>
    %288 = arith.divf %286, %287 : vector<8x64xf32>
    %289 = vector.extract_strided_slice %288 {offsets = [0, 0], sizes = [8, 32], strides = [1, 1]} : vector<8x64xf32> to vector<8x32xf32>
    %290 = vector.extract_strided_slice %288 {offsets = [0, 32], sizes = [8, 32], strides = [1, 1]} : vector<8x64xf32> to vector<8x32xf32>
    %291 = vector.extract_strided_slice %279 {offsets = [0, 64], sizes = [8, 32], strides = [1, 1]} : vector<8x96xf32> to vector<8x32xf32>
    %292 = vector.extract_strided_slice %280 {offsets = [0, 64], sizes = [8, 32], strides = [1, 1]} : vector<8x96xf32> to vector<8x32xf32>
    %293 = arith.addf %292, %11 : vector<8x32xf32>
    %294 = arith.mulf %289, %293 : vector<8x32xf32>
    %295 = arith.addf %291, %294 : vector<8x32xf32>
    %296 = math.tanh %295 : vector<8x32xf32>
    %cst_66 = arith.constant 1.000000e+00 : f32
    %297 = vector.broadcast %cst_66 : f32 to vector<8x32xf32>
    %298 = arith.subf %297, %290 : vector<8x32xf32>
    %299 = arith.mulf %298, %296 : vector<8x32xf32>
    %300 = arith.mulf %290, %253 : vector<8x32xf32>
    %301 = arith.addf %299, %300 : vector<8x32xf32>
    %c6 = arith.constant 6 : index
    %c0_67 = arith.constant 0 : index
    %c0_68 = arith.constant 0 : index
    %302 = vector.load %arg1[%c6, %c0_67, %c0_68] : memref<8x8x96xf32, #tpu.memory_space<vmem>>, vector<1x8x96xf32>
    %303 = vector.shape_cast %302 : vector<1x8x96xf32> to vector<8x96xf32>
    %cst_69 = arith.constant dense<0.000000e+00> : vector<8x96xf32>
    %304 = tpu.matmul %277, %0, %cst_69 {dimension_numbers = #tpu.dot_dimension_numbers<[1], [0], [0], [1], [0, 0, 1, 1], [], []>} : vector<8x32xf32>, vector<32x96xf32>, vector<8x96xf32> -> vector<8x96xf32>
    %305 = vector.extract_strided_slice %303 {offsets = [0, 0], sizes = [8, 64], strides = [1, 1]} : vector<8x96xf32> to vector<8x64xf32>
    %306 = vector.extract_strided_slice %304 {offsets = [0, 0], sizes = [8, 64], strides = [1, 1]} : vector<8x96xf32> to vector<8x64xf32>
    %307 = arith.addf %305, %306 : vector<8x64xf32>
    %308 = arith.negf %307 : vector<8x64xf32>
    %309 = math.exp %308 : vector<8x64xf32>
    %cst_70 = arith.constant 1.000000e+00 : f32
    %310 = vector.broadcast %cst_70 : f32 to vector<8x64xf32>
    %311 = arith.addf %310, %309 : vector<8x64xf32>
    %312 = arith.divf %310, %311 : vector<8x64xf32>
    %313 = vector.extract_strided_slice %312 {offsets = [0, 0], sizes = [8, 32], strides = [1, 1]} : vector<8x64xf32> to vector<8x32xf32>
    %314 = vector.extract_strided_slice %312 {offsets = [0, 32], sizes = [8, 32], strides = [1, 1]} : vector<8x64xf32> to vector<8x32xf32>
    %315 = vector.extract_strided_slice %303 {offsets = [0, 64], sizes = [8, 32], strides = [1, 1]} : vector<8x96xf32> to vector<8x32xf32>
    %316 = vector.extract_strided_slice %304 {offsets = [0, 64], sizes = [8, 32], strides = [1, 1]} : vector<8x96xf32> to vector<8x32xf32>
    %317 = arith.addf %316, %8 : vector<8x32xf32>
    %318 = arith.mulf %313, %317 : vector<8x32xf32>
    %319 = arith.addf %315, %318 : vector<8x32xf32>
    %320 = math.tanh %319 : vector<8x32xf32>
    %cst_71 = arith.constant 1.000000e+00 : f32
    %321 = vector.broadcast %cst_71 : f32 to vector<8x32xf32>
    %322 = arith.subf %321, %314 : vector<8x32xf32>
    %323 = arith.mulf %322, %320 : vector<8x32xf32>
    %324 = arith.mulf %314, %277 : vector<8x32xf32>
    %325 = arith.addf %323, %324 : vector<8x32xf32>
    %cst_72 = arith.constant dense<0.000000e+00> : vector<8x96xf32>
    %326 = tpu.matmul %325, %2, %cst_72 {dimension_numbers = #tpu.dot_dimension_numbers<[1], [0], [0], [1], [0, 0, 1, 1], [], []>} : vector<8x32xf32>, vector<32x96xf32>, vector<8x96xf32> -> vector<8x96xf32>
    %327 = arith.addf %326, %5 : vector<8x96xf32>
    %cst_73 = arith.constant dense<0.000000e+00> : vector<8x96xf32>
    %328 = tpu.matmul %301, %1, %cst_73 {dimension_numbers = #tpu.dot_dimension_numbers<[1], [0], [0], [1], [0, 0, 1, 1], [], []>} : vector<8x32xf32>, vector<32x96xf32>, vector<8x96xf32> -> vector<8x96xf32>
    %329 = vector.extract_strided_slice %327 {offsets = [0, 0], sizes = [8, 64], strides = [1, 1]} : vector<8x96xf32> to vector<8x64xf32>
    %330 = vector.extract_strided_slice %328 {offsets = [0, 0], sizes = [8, 64], strides = [1, 1]} : vector<8x96xf32> to vector<8x64xf32>
    %331 = arith.addf %329, %330 : vector<8x64xf32>
    %332 = arith.negf %331 : vector<8x64xf32>
    %333 = math.exp %332 : vector<8x64xf32>
    %cst_74 = arith.constant 1.000000e+00 : f32
    %334 = vector.broadcast %cst_74 : f32 to vector<8x64xf32>
    %335 = arith.addf %334, %333 : vector<8x64xf32>
    %336 = arith.divf %334, %335 : vector<8x64xf32>
    %337 = vector.extract_strided_slice %336 {offsets = [0, 0], sizes = [8, 32], strides = [1, 1]} : vector<8x64xf32> to vector<8x32xf32>
    %338 = vector.extract_strided_slice %336 {offsets = [0, 32], sizes = [8, 32], strides = [1, 1]} : vector<8x64xf32> to vector<8x32xf32>
    %339 = vector.extract_strided_slice %327 {offsets = [0, 64], sizes = [8, 32], strides = [1, 1]} : vector<8x96xf32> to vector<8x32xf32>
    %340 = vector.extract_strided_slice %328 {offsets = [0, 64], sizes = [8, 32], strides = [1, 1]} : vector<8x96xf32> to vector<8x32xf32>
    %341 = arith.addf %340, %11 : vector<8x32xf32>
    %342 = arith.mulf %337, %341 : vector<8x32xf32>
    %343 = arith.addf %339, %342 : vector<8x32xf32>
    %344 = math.tanh %343 : vector<8x32xf32>
    %cst_75 = arith.constant 1.000000e+00 : f32
    %345 = vector.broadcast %cst_75 : f32 to vector<8x32xf32>
    %346 = arith.subf %345, %338 : vector<8x32xf32>
    %347 = arith.mulf %346, %344 : vector<8x32xf32>
    %348 = arith.mulf %338, %301 : vector<8x32xf32>
    %349 = arith.addf %347, %348 : vector<8x32xf32>
    %c7 = arith.constant 7 : index
    %c0_76 = arith.constant 0 : index
    %c0_77 = arith.constant 0 : index
    %350 = vector.load %arg1[%c7, %c0_76, %c0_77] : memref<8x8x96xf32, #tpu.memory_space<vmem>>, vector<1x8x96xf32>
    %351 = vector.shape_cast %350 : vector<1x8x96xf32> to vector<8x96xf32>
    %cst_78 = arith.constant dense<0.000000e+00> : vector<8x96xf32>
    %352 = tpu.matmul %325, %0, %cst_78 {dimension_numbers = #tpu.dot_dimension_numbers<[1], [0], [0], [1], [0, 0, 1, 1], [], []>} : vector<8x32xf32>, vector<32x96xf32>, vector<8x96xf32> -> vector<8x96xf32>
    %353 = vector.extract_strided_slice %351 {offsets = [0, 0], sizes = [8, 64], strides = [1, 1]} : vector<8x96xf32> to vector<8x64xf32>
    %354 = vector.extract_strided_slice %352 {offsets = [0, 0], sizes = [8, 64], strides = [1, 1]} : vector<8x96xf32> to vector<8x64xf32>
    %355 = arith.addf %353, %354 : vector<8x64xf32>
    %356 = arith.negf %355 : vector<8x64xf32>
    %357 = math.exp %356 : vector<8x64xf32>
    %cst_79 = arith.constant 1.000000e+00 : f32
    %358 = vector.broadcast %cst_79 : f32 to vector<8x64xf32>
    %359 = arith.addf %358, %357 : vector<8x64xf32>
    %360 = arith.divf %358, %359 : vector<8x64xf32>
    %361 = vector.extract_strided_slice %360 {offsets = [0, 0], sizes = [8, 32], strides = [1, 1]} : vector<8x64xf32> to vector<8x32xf32>
    %362 = vector.extract_strided_slice %360 {offsets = [0, 32], sizes = [8, 32], strides = [1, 1]} : vector<8x64xf32> to vector<8x32xf32>
    %363 = vector.extract_strided_slice %351 {offsets = [0, 64], sizes = [8, 32], strides = [1, 1]} : vector<8x96xf32> to vector<8x32xf32>
    %364 = vector.extract_strided_slice %352 {offsets = [0, 64], sizes = [8, 32], strides = [1, 1]} : vector<8x96xf32> to vector<8x32xf32>
    %365 = arith.addf %364, %8 : vector<8x32xf32>
    %366 = arith.mulf %361, %365 : vector<8x32xf32>
    %367 = arith.addf %363, %366 : vector<8x32xf32>
    %368 = math.tanh %367 : vector<8x32xf32>
    %cst_80 = arith.constant 1.000000e+00 : f32
    %369 = vector.broadcast %cst_80 : f32 to vector<8x32xf32>
    %370 = arith.subf %369, %362 : vector<8x32xf32>
    %371 = arith.mulf %370, %368 : vector<8x32xf32>
    %372 = arith.mulf %362, %325 : vector<8x32xf32>
    %373 = arith.addf %371, %372 : vector<8x32xf32>
    %cst_81 = arith.constant dense<0.000000e+00> : vector<8x96xf32>
    %374 = tpu.matmul %373, %2, %cst_81 {dimension_numbers = #tpu.dot_dimension_numbers<[1], [0], [0], [1], [0, 0, 1, 1], [], []>} : vector<8x32xf32>, vector<32x96xf32>, vector<8x96xf32> -> vector<8x96xf32>
    %375 = arith.addf %374, %5 : vector<8x96xf32>
    %cst_82 = arith.constant dense<0.000000e+00> : vector<8x96xf32>
    %376 = tpu.matmul %349, %1, %cst_82 {dimension_numbers = #tpu.dot_dimension_numbers<[1], [0], [0], [1], [0, 0, 1, 1], [], []>} : vector<8x32xf32>, vector<32x96xf32>, vector<8x96xf32> -> vector<8x96xf32>
    %377 = vector.extract_strided_slice %375 {offsets = [0, 0], sizes = [8, 64], strides = [1, 1]} : vector<8x96xf32> to vector<8x64xf32>
    %378 = vector.extract_strided_slice %376 {offsets = [0, 0], sizes = [8, 64], strides = [1, 1]} : vector<8x96xf32> to vector<8x64xf32>
    %379 = arith.addf %377, %378 : vector<8x64xf32>
    %380 = arith.negf %379 : vector<8x64xf32>
    %381 = math.exp %380 : vector<8x64xf32>
    %cst_83 = arith.constant 1.000000e+00 : f32
    %382 = vector.broadcast %cst_83 : f32 to vector<8x64xf32>
    %383 = arith.addf %382, %381 : vector<8x64xf32>
    %384 = arith.divf %382, %383 : vector<8x64xf32>
    %385 = vector.extract_strided_slice %384 {offsets = [0, 0], sizes = [8, 32], strides = [1, 1]} : vector<8x64xf32> to vector<8x32xf32>
    %386 = vector.extract_strided_slice %384 {offsets = [0, 32], sizes = [8, 32], strides = [1, 1]} : vector<8x64xf32> to vector<8x32xf32>
    %387 = vector.extract_strided_slice %375 {offsets = [0, 64], sizes = [8, 32], strides = [1, 1]} : vector<8x96xf32> to vector<8x32xf32>
    %388 = vector.extract_strided_slice %376 {offsets = [0, 64], sizes = [8, 32], strides = [1, 1]} : vector<8x96xf32> to vector<8x32xf32>
    %389 = arith.addf %388, %11 : vector<8x32xf32>
    %390 = arith.mulf %385, %389 : vector<8x32xf32>
    %391 = arith.addf %387, %390 : vector<8x32xf32>
    %392 = math.tanh %391 : vector<8x32xf32>
    %cst_84 = arith.constant 1.000000e+00 : f32
    %393 = vector.broadcast %cst_84 : f32 to vector<8x32xf32>
    %394 = arith.subf %393, %386 : vector<8x32xf32>
    %395 = arith.mulf %394, %392 : vector<8x32xf32>
    %396 = arith.mulf %386, %349 : vector<8x32xf32>
    %397 = arith.addf %395, %396 : vector<8x32xf32>
    %c0_85 = arith.constant 0 : index
    %c0_86 = arith.constant 0 : index
    %398 = vector.load %arg8[%c0_85, %c0_86] : memref<32x1xf32, #tpu.memory_space<vmem>>, vector<32x1xf32>
    %cst_87 = arith.constant dense<0.000000e+00> : vector<8x1xf32>
    %399 = tpu.matmul %397, %398, %cst_87 {dimension_numbers = #tpu.dot_dimension_numbers<[1], [0], [0], [1], [0, 0, 1, 1], [], []>} : vector<8x32xf32>, vector<32x1xf32>, vector<8x1xf32> -> vector<8x1xf32>
    %c0_88 = arith.constant 0 : index
    %c0_89 = arith.constant 0 : index
    %400 = vector.load %arg9[%c0_88, %c0_89] : memref<1x1xf32, #tpu.memory_space<vmem>>, vector<1x1xf32>
    %401 = vector.broadcast %400 : vector<1x1xf32> to vector<8x1xf32>
    %402 = arith.addf %399, %401 : vector<8x1xf32>
    %c0_90 = arith.constant 0 : index
    %c0_91 = arith.constant 0 : index
    %403 = vector.load %arg10[%c0_90, %c0_91] : memref<8x1xf32, #tpu.memory_space<vmem>>, vector<8x1xf32>
    tpu.vector_store %arg10[%c0_90, %c0_91], %402 {strides = array<i32>} : memref<8x1xf32, #tpu.memory_space<vmem>>, vector<8x1xf32>,
    return
  }
  func.func @transform_0(%arg0: i32) -> (i32, i32, i32) {
    %c0_i32 = arith.constant 0 : i32
    %c0_i32_0 = arith.constant 0 : i32
    %c0_i32_1 = arith.constant 0 : i32
    return %c0_i32, %arg0, %c0_i32_0 : i32, i32, i32
  }
  func.func @transform_1(%arg0: i32) -> (i32, i32) {
    %c0_i32 = arith.constant 0 : i32
    %c0_i32_0 = arith.constant 0 : i32
    %c0_i32_1 = arith.constant 0 : i32
    return %c0_i32, %c0_i32_0 : i32, i32
  }
  func.func @transform_2(%arg0: i32) -> (i32, i32) {
    %c0_i32 = arith.constant 0 : i32
    %c0_i32_0 = arith.constant 0 : i32
    %c0_i32_1 = arith.constant 0 : i32
    return %c0_i32, %c0_i32_0 : i32, i32
  }
  func.func @transform_3(%arg0: i32) -> (i32, i32) {
    %c0_i32 = arith.constant 0 : i32
    %c0_i32_0 = arith.constant 0 : i32
    %c0_i32_1 = arith.constant 0 : i32
    return %c0_i32, %c0_i32_0 : i32, i32
  }
  func.func @transform_4(%arg0: i32) -> (i32, i32) {
    %c0_i32 = arith.constant 0 : i32
    %c0_i32_0 = arith.constant 0 : i32
    %c0_i32_1 = arith.constant 0 : i32
    return %c0_i32, %c0_i32_0 : i32, i32
  }
  func.func @transform_5(%arg0: i32) -> (i32, i32) {
    %c0_i32 = arith.constant 0 : i32
    %c0_i32_0 = arith.constant 0 : i32
    %c0_i32_1 = arith.constant 0 : i32
    return %c0_i32, %c0_i32_0 : i32, i32
  }
  func.func @transform_6(%arg0: i32) -> (i32, i32) {
    %c0_i32 = arith.constant 0 : i32
    %c0_i32_0 = arith.constant 0 : i32
    %c0_i32_1 = arith.constant 0 : i32
    return %c0_i32, %c0_i32_0 : i32, i32
  }
  func.func @transform_7(%arg0: i32) -> (i32, i32) {
    %c0_i32 = arith.constant 0 : i32
    %c0_i32_0 = arith.constant 0 : i32
    %c0_i32_1 = arith.constant 0 : i32
    return %c0_i32, %c0_i32_0 : i32, i32
  }
  func.func @transform_8(%arg0: i32) -> (i32, i32) {
    %c0_i32 = arith.constant 0 : i32
    %c0_i32_0 = arith.constant 0 : i32
    %c0_i32_1 = arith.constant 0 : i32
    return %c0_i32, %c0_i32_0 : i32, i32
  }
  func.func @transform_9(%arg0: i32) -> (i32, i32) {
    %c0_i32 = arith.constant 0 : i32
    %c0_i32_0 = arith.constant 0 : i32
    return %arg0, %c0_i32 : i32, i32
  }
}

</mosaic_0001>

<llo_original>
// kernel: tpu_custom_call.1
$region0: #{tpu_custom_call.1}
  #allocation0 [shape = 'u32[]', space=smem, size = 0x4, offset = 0x4, fixed_abs, tag = 'smem constant byte address 0x4 - core index']
  #allocation1 [shape = 'u32[144,128]{1,0:T(1,128)}', space=vmem, size = 0x12000, scoped, tag = 'internal scratch']
  #allocation2 [shape = 'f32[1,1]{1,0:T(1,128)S(1)}', space=vmem, size = 0x200, scoped, tag = 'scoped memory for tpu_custom_call.1']
  %s0 = inlined_call_operand.hbm [shape: f32[8,16,96], index: 0, kind: input, shape index: {}]
  %s1 = inlined_call_operand.hbm [shape: f32[32,96], index: 1, kind: input, shape index: {}]
  %s2 = inlined_call_operand.hbm [shape: f32[1,32], index: 2, kind: input, shape index: {}]
  %s3 = inlined_call_operand.hbm [shape: f32[32,96], index: 3, kind: input, shape index: {}]
  %s4 = inlined_call_operand.hbm [shape: f32[32,96], index: 4, kind: input, shape index: {}]
  %s5 = inlined_call_operand.hbm [shape: f32[1,96], index: 5, kind: input, shape index: {}]
  %s6 = inlined_call_operand.hbm [shape: f32[1,32], index: 6, kind: input, shape index: {}]
  %s7 = inlined_call_operand.hbm [shape: f32[32,1], index: 7, kind: input, shape index: {}]
  %s8 = inlined_call_operand.<no memory space> [shape: f32[1,1], index: 8, kind: input, shape index: {}]
  %s9 = inlined_call_operand.hbm [shape: f32[16,1], index: 9, kind: output, shape index: {}]
  %s10 = sld [smem:[#allocation0]]
  $region101: #{tpu_custom_call.1} parent=0
    _
  %s12 = ssub.s32 1, %s10
  %s13 = scalar_select 0, %s12, %s10
  %v14 = vstv %s8
  %15 = vst [vmem:[#allocation2] sm:$0x1] %v14
  $region1: #{tpu_custom_call.1} parent=0
    #allocation3 [shape = 'u8[65536]{0}', space=vmem, size = 0x10000, scoped, tag = 'input window, operand 0']
    #allocation4 [shape = 's32[2]{0}', space=sflag, size = 0x8, scoped, tag = 'scoped memory for tpu_custom_call.1']
    #allocation5 [shape = 's32[2]{0}', space=sflag, size = 0x8, scoped, tag = 'scoped memory for tpu_custom_call.1']
    #allocation6 [shape = 'u8[16384]{0}', space=vmem, size = 0x4000, scoped, tag = 'input window, operand 1, single buffered']
    #allocation7 [shape = 's32[1]{0}', space=sflag, size = 0x4, scoped, tag = 'scoped memory for tpu_custom_call.1']
    #allocation8 [shape = 'u8[512]{0}', space=vmem, size = 0x400, scoped, tag = 'input window, operand 2, single buffered']
    #allocation9 [shape = 'u8[16384]{0}', space=vmem, size = 0x4000, scoped, tag = 'input window, operand 3, single buffered']
    #allocation10 [shape = 's32[1]{0}', space=sflag, size = 0x4, scoped, tag = 'scoped memory for tpu_custom_call.1']
    #allocation11 [shape = 'u8[16384]{0}', space=vmem, size = 0x4000, scoped, tag = 'input window, operand 4, single buffered']
    #allocation12 [shape = 'u8[512]{0}', space=vmem, size = 0x400, scoped, tag = 'input window, operand 5, single buffered']
    #allocation13 [shape = 's32[1]{0}', space=sflag, size = 0x4, scoped, tag = 'scoped memory for tpu_custom_call.1']
    #allocation14 [shape = 'u8[512]{0}', space=vmem, size = 0x400, scoped, tag = 'input window, operand 6, single buffered']
    #allocation15 [shape = 'u8[16384]{0}', space=vmem, size = 0x4000, scoped, tag = 'input window, operand 7, single buffered']
    #allocation16 [shape = 's32[1]{0}', space=sflag, size = 0x4, scoped, tag = 'scoped memory for tpu_custom_call.1']
    #allocation17 [shape = 'u8[8192]{0}', space=vmem, size = 0x2000, scoped, tag = 'output window, operand 0']
    %16 = vsyncpa [#allocation4], 0
    %s17 = scalar_lea.sflag [#allocation4], 1
    %18 = vsyncpa %s17, 0
    %19 = vsyncpa [#allocation7], 0
    %20 = vsyncpa [#allocation10], 0
    %21 = vsyncpa [#allocation13], 0
    %22 = vsyncpa [#allocation16], 0
    %23 = vsyncpa [#allocation5], 0
    %s24 = scalar_lea.sflag [#allocation5], 1
    %25 = vsyncpa %s24, 0
    loop: start=0, step=1, limit=4
    $region2: #{tpu_custom_call.1} parent=1 // loop_pre_header
      _
    $region3: #{tpu_custom_call.1} parent=1 // loop_header
      %s27 = sphi 0, %s31
      %p28 = scmp.ge.s32.totalorder %s27, 4
      %s37 = sphi 0, %s39
      %s40 = sphi 0, %s37
      %s41 = sphi 0, %s40
      %s57 = sphi 0, %s41
      %s61 = sphi 0, %s61
      %s63 = sphi 0, %s61
      %s64 = sphi 0, %s63
      %s78 = sphi 0, %s64
      %s82 = sphi 0, %s82
      %s84 = sphi 0, %s82
      %s85 = sphi 0, %s84
      %s99 = sphi 0, %s85
      %s103 = sphi 0, %s103
      %s105 = sphi 0, %s103
      %s106 = sphi 0, %s105
      %s120 = sphi 0, %s106
      %s124 = sphi 0, %s124
      %s126 = sphi 0, %s124
      %s127 = sphi 0, %s126
      %s141 = sphi 0, %s127
      %s145 = sphi 0, %s145
      %s147 = sphi 0, %s145
      %s148 = sphi 0, %s147
      %s162 = sphi 0, %s148
      %s166 = sphi 0, %s166
      %s168 = sphi 0, %s166
      %s169 = sphi 0, %s168
      %s183 = sphi 0, %s169
      %s187 = sphi 0, %s187
      %s189 = sphi 0, %s187
      %s190 = sphi 0, %s189
      %s204 = sphi 0, %s190
      %s208 = sphi 0, %s208
      %s210 = sphi 0, %s208
      %s211 = sphi 0, %s210
      %s225 = sphi 0, %s211
      %s231 = sphi 0, %s233
      %s234 = sphi 0, %s231
      %s235 = sphi 0, %s234
      %s251 = sphi 0, %s235
    $region4: #{tpu_custom_call.1} parent=1 // loop_header_branch
      %30 = sbr.rel (%p28) target = $region8
    $region5: #{tpu_custom_call.1} parent=1 // loop_body
      %s32 = ssub.s32 %s27, 1
      %s33 = ssub.s32 %s27, 2
      %s34 = sadd.s32 %s27, 1
      %s35 = ssub.s32 %s27, %s34
      %p36 = scmp.eq.s32.totalorder %s35, 0
      %s38 = sadd.s32 %s37, 1
      %s39 = scalar_select %p36, %s37, %s38
      %p42 = pneg %p36
      %p43 = scmp.eq.s32.totalorder %s27, 1
      %p44 = por %p42, %p43
      %p45 = scmp.ne.s32.totalorder %s37, %s40
      %p46 = scmp.eq.s32.totalorder %s27, 0
      %p47 = por %p45, %p46
      %p48 = scmp.ne.s32.totalorder %s37, %s40
      %p49 = scmp.eq.s32.totalorder %s32, 1
      %p50 = por %p48, %p49
      %p51 = scmp.ne.s32.totalorder %s40, %s41
      %p52 = scmp.eq.s32.totalorder %s32, 0
      %p53 = por %p51, %p52
      %p54 = scmp.ne.s32.totalorder %s40, %s41
      %p55 = scmp.eq.s32.totalorder %s33, 1
      %p56 = por %p54, %p55
      %p58 = scmp.ne.s32.totalorder %s41, %s57
      %p59 = scmp.eq.s32.totalorder %s33, 0
      %p60 = por %p58, %p59
      %s62 = sadd.s32 %s61, 1
      %p65 = scmp.eq.s32.totalorder %s27, 1
      %p66 = scmp.ne.s32.totalorder %s61, %s63
      %p67 = scmp.eq.s32.totalorder %s27, 0
      %p68 = por %p66, %p67
      %p69 = scmp.ne.s32.totalorder %s61, %s63
      %p70 = scmp.eq.s32.totalorder %s32, 1
      %p71 = por %p69, %p70
      %p72 = scmp.ne.s32.totalorder %s63, %s64
      %p73 = scmp.eq.s32.totalorder %s32, 0
      %p74 = por %p72, %p73
      %p75 = scmp.ne.s32.totalorder %s63, %s64
      %p76 = scmp.eq.s32.totalorder %s33, 1
      %p77 = por %p75, %p76
      %p79 = scmp.ne.s32.totalorder %s64, %s78
      %p80 = scmp.eq.s32.totalorder %s33, 0
      %p81 = por %p79, %p80
      %s83 = sadd.s32 %s82, 1
      %p86 = scmp.eq.s32.totalorder %s27, 1
      %p87 = scmp.ne.s32.totalorder %s82, %s84
      %p88 = scmp.eq.s32.totalorder %s27, 0
      %p89 = por %p87, %p88
      %p90 = scmp.ne.s32.totalorder %s82, %s84
      %p91 = scmp.eq.s32.totalorder %s32, 1
      %p92 = por %p90, %p91
      %p93 = scmp.ne.s32.totalorder %s84, %s85
      %p94 = scmp.eq.s32.totalorder %s32, 0
      %p95 = por %p93, %p94
      %p96 = scmp.ne.s32.totalorder %s84, %s85
      %p97 = scmp.eq.s32.totalorder %s33, 1
      %p98 = por %p96, %p97
      %p100 = scmp.ne.s32.totalorder %s85, %s99
      %p101 = scmp.eq.s32.totalorder %s33, 0
      %p102 = por %p100, %p101
      %s104 = sadd.s32 %s103, 1
      %p107 = scmp.eq.s32.totalorder %s27, 1
      %p108 = scmp.ne.s32.totalorder %s103, %s105
      %p109 = scmp.eq.s32.totalorder %s27, 0
      %p110 = por %p108, %p109
      %p111 = scmp.ne.s32.totalorder %s103, %s105
      %p112 = scmp.eq.s32.totalorder %s32, 1
      %p113 = por %p111, %p112
      %p114 = scmp.ne.s32.totalorder %s105, %s106
      %p115 = scmp.eq.s32.totalorder %s32, 0
      %p116 = por %p114, %p115
      %p117 = scmp.ne.s32.totalorder %s105, %s106
      %p118 = scmp.eq.s32.totalorder %s33, 1
      %p119 = por %p117, %p118
      %p121 = scmp.ne.s32.totalorder %s106, %s120
      %p122 = scmp.eq.s32.totalorder %s33, 0
      %p123 = por %p121, %p122
      %s125 = sadd.s32 %s124, 1
      %p128 = scmp.eq.s32.totalorder %s27, 1
      %p129 = scmp.ne.s32.totalorder %s124, %s126
      %p130 = scmp.eq.s32.totalorder %s27, 0
      %p131 = por %p129, %p130
      %p132 = scmp.ne.s32.totalorder %s124, %s126
      %p133 = scmp.eq.s32.totalorder %s32, 1
      %p134 = por %p132, %p133
      %p135 = scmp.ne.s32.totalorder %s126, %s127
      %p136 = scmp.eq.s32.totalorder %s32, 0
      %p137 = por %p135, %p136
      %p138 = scmp.ne.s32.totalorder %s126, %s127
      %p139 = scmp.eq.s32.totalorder %s33, 1
      %p140 = por %p138, %p139
      %p142 = scmp.ne.s32.totalorder %s127, %s141
      %p143 = scmp.eq.s32.totalorder %s33, 0
      %p144 = por %p142, %p143
      %s146 = sadd.s32 %s145, 1
      %p149 = scmp.eq.s32.totalorder %s27, 1
      %p150 = scmp.ne.s32.totalorder %s145, %s147
      %p151 = scmp.eq.s32.totalorder %s27, 0
      %p152 = por %p150, %p151
      %p153 = scmp.ne.s32.totalorder %s145, %s147
      %p154 = scmp.eq.s32.totalorder %s32, 1
      %p155 = por %p153, %p154
      %p156 = scmp.ne.s32.totalorder %s147, %s148
      %p157 = scmp.eq.s32.totalorder %s32, 0
      %p158 = por %p156, %p157
      %p159 = scmp.ne.s32.totalorder %s147, %s148
      %p160 = scmp.eq.s32.totalorder %s33, 1
      %p161 = por %p159, %p160
      %p163 = scmp.ne.s32.totalorder %s148, %s162
      %p164 = scmp.eq.s32.totalorder %s33, 0
      %p165 = por %p163, %p164
      %s167 = sadd.s32 %s166, 1
      %p170 = scmp.eq.s32.totalorder %s27, 1
      %p171 = scmp.ne.s32.totalorder %s166, %s168
      %p172 = scmp.eq.s32.totalorder %s27, 0
      %p173 = por %p171, %p172
      %p174 = scmp.ne.s32.totalorder %s166, %s168
      %p175 = scmp.eq.s32.totalorder %s32, 1
      %p176 = por %p174, %p175
      %p177 = scmp.ne.s32.totalorder %s168, %s169
      %p178 = scmp.eq.s32.totalorder %s32, 0
      %p179 = por %p177, %p178
      %p180 = scmp.ne.s32.totalorder %s168, %s169
      %p181 = scmp.eq.s32.totalorder %s33, 1
      %p182 = por %p180, %p181
      %p184 = scmp.ne.s32.totalorder %s169, %s183
      %p185 = scmp.eq.s32.totalorder %s33, 0
      %p186 = por %p184, %p185
      %s188 = sadd.s32 %s187, 1
      %p191 = scmp.eq.s32.totalorder %s27, 1
      %p192 = scmp.ne.s32.totalorder %s187, %s189
      %p193 = scmp.eq.s32.totalorder %s27, 0
      %p194 = por %p192, %p193
      %p195 = scmp.ne.s32.totalorder %s187, %s189
      %p196 = scmp.eq.s32.totalorder %s32, 1
      %p197 = por %p195, %p196
      %p198 = scmp.ne.s32.totalorder %s189, %s190
      %p199 = scmp.eq.s32.totalorder %s32, 0
      %p200 = por %p198, %p199
      %p201 = scmp.ne.s32.totalorder %s189, %s190
      %p202 = scmp.eq.s32.totalorder %s33, 1
      %p203 = por %p201, %p202
      %p205 = scmp.ne.s32.totalorder %s190, %s204
      %p206 = scmp.eq.s32.totalorder %s33, 0
      %p207 = por %p205, %p206
      %s209 = sadd.s32 %s208, 1
      %p212 = scmp.eq.s32.totalorder %s27, 1
      %p213 = scmp.ne.s32.totalorder %s208, %s210
      %p214 = scmp.eq.s32.totalorder %s27, 0
      %p215 = por %p213, %p214
      %p216 = scmp.ne.s32.totalorder %s208, %s210
      %p217 = scmp.eq.s32.totalorder %s32, 1
      %p218 = por %p216, %p217
      %p219 = scmp.ne.s32.totalorder %s210, %s211
      %p220 = scmp.eq.s32.totalorder %s32, 0
      %p221 = por %p219, %p220
      %p222 = scmp.ne.s32.totalorder %s210, %s211
      %p223 = scmp.eq.s32.totalorder %s33, 1
      %p224 = por %p222, %p223
      %p226 = scmp.ne.s32.totalorder %s211, %s225
      %p227 = scmp.eq.s32.totalorder %s33, 0
      %p228 = por %p226, %p227
      %s229 = ssub.s32 %s27, %s34
      %p230 = scmp.eq.s32.totalorder %s229, 0
      %s232 = sadd.s32 %s231, 1
      %s233 = scalar_select %p230, %s231, %s232
      %p236 = pneg %p230
      %p237 = scmp.eq.s32.totalorder %s27, 1
      %p238 = por %p236, %p237
      %p239 = scmp.ne.s32.totalorder %s231, %s234
      %p240 = scmp.eq.s32.totalorder %s27, 0
      %p241 = por %p239, %p240
      %p242 = scmp.ne.s32.totalorder %s231, %s234
      %p243 = scmp.eq.s32.totalorder %s32, 1
      %p244 = por %p242, %p243
      %p245 = scmp.ne.s32.totalorder %s234, %s235
      %p246 = scmp.eq.s32.totalorder %s32, 0
      %p247 = por %p245, %p246
      %p248 = scmp.ne.s32.totalorder %s234, %s235
      %p249 = scmp.eq.s32.totalorder %s33, 1
      %p250 = por %p248, %p249
      %p252 = scmp.ne.s32.totalorder %s235, %s251
      %p253 = scmp.eq.s32.totalorder %s33, 0
      %p254 = por %p252, %p253
      %p255 = scmp.le.s32.totalorder 1, %s27
      %p256 = scmp.lt.s32.totalorder %s27, 3
      %p257 = pnand %p255, %p256
      %p258 = pneg %p257
      // Predicated region
      $region9: #{tpu_custom_call.1} parent=5 // pred_check
        _
      $region10: #{tpu_custom_call.1} parent=5 // pred_check_branch
        %260 = sbr.rel (%p257) target = $region12
      $region11: #{tpu_custom_call.1} parent=5 // pred_region
        %s261 = ssub.s32 %s27, 1
        // Predicated region
        $region13: #{tpu_custom_call.1} parent=11 // pred_check
          %p262 = pneg %p74
        $region14: #{tpu_custom_call.1} parent=11 // pred_check_branch
          %264 = sbr.rel (%p262) target = $region16
        $region15: #{tpu_custom_call.1} parent=11 // pred_region
          %s266 = ssub.s32 512, 512
          %267 = vsyncadd [#allocation7], %s266
          %s268 = sshll.u32 [#allocation6], 4
          %s269 = int_to_ptr.vmem [resolvable:$true] %s268
          %274 = dma.hbm_to_vmem [thread:$0]  %s1, 512, %s269, [#allocation7], 128, 128, 8
        $region16: #{tpu_custom_call.1} parent=11 // pred_fallthru
          _
        // Predicated region
        $region17: #{tpu_custom_call.1} parent=11 // pred_check
          %p275 = pneg %p95
        $region18: #{tpu_custom_call.1} parent=11 // pred_check_branch
          %277 = sbr.rel (%p275) target = $region20
        $region19: #{tpu_custom_call.1} parent=11 // pred_region
          %s279 = ssub.s32 16, 16
          %280 = vsyncadd [#allocation7], %s279
          %s282 = sshll.u32 [#allocation8], 4
          %s283 = int_to_ptr.vmem [resolvable:$true] %s282
          %285 = dma.hbm_to_vmem [thread:$0]  %s2, 16, %s283, [#allocation7]
        $region20: #{tpu_custom_call.1} parent=11 // pred_fallthru
          _
        // Predicated region
        $region21: #{tpu_custom_call.1} parent=11 // pred_check
          %p286 = pneg %p116
        $region22: #{tpu_custom_call.1} parent=11 // pred_check_branch
          %288 = sbr.rel (%p286) target = $region24
        $region23: #{tpu_custom_call.1} parent=11 // pred_region
          %s290 = ssub.s32 512, 512
          %291 = vsyncadd [#allocation10], %s290
          %s292 = sshll.u32 [#allocation9], 4
          %s293 = int_to_ptr.vmem [resolvable:$true] %s292
          %298 = dma.hbm_to_vmem [thread:$0]  %s3, 512, %s293, [#allocation10], 128, 128, 8
        $region24: #{tpu_custom_call.1} parent=11 // pred_fallthru
          _
        // Predicated region
        $region25: #{tpu_custom_call.1} parent=11 // pred_check
          %p299 = pneg %p137
        $region26: #{tpu_custom_call.1} parent=11 // pred_check_branch
          %301 = sbr.rel (%p299) target = $region28
        $region27: #{tpu_custom_call.1} parent=11 // pred_region
          %s303 = ssub.s32 512, 512
          %304 = vsyncadd [#allocation10], %s303
          %s305 = sshll.u32 [#allocation11], 4
          %s306 = int_to_ptr.vmem [resolvable:$true] %s305
          %311 = dma.hbm_to_vmem [thread:$0]  %s4, 512, %s306, [#allocation10], 128, 128, 8
        $region28: #{tpu_custom_call.1} parent=11 // pred_fallthru
          _
        // Predicated region
        $region29: #{tpu_custom_call.1} parent=11 // pred_check
          %p312 = pneg %p158
        $region30: #{tpu_custom_call.1} parent=11 // pred_check_branch
          %314 = sbr.rel (%p312) target = $region32
        $region31: #{tpu_custom_call.1} parent=11 // pred_region
          %s316 = ssub.s32 16, 16
          %317 = vsyncadd [#allocation13], %s316
          %s319 = sshll.u32 [#allocation12], 4
          %s320 = int_to_ptr.vmem [resolvable:$true] %s319
          %322 = dma.hbm_to_vmem [thread:$0]  %s5, 16, %s320, [#allocation13]
        $region32: #{tpu_custom_call.1} parent=11 // pred_fallthru
          _
        // Predicated region
        $region33: #{tpu_custom_call.1} parent=11 // pred_check
          %p323 = pneg %p179
        $region34: #{tpu_custom_call.1} parent=11 // pred_check_branch
          %325 = sbr.rel (%p323) target = $region36
        $region35: #{tpu_custom_call.1} parent=11 // pred_region
          %s327 = ssub.s32 16, 16
          %328 = vsyncadd [#allocation13], %s327
          %s330 = sshll.u32 [#allocation14], 4
          %s331 = int_to_ptr.vmem [resolvable:$true] %s330
          %333 = dma.hbm_to_vmem [thread:$0]  %s6, 16, %s331, [#allocation13]
        $region36: #{tpu_custom_call.1} parent=11 // pred_fallthru
          _
        // Predicated region
        $region37: #{tpu_custom_call.1} parent=11 // pred_check
          %p334 = pneg %p200
        $region38: #{tpu_custom_call.1} parent=11 // pred_check_branch
          %336 = sbr.rel (%p334) target = $region40
        $region39: #{tpu_custom_call.1} parent=11 // pred_region
          %s338 = ssub.s32 512, 512
          %339 = vsyncadd [#allocation16], %s338
          %s340 = sshll.u32 [#allocation15], 4
          %s341 = int_to_ptr.vmem [resolvable:$true] %s340
          %346 = dma.hbm_to_vmem [thread:$0]  %s7, 512, %s341, [#allocation16], 128, 128, 8
        $region40: #{tpu_custom_call.1} parent=11 // pred_fallthru
          _
        // Predicated region
        $region41: #{tpu_custom_call.1} parent=11 // pred_check
          %p347 = pneg %p221
        $region42: #{tpu_custom_call.1} parent=11 // pred_check_branch
          %349 = sbr.rel (%p347) target = $region44
        $region43: #{tpu_custom_call.1} parent=11 // pred_region
          _
        $region44: #{tpu_custom_call.1} parent=11 // pred_fallthru
          _
      $region12: #{tpu_custom_call.1} parent=5 // pred_fallthru
        _
      %p350 = scmp.lt.s32.totalorder %s27, 2
      // Predicated region
      $region45: #{tpu_custom_call.1} parent=5 // pred_check
        %p351 = pneg %p350
      $region46: #{tpu_custom_call.1} parent=5 // pred_check_branch
        %353 = sbr.rel (%p351) target = $region48
      $region47: #{tpu_custom_call.1} parent=5 // pred_region
        // Predicated region
        $region49: #{tpu_custom_call.1} parent=47 // pred_check
          %p354 = pneg %p47
        $region50: #{tpu_custom_call.1} parent=47 // pred_check_branch
          %356 = sbr.rel (%p354) target = $region52
        $region51: #{tpu_custom_call.1} parent=47 // pred_region
          %s357 = sand.u32 %s37, 1
          %s358 = scalar_lea.sflag [#allocation4], %s357
          %s359 = sand.u32 %s37, 1
          %s360 = smul.addr %s359, 64
          %s361 = scalar_lea.vmem [#allocation3], %s360
          %s363 = ssub.s32 1024, 1024
          %364 = vsyncadd %s358, %s363
          %s365 = smul.addr %s27, 128
          %s366 = scalar_lea.hbm %s0, %s365
          %s367 = sshll.u32 %s361, 4
          %s368 = int_to_ptr.vmem [resolvable:$true] %s367
          %373 = dma.hbm_to_vmem [thread:$0]  %s366, 1024, %s368, %s358, 256, 128, 8
        $region52: #{tpu_custom_call.1} parent=47 // pred_fallthru
          _
      $region48: #{tpu_custom_call.1} parent=5 // pred_fallthru
        _
      %p374 = scmp.le.s32.totalorder 1, %s27
      %p375 = scmp.lt.s32.totalorder %s27, 3
      %p376 = pnand %p374, %p375
      %p377 = pneg %p376
      // Predicated region
      $region53: #{tpu_custom_call.1} parent=5 // pred_check
        _
      $region54: #{tpu_custom_call.1} parent=5 // pred_check_branch
        %379 = sbr.rel (%p376) target = $region56
      $region55: #{tpu_custom_call.1} parent=5 // pred_region
        %s380 = ssub.s32 %s27, 1
        %s381 = sand.u32 %s40, 1
        %s382 = scalar_lea.sflag [#allocation4], %s381
        %s383 = sand.u32 %s40, 1
        %s384 = smul.addr %s383, 64
        %s385 = scalar_lea.vmem [#allocation3], %s384
        // Predicated region
        $region57: #{tpu_custom_call.1} parent=55 // pred_check
          %p386 = pneg %p53
        $region58: #{tpu_custom_call.1} parent=55 // pred_check_branch
          %388 = sbr.rel (%p386) target = $region60
        $region59: #{tpu_custom_call.1} parent=55 // pred_region
          %389 = dma.done %s382, 1024
        $region60: #{tpu_custom_call.1} parent=55 // pred_fallthru
          _
        // Predicated region
        $region61: #{tpu_custom_call.1} parent=55 // pred_check
          %p390 = pneg %p74
        $region62: #{tpu_custom_call.1} parent=55 // pred_check_branch
          %392 = sbr.rel (%p390) target = $region64
        $region63: #{tpu_custom_call.1} parent=55 // pred_region
          %393 = dma.done [#allocation7], 512
        $region64: #{tpu_custom_call.1} parent=55 // pred_fallthru
          _
        // Predicated region
        $region65: #{tpu_custom_call.1} parent=55 // pred_check
          %p394 = pneg %p95
        $region66: #{tpu_custom_call.1} parent=55 // pred_check_branch
          %396 = sbr.rel (%p394) target = $region68
        $region67: #{tpu_custom_call.1} parent=55 // pred_region
          %397 = dma.done [#allocation7], 16
        $region68: #{tpu_custom_call.1} parent=55 // pred_fallthru
          _
        // Predicated region
        $region69: #{tpu_custom_call.1} parent=55 // pred_check
          %p398 = pneg %p116
        $region70: #{tpu_custom_call.1} parent=55 // pred_check_branch
          %400 = sbr.rel (%p398) target = $region72
        $region71: #{tpu_custom_call.1} parent=55 // pred_region
          %401 = dma.done [#allocation10], 512
        $region72: #{tpu_custom_call.1} parent=55 // pred_fallthru
          _
        // Predicated region
        $region73: #{tpu_custom_call.1} parent=55 // pred_check
          %p402 = pneg %p137
        $region74: #{tpu_custom_call.1} parent=55 // pred_check_branch
          %404 = sbr.rel (%p402) target = $region76
        $region75: #{tpu_custom_call.1} parent=55 // pred_region
          %405 = dma.done [#allocation10], 512
        $region76: #{tpu_custom_call.1} parent=55 // pred_fallthru
          _
        // Predicated region
        $region77: #{tpu_custom_call.1} parent=55 // pred_check
          %p406 = pneg %p158
        $region78: #{tpu_custom_call.1} parent=55 // pred_check_branch
          %408 = sbr.rel (%p406) target = $region80
        $region79: #{tpu_custom_call.1} parent=55 // pred_region
          %409 = dma.done [#allocation13], 16
        $region80: #{tpu_custom_call.1} parent=55 // pred_fallthru
          _
        // Predicated region
        $region81: #{tpu_custom_call.1} parent=55 // pred_check
          %p410 = pneg %p179
        $region82: #{tpu_custom_call.1} parent=55 // pred_check_branch
          %412 = sbr.rel (%p410) target = $region84
        $region83: #{tpu_custom_call.1} parent=55 // pred_region
          %413 = dma.done [#allocation13], 16
        $region84: #{tpu_custom_call.1} parent=55 // pred_fallthru
          _
        // Predicated region
        $region85: #{tpu_custom_call.1} parent=55 // pred_check
          %p414 = pneg %p200
        $region86: #{tpu_custom_call.1} parent=55 // pred_check_branch
          %416 = sbr.rel (%p414) target = $region88
        $region87: #{tpu_custom_call.1} parent=55 // pred_region
          %417 = dma.done [#allocation16], 512
        $region88: #{tpu_custom_call.1} parent=55 // pred_fallthru
          _
        %s418 = sand.u32 %s40, 1
        %s419 = scalar_lea.sflag [#allocation4], %s418
        %s420 = sand.u32 %s40, 1
        %s421 = smul.addr %s420, 64
        %s422 = scalar_lea.vmem [#allocation3], %s421
        %p423 = pneg %p53
        %p424 = pneg %p50
        %p425 = pneg %p74
        %p426 = pneg %p71
        %p427 = pneg %p95
        %p428 = pneg %p92
        %p429 = pneg %p116
        %p430 = pneg %p113
        %p431 = pneg %p137
        %p432 = pneg %p134
        %p433 = pneg %p158
        %p434 = pneg %p155
        %p435 = pneg %p179
        %p436 = pneg %p176
        %p437 = pneg %p200
        %p438 = pneg %p197
        %p439 = pneg %p221
        %p440 = pneg %p218
        %p441 = pneg %p247
        %p442 = pneg %p244
        %s443 = sand.u32 %s234, 1
        %s444 = scalar_lea.sflag [#allocation5], %s443
        %s445 = sand.u32 %s234, 1
        %s446 = smul.addr %s445, 8
        %s447 = scalar_lea.vmem [#allocation17], %s446
        %v448 = vld [vmem:[#allocation6] sm:$0xff]
        %v449 = vld [vmem:[#allocation6 + $0x8] sm:$0xff]
        %v450 = vld [vmem:[#allocation6 + $0x10] sm:$0xff]
        %v451 = vld [vmem:[#allocation6 + $0x18] sm:$0xff]
        %v452 = vld [vmem:[#allocation11] sm:$0xff]
        %v453 = vld [vmem:[#allocation11 + $0x8] sm:$0xff]
        %v454 = vld [vmem:[#allocation11 + $0x10] sm:$0xff]
        %v455 = vld [vmem:[#allocation11 + $0x18] sm:$0xff]
        %v456 = vld [vmem:[#allocation9] sm:$0xff]
        %v457 = vld [vmem:[#allocation9 + $0x8] sm:$0xff]
        %v458 = vld [vmem:[#allocation9 + $0x10] sm:$0xff]
        %v459 = vld [vmem:[#allocation9 + $0x18] sm:$0xff]
        %v460 = vld [vmem:[#allocation12] sm:$0x1]
        %v462 = vlaneseq
        %v463 = vshrl.u32 %v462, 7
        %v464 = vsub.s32 0, %v463
        %v465 = vrot.slane %v460, %v464
        %v467 = vld [vmem:[#allocation8] sm:$0x1]
        %v469 = vlaneseq
        %v470 = vshrl.u32 %v469, 7
        %v471 = vsub.s32 0, %v470
        %v472 = vrot.slane %v467, %v471
        %v473 = vld [vmem:[#allocation14] sm:$0x1]
        %v475 = vlaneseq
        %v476 = vshrl.u32 %v475, 7
        %v477 = vsub.s32 0, %v476
        %v478 = vrot.slane %v473, %v477
        %v479 = vld [vmem:[%s385] sm:$0xff]
        %vm480 = vcmask 261120
        %v482 = vsel %vm480, 0.0, 0
        %484 = vmatprep.subr.mxu0 0.0
        %485 = vmatpush1.msra.mxu0 %v448
        %486 = vmatprep.subr.mxu0 0.0
        %487 = vmatpush1.msra.mxu0 %v449
        %488 = vmatprep.subr.mxu0 0.0
        %489 = vmatpush1.msra.mxu0 %v450
        %490 = vmatprep.subr.mxu0 0.0
        %491 = vmatpush1.msra.mxu0 %v451
        %492 = vmatprep.subr.mxu0 0.0
        %493 = vmatpush1.msra.mxu0 0.0
        %494 = vmatprep.subr.mxu0 0.0
        %495 = vmatpush1.msra.mxu0 0.0
        %496 = vmatprep.subr.mxu0 0.0
        %497 = vmatpush1.msra.mxu0 0.0
        %498 = vmatprep.subr.mxu0 0.0
        %499 = vmatpush1.msra.mxu0 0.0
        %500 = vmatprep.subr.mxu0 0.0
        %501 = vmatpush1.msra.mxu0 0.0
        %502 = vmatprep.subr.mxu0 0.0
        %503 = vmatpush1.msra.mxu0 0.0
        %504 = vmatprep.subr.mxu0 0.0
        %505 = vmatpush1.msra.mxu0 0.0
        %506 = vmatprep.subr.mxu0 0.0
        %507 = vmatpush1.msra.mxu0 0.0
        %508 = vmatprep.subr.mxu0 0.0
        %509 = vmatpush1.msra.mxu0 0.0
        %510 = vmatprep.subr.mxu0 0.0
        %511 = vmatpush1.msra.mxu0 0.0
        %512 = vmatprep.subr.mxu0 0.0
        %513 = vmatpush1.msra.mxu0 0.0
        %514 = vmatprep.subr.mxu0 0.0
        %515 = vmatpush1.msra.mxu0 0.0
        %516 = vmatprep.subr.mxu0 0.0
        %517 = vmatpush1.msra.mxu0 0.0
        %518 = vmatprep.subr.mxu0 0.0
        %519 = vmatpush1.msra.mxu0 0.0
        %520 = vmatprep.subr.mxu0 0.0
        %521 = vmatpush1.msra.mxu0 0.0
        %522 = vmatprep.subr.mxu0 0.0
        %523 = vmatpush1.msra.mxu0 0.0
        %524 = vmatprep.subr.mxu0 0.0
        %525 = vmatpush1.msra.mxu0 0.0
        %526 = vmatprep.subr.mxu0 0.0
        %527 = vmatpush1.msra.mxu0 0.0
        %528 = vmatprep.subr.mxu0 0.0
        %529 = vmatpush1.msra.mxu0 0.0
        %530 = vmatprep.subr.mxu0 0.0
        %531 = vmatpush1.msra.mxu0 0.0
        %532 = vmatprep.subr.mxu0 0.0
        %533 = vmatpush1.msra.mxu0 0.0
        %534 = vmatprep.subr.mxu0 0.0
        %535 = vmatpush1.msra.mxu0 0.0
        %536 = vmatprep.subr.mxu0 0.0
        %537 = vmatpush1.msra.mxu0 0.0
        %538 = vmatprep.subr.mxu0 0.0
        %539 = vmatpush1.msra.mxu0 0.0
        %540 = vmatprep.subr.mxu0 0.0
        %541 = vmatpush1.msra.mxu0 0.0
        %542 = vmatprep.subr.mxu0 0.0
        %543 = vmatpush1.msra.mxu0 0.0
        %544 = vmatprep.subr.mxu0 0.0
        %545 = vmatpush1.msra.mxu0 0.0
        %546 = vmatprep.subr.mxu0 0.0
        %547 = vmatpush1.msra.mxu0 0.0
        %548 = vmatprep.mubr.f32.mxu0 0.0
        %549 = vmatmul.mubr.f32.gmra.mrb[0].mxu0 %v482
        %v550 = vpop.f32.mrb[0].mxu0
        %v551 = vadd.f32 0.0, %v550
        %v552 = vpop.f32.mrb[0].mxu0
        %553 = vdwg.mxu0
        %v554 = vadd.f32 %v479, %v551
        %v555 = vxor.u32 %v554, 2147483648
        %v556 = vmul.f32 %v555, 1.442695
        %v557 = vpow.pop %v556
        %v558 = vadd.f32 %v557, 1.0
        %v559 = vrcp.pop %v558
        %v560 = vmul.f32 1.0, %v559
        %561 = vrot.lane.b32.xlu0 %v472, 64
        %v562 = vpop.permute.xlu0 %561
        %v564 = vadd.f32 %v551, %v562
        %566 = vrot.lane.b32.xlu0 %v564, 64
        %v567 = vpop.permute.xlu0 %566
        %v569 = vmul.f32 %v560, %v567
        %571 = vrot.lane.b32.xlu0 %v569, 64
        %v572 = vpop.permute.xlu0 %571
        %v574 = vadd.f32 %v479, %v572
        %v575 = vtanh.pop %v574
        %v576 = vsub.f32 1.0, %v560
        %578 = vrot.lane.b32.xlu0 %v575, 96
        %v579 = vpop.permute.xlu0 %578
        %v581 = vmul.f32 %v576, %v579
        %v582 = vmul.f32 %v560, 0.0
        %v583 = vadd.f32 %v581, %v582
        %585 = vrot.lane.b32.xlu0 %v583, 96
        %v586 = vpop.permute.xlu0 %585
        %v587 = vsel %vm480, %v586, 0
        %589 = vmatprep.subr.mxu0 0.0
        %590 = vmatpush1.msra.mxu0 %v456
        %591 = vmatprep.subr.mxu0 0.0
        %592 = vmatpush1.msra.mxu0 %v457
        %593 = vmatprep.subr.mxu0 0.0
        %594 = vmatpush1.msra.mxu0 %v458
        %595 = vmatprep.subr.mxu0 0.0
        %596 = vmatpush1.msra.mxu0 %v459
        %597 = vmatprep.subr.mxu0 0.0
        %598 = vmatpush1.msra.mxu0 0.0
        %599 = vmatprep.subr.mxu0 0.0
        %600 = vmatpush1.msra.mxu0 0.0
        %601 = vmatprep.subr.mxu0 0.0
        %602 = vmatpush1.msra.mxu0 0.0
        %603 = vmatprep.subr.mxu0 0.0
        %604 = vmatpush1.msra.mxu0 0.0
        %605 = vmatprep.subr.mxu0 0.0
        %606 = vmatpush1.msra.mxu0 0.0
        %607 = vmatprep.subr.mxu0 0.0
        %608 = vmatpush1.msra.mxu0 0.0
        %609 = vmatprep.subr.mxu0 0.0
        %610 = vmatpush1.msra.mxu0 0.0
        %611 = vmatprep.subr.mxu0 0.0
        %612 = vmatpush1.msra.mxu0 0.0
        %613 = vmatprep.subr.mxu0 0.0
        %614 = vmatpush1.msra.mxu0 0.0
        %615 = vmatprep.subr.mxu0 0.0
        %616 = vmatpush1.msra.mxu0 0.0
        %617 = vmatprep.subr.mxu0 0.0
        %618 = vmatpush1.msra.mxu0 0.0
        %619 = vmatprep.subr.mxu0 0.0
        %620 = vmatpush1.msra.mxu0 0.0
        %621 = vmatprep.subr.mxu0 0.0
        %622 = vmatpush1.msra.mxu0 0.0
        %623 = vmatprep.subr.mxu0 0.0
        %624 = vmatpush1.msra.mxu0 0.0
        %625 = vmatprep.subr.mxu0 0.0
        %626 = vmatpush1.msra.mxu0 0.0
        %627 = vmatprep.subr.mxu0 0.0
        %628 = vmatpush1.msra.mxu0 0.0
        %629 = vmatprep.subr.mxu0 0.0
        %630 = vmatpush1.msra.mxu0 0.0
        %631 = vmatprep.subr.mxu0 0.0
        %632 = vmatpush1.msra.mxu0 0.0
        %633 = vmatprep.subr.mxu0 0.0
        %634 = vmatpush1.msra.mxu0 0.0
        %635 = vmatprep.subr.mxu0 0.0
        %636 = vmatpush1.msra.mxu0 0.0
        %637 = vmatprep.subr.mxu0 0.0
        %638 = vmatpush1.msra.mxu0 0.0
        %639 = vmatprep.subr.mxu0 0.0
        %640 = vmatpush1.msra.mxu0 0.0
        %641 = vmatprep.subr.mxu0 0.0
        %642 = vmatpush1.msra.mxu0 0.0
        %643 = vmatprep.subr.mxu0 0.0
        %644 = vmatpush1.msra.mxu0 0.0
        %645 = vmatprep.subr.mxu0 0.0
        %646 = vmatpush1.msra.mxu0 0.0
        %647 = vmatprep.subr.mxu0 0.0
        %648 = vmatpush1.msra.mxu0 0.0
        %649 = vmatprep.subr.mxu0 0.0
        %650 = vmatpush1.msra.mxu0 0.0
        %651 = vmatprep.subr.mxu0 0.0
        %652 = vmatpush1.msra.mxu0 0.0
        %653 = vmatprep.mubr.f32.mxu0 0.0
        %654 = vmatmul.mubr.f32.gmra.mrb[0].mxu0 %v587
        %v655 = vpop.f32.mrb[0].mxu0
        %v656 = vadd.f32 %v465, %v655
        %v657 = vpop.f32.mrb[0].mxu0
        %658 = vdwg.mxu0
        %659 = vmatprep.subr.mxu0 0.0
        %660 = vmatpush1.msra.mxu0 %v452
        %661 = vmatprep.subr.mxu0 0.0
        %662 = vmatpush1.msra.mxu0 %v453
        %663 = vmatprep.subr.mxu0 0.0
        %664 = vmatpush1.msra.mxu0 %v454
        %665 = vmatprep.subr.mxu0 0.0
        %666 = vmatpush1.msra.mxu0 %v455
        %667 = vmatprep.subr.mxu0 0.0
        %668 = vmatpush1.msra.mxu0 0.0
        %669 = vmatprep.subr.mxu0 0.0
        %670 = vmatpush1.msra.mxu0 0.0
        %671 = vmatprep.subr.mxu0 0.0
        %672 = vmatpush1.msra.mxu0 0.0
        %673 = vmatprep.subr.mxu0 0.0
        %674 = vmatpush1.msra.mxu0 0.0
        %675 = vmatprep.subr.mxu0 0.0
        %676 = vmatpush1.msra.mxu0 0.0
        %677 = vmatprep.subr.mxu0 0.0
        %678 = vmatpush1.msra.mxu0 0.0
        %679 = vmatprep.subr.mxu0 0.0
        %680 = vmatpush1.msra.mxu0 0.0
        %681 = vmatprep.subr.mxu0 0.0
        %682 = vmatpush1.msra.mxu0 0.0
        %683 = vmatprep.subr.mxu0 0.0
        %684 = vmatpush1.msra.mxu0 0.0
        %685 = vmatprep.subr.mxu0 0.0
        %686 = vmatpush1.msra.mxu0 0.0
        %687 = vmatprep.subr.mxu0 0.0
        %688 = vmatpush1.msra.mxu0 0.0
        %689 = vmatprep.subr.mxu0 0.0
        %690 = vmatpush1.msra.mxu0 0.0
        %691 = vmatprep.subr.mxu0 0.0
        %692 = vmatpush1.msra.mxu0 0.0
        %693 = vmatprep.subr.mxu0 0.0
        %694 = vmatpush1.msra.mxu0 0.0
        %695 = vmatprep.subr.mxu0 0.0
        %696 = vmatpush1.msra.mxu0 0.0
        %697 = vmatprep.subr.mxu0 0.0
        %698 = vmatpush1.msra.mxu0 0.0
        %699 = vmatprep.subr.mxu0 0.0
        %700 = vmatpush1.msra.mxu0 0.0
        %701 = vmatprep.subr.mxu0 0.0
        %702 = vmatpush1.msra.mxu0 0.0
        %703 = vmatprep.subr.mxu0 0.0
        %704 = vmatpush1.msra.mxu0 0.0
        %705 = vmatprep.subr.mxu0 0.0
        %706 = vmatpush1.msra.mxu0 0.0
        %707 = vmatprep.subr.mxu0 0.0
        %708 = vmatpush1.msra.mxu0 0.0
        %709 = vmatprep.subr.mxu0 0.0
        %710 = vmatpush1.msra.mxu0 0.0
        %711 = vmatprep.subr.mxu0 0.0
        %712 = vmatpush1.msra.mxu0 0.0
        %713 = vmatprep.subr.mxu0 0.0
        %714 = vmatpush1.msra.mxu0 0.0
        %715 = vmatprep.subr.mxu0 0.0
        %716 = vmatpush1.msra.mxu0 0.0
        %717 = vmatprep.subr.mxu0 0.0
        %718 = vmatpush1.msra.mxu0 0.0
        %719 = vmatprep.subr.mxu0 0.0
        %720 = vmatpush1.msra.mxu0 0.0
        %721 = vmatprep.subr.mxu0 0.0
        %722 = vmatpush1.msra.mxu0 0.0
        %723 = vmatprep.mubr.f32.mxu0 0.0
        %724 = vmatmul.mubr.f32.gmra.mrb[0].mxu0 %v482
        %v725 = vpop.f32.mrb[0].mxu0
        %v726 = vadd.f32 0.0, %v725
        %v727 = vpop.f32.mrb[0].mxu0
        %728 = vdwg.mxu0
        %v729 = vadd.f32 %v656, %v726
        %v730 = vxor.u32 %v729, 2147483648
        %v731 = vmul.f32 %v730, 1.442695
        %v732 = vpow.pop %v731
        %v733 = vadd.f32 %v732, 1.0
        %v734 = vrcp.pop %v733
        %v735 = vmul.f32 1.0, %v734
        %736 = vrot.lane.b32.xlu0 %v478, 64
        %v737 = vpop.permute.xlu0 %736
        %v739 = vadd.f32 %v726, %v737
        %741 = vrot.lane.b32.xlu0 %v739, 64
        %v742 = vpop.permute.xlu0 %741
        %v744 = vmul.f32 %v735, %v742
        %746 = vrot.lane.b32.xlu0 %v744, 64
        %v747 = vpop.permute.xlu0 %746
        %v749 = vadd.f32 %v656, %v747
        %v750 = vtanh.pop %v749
        %v751 = vsub.f32 1.0, %v735
        %753 = vrot.lane.b32.xlu0 %v750, 96
        %v754 = vpop.permute.xlu0 %753
        %v756 = vmul.f32 %v751, %v754
        %v757 = vmul.f32 %v735, 0.0
        %v758 = vadd.f32 %v756, %v757
        %s759 = scalar_lea.vmem %s385, 8 [#allocation3]
        %v760 = vld [vmem:[%s759] sm:$0xff]
        %761 = vmatprep.subr.mxu0 0.0
        %762 = vmatpush1.msra.mxu0 %v448
        %763 = vmatprep.subr.mxu0 0.0
        %764 = vmatpush1.msra.mxu0 %v449
        %765 = vmatprep.subr.mxu0 0.0
        %766 = vmatpush1.msra.mxu0 %v450
        %767 = vmatprep.subr.mxu0 0.0
        %768 = vmatpush1.msra.mxu0 %v451
        %769 = vmatprep.subr.mxu0 0.0
        %770 = vmatpush1.msra.mxu0 0.0
        %771 = vmatprep.subr.mxu0 0.0
        %772 = vmatpush1.msra.mxu0 0.0
        %773 = vmatprep.subr.mxu0 0.0
        %774 = vmatpush1.msra.mxu0 0.0
        %775 = vmatprep.subr.mxu0 0.0
        %776 = vmatpush1.msra.mxu0 0.0
        %777 = vmatprep.subr.mxu0 0.0
        %778 = vmatpush1.msra.mxu0 0.0
        %779 = vmatprep.subr.mxu0 0.0
        %780 = vmatpush1.msra.mxu0 0.0
        %781 = vmatprep.subr.mxu0 0.0
        %782 = vmatpush1.msra.mxu0 0.0
        %783 = vmatprep.subr.mxu0 0.0
        %784 = vmatpush1.msra.mxu0 0.0
        %785 = vmatprep.subr.mxu0 0.0
        %786 = vmatpush1.msra.mxu0 0.0
        %787 = vmatprep.subr.mxu0 0.0
        %788 = vmatpush1.msra.mxu0 0.0
        %789 = vmatprep.subr.mxu0 0.0
        %790 = vmatpush1.msra.mxu0 0.0
        %791 = vmatprep.subr.mxu0 0.0
        %792 = vmatpush1.msra.mxu0 0.0
        %793 = vmatprep.subr.mxu0 0.0
        %794 = vmatpush1.msra.mxu0 0.0
        %795 = vmatprep.subr.mxu0 0.0
        %796 = vmatpush1.msra.mxu0 0.0
        %797 = vmatprep.subr.mxu0 0.0
        %798 = vmatpush1.msra.mxu0 0.0
        %799 = vmatprep.subr.mxu0 0.0
        %800 = vmatpush1.msra.mxu0 0.0
        %801 = vmatprep.subr.mxu0 0.0
        %802 = vmatpush1.msra.mxu0 0.0
        %803 = vmatprep.subr.mxu0 0.0
        %804 = vmatpush1.msra.mxu0 0.0
        %805 = vmatprep.subr.mxu0 0.0
        %806 = vmatpush1.msra.mxu0 0.0
        %807 = vmatprep.subr.mxu0 0.0
        %808 = vmatpush1.msra.mxu0 0.0
        %809 = vmatprep.subr.mxu0 0.0
        %810 = vmatpush1.msra.mxu0 0.0
        %811 = vmatprep.subr.mxu0 0.0
        %812 = vmatpush1.msra.mxu0 0.0
        %813 = vmatprep.subr.mxu0 0.0
        %814 = vmatpush1.msra.mxu0 0.0
        %815 = vmatprep.subr.mxu0 0.0
        %816 = vmatpush1.msra.mxu0 0.0
        %817 = vmatprep.subr.mxu0 0.0
        %818 = vmatpush1.msra.mxu0 0.0
        %819 = vmatprep.subr.mxu0 0.0
        %820 = vmatpush1.msra.mxu0 0.0
        %821 = vmatprep.subr.mxu0 0.0
        %822 = vmatpush1.msra.mxu0 0.0
        %823 = vmatprep.subr.mxu0 0.0
        %824 = vmatpush1.msra.mxu0 0.0
        %825 = vmatprep.mubr.f32.mxu0 0.0
        %826 = vmatmul.mubr.f32.gmra.mrb[0].mxu0 %v587
        %v827 = vpop.f32.mrb[0].mxu0
        %v828 = vadd.f32 0.0, %v827
        %v829 = vpop.f32.mrb[0].mxu0
        %830 = vdwg.mxu0
        %v831 = vadd.f32 %v760, %v828
        %v832 = vxor.u32 %v831, 2147483648
        %v833 = vmul.f32 %v832, 1.442695
        %v834 = vpow.pop %v833
        %v835 = vadd.f32 %v834, 1.0
        %v836 = vrcp.pop %v835
        %v837 = vmul.f32 1.0, %v836
        %v838 = vadd.f32 %v828, %v562
        %840 = vrot.lane.b32.xlu0 %v838, 64
        %v841 = vpop.permute.xlu0 %840
        %v843 = vmul.f32 %v837, %v841
        %845 = vrot.lane.b32.xlu0 %v843, 64
        %v846 = vpop.permute.xlu0 %845
        %v848 = vadd.f32 %v760, %v846
        %v849 = vtanh.pop %v848
        %v850 = vsub.f32 1.0, %v837
        %852 = vrot.lane.b32.xlu0 %v849, 96
        %v853 = vpop.permute.xlu0 %852
        %v855 = vmul.f32 %v850, %v853
        %v856 = vmul.f32 %v837, %v583
        %v857 = vadd.f32 %v855, %v856
        %859 = vrot.lane.b32.xlu0 %v857, 96
        %v860 = vpop.permute.xlu0 %859
        %v861 = vsel %vm480, %v860, 0
        %863 = vmatprep.subr.mxu0 0.0
        %864 = vmatpush1.msra.mxu0 %v456
        %865 = vmatprep.subr.mxu0 0.0
        %866 = vmatpush1.msra.mxu0 %v457
        %867 = vmatprep.subr.mxu0 0.0
        %868 = vmatpush1.msra.mxu0 %v458
        %869 = vmatprep.subr.mxu0 0.0
        %870 = vmatpush1.msra.mxu0 %v459
        %871 = vmatprep.subr.mxu0 0.0
        %872 = vmatpush1.msra.mxu0 0.0
        %873 = vmatprep.subr.mxu0 0.0
        %874 = vmatpush1.msra.mxu0 0.0
        %875 = vmatprep.subr.mxu0 0.0
        %876 = vmatpush1.msra.mxu0 0.0
        %877 = vmatprep.subr.mxu0 0.0
        %878 = vmatpush1.msra.mxu0 0.0
        %879 = vmatprep.subr.mxu0 0.0
        %880 = vmatpush1.msra.mxu0 0.0
        %881 = vmatprep.subr.mxu0 0.0
        %882 = vmatpush1.msra.mxu0 0.0
        %883 = vmatprep.subr.mxu0 0.0
        %884 = vmatpush1.msra.mxu0 0.0
        %885 = vmatprep.subr.mxu0 0.0
        %886 = vmatpush1.msra.mxu0 0.0
        %887 = vmatprep.subr.mxu0 0.0
        %888 = vmatpush1.msra.mxu0 0.0
        %889 = vmatprep.subr.mxu0 0.0
        %890 = vmatpush1.msra.mxu0 0.0
        %891 = vmatprep.subr.mxu0 0.0
        %892 = vmatpush1.msra.mxu0 0.0
        %893 = vmatprep.subr.mxu0 0.0
        %894 = vmatpush1.msra.mxu0 0.0
        %895 = vmatprep.subr.mxu0 0.0
        %896 = vmatpush1.msra.mxu0 0.0
        %897 = vmatprep.subr.mxu0 0.0
        %898 = vmatpush1.msra.mxu0 0.0
        %899 = vmatprep.subr.mxu0 0.0
        %900 = vmatpush1.msra.mxu0 0.0
        %901 = vmatprep.subr.mxu0 0.0
        %902 = vmatpush1.msra.mxu0 0.0
        %903 = vmatprep.subr.mxu0 0.0
        %904 = vmatpush1.msra.mxu0 0.0
        %905 = vmatprep.subr.mxu0 0.0
        %906 = vmatpush1.msra.mxu0 0.0
        %907 = vmatprep.subr.mxu0 0.0
        %908 = vmatpush1.msra.mxu0 0.0
        %909 = vmatprep.subr.mxu0 0.0
        %910 = vmatpush1.msra.mxu0 0.0
        %911 = vmatprep.subr.mxu0 0.0
        %912 = vmatpush1.msra.mxu0 0.0
        %913 = vmatprep.subr.mxu0 0.0
        %914 = vmatpush1.msra.mxu0 0.0
        %915 = vmatprep.subr.mxu0 0.0
        %916 = vmatpush1.msra.mxu0 0.0
        %917 = vmatprep.subr.mxu0 0.0
        %918 = vmatpush1.msra.mxu0 0.0
        %919 = vmatprep.subr.mxu0 0.0
        %920 = vmatpush1.msra.mxu0 0.0
        %921 = vmatprep.subr.mxu0 0.0
        %922 = vmatpush1.msra.mxu0 0.0
        %923 = vmatprep.subr.mxu0 0.0
        %924 = vmatpush1.msra.mxu0 0.0
        %925 = vmatprep.subr.mxu0 0.0
        %926 = vmatpush1.msra.mxu0 0.0
        %927 = vmatprep.mubr.f32.mxu0 0.0
        %928 = vmatmul.mubr.f32.gmra.mrb[0].mxu0 %v861
        %v929 = vpop.f32.mrb[0].mxu0
        %v930 = vadd.f32 %v465, %v929
        %v931 = vpop.f32.mrb[0].mxu0
        %932 = vdwg.mxu0
        %934 = vrot.lane.b32.xlu0 %v758, 96
        %v935 = vpop.permute.xlu0 %934
        %v936 = vsel %vm480, %v935, 0
        %938 = vmatprep.subr.mxu0 0.0
        %939 = vmatpush1.msra.mxu0 %v452
        %940 = vmatprep.subr.mxu0 0.0
        %941 = vmatpush1.msra.mxu0 %v453
        %942 = vmatprep.subr.mxu0 0.0
        %943 = vmatpush1.msra.mxu0 %v454
        %944 = vmatprep.subr.mxu0 0.0
        %945 = vmatpush1.msra.mxu0 %v455
        %946 = vmatprep.subr.mxu0 0.0
        %947 = vmatpush1.msra.mxu0 0.0
        %948 = vmatprep.subr.mxu0 0.0
        %949 = vmatpush1.msra.mxu0 0.0
        %950 = vmatprep.subr.mxu0 0.0
        %951 = vmatpush1.msra.mxu0 0.0
        %952 = vmatprep.subr.mxu0 0.0
        %953 = vmatpush1.msra.mxu0 0.0
        %954 = vmatprep.subr.mxu0 0.0
        %955 = vmatpush1.msra.mxu0 0.0
        %956 = vmatprep.subr.mxu0 0.0
        %957 = vmatpush1.msra.mxu0 0.0
        %958 = vmatprep.subr.mxu0 0.0
        %959 = vmatpush1.msra.mxu0 0.0
        %960 = vmatprep.subr.mxu0 0.0
        %961 = vmatpush1.msra.mxu0 0.0
        %962 = vmatprep.subr.mxu0 0.0
        %963 = vmatpush1.msra.mxu0 0.0
        %964 = vmatprep.subr.mxu0 0.0
        %965 = vmatpush1.msra.mxu0 0.0
        %966 = vmatprep.subr.mxu0 0.0
        %967 = vmatpush1.msra.mxu0 0.0
        %968 = vmatprep.subr.mxu0 0.0
        %969 = vmatpush1.msra.mxu0 0.0
        %970 = vmatprep.subr.mxu0 0.0
        %971 = vmatpush1.msra.mxu0 0.0
        %972 = vmatprep.subr.mxu0 0.0
        %973 = vmatpush1.msra.mxu0 0.0
        %974 = vmatprep.subr.mxu0 0.0
        %975 = vmatpush1.msra.mxu0 0.0
        %976 = vmatprep.subr.mxu0 0.0
        %977 = vmatpush1.msra.mxu0 0.0
        %978 = vmatprep.subr.mxu0 0.0
        %979 = vmatpush1.msra.mxu0 0.0
        %980 = vmatprep.subr.mxu0 0.0
        %981 = vmatpush1.msra.mxu0 0.0
        %982 = vmatprep.subr.mxu0 0.0
        %983 = vmatpush1.msra.mxu0 0.0
        %984 = vmatprep.subr.mxu0 0.0
        %985 = vmatpush1.msra.mxu0 0.0
        %986 = vmatprep.subr.mxu0 0.0
        %987 = vmatpush1.msra.mxu0 0.0
        %988 = vmatprep.subr.mxu0 0.0
        %989 = vmatpush1.msra.mxu0 0.0
        %990 = vmatprep.subr.mxu0 0.0
        %991 = vmatpush1.msra.mxu0 0.0
        %992 = vmatprep.subr.mxu0 0.0
        %993 = vmatpush1.msra.mxu0 0.0
        %994 = vmatprep.subr.mxu0 0.0
        %995 = vmatpush1.msra.mxu0 0.0
        %996 = vmatprep.subr.mxu0 0.0
        %997 = vmatpush1.msra.mxu0 0.0
        %998 = vmatprep.subr.mxu0 0.0
        %999 = vmatpush1.msra.mxu0 0.0
        %1000 = vmatprep.subr.mxu0 0.0
        %1001 = vmatpush1.msra.mxu0 0.0
        %1002 = vmatprep.mubr.f32.mxu0 0.0
        %1003 = vmatmul.mubr.f32.gmra.mrb[0].mxu0 %v936
        %v1004 = vpop.f32.mrb[0].mxu0
        %v1005 = vadd.f32 0.0, %v1004
        %v1006 = vpop.f32.mrb[0].mxu0
        %1007 = vdwg.mxu0
        %v1008 = vadd.f32 %v930, %v1005
        %v1009 = vxor.u32 %v1008, 2147483648
        %v1010 = vmul.f32 %v1009, 1.442695
        %v1011 = vpow.pop %v1010
        %v1012 = vadd.f32 %v1011, 1.0
        %v1013 = vrcp.pop %v1012
        %v1014 = vmul.f32 1.0, %v1013
        %v1015 = vadd.f32 %v1005, %v737
        %1017 = vrot.lane.b32.xlu0 %v1015, 64
        %v1018 = vpop.permute.xlu0 %1017
        %v1020 = vmul.f32 %v1014, %v1018
        %1022 = vrot.lane.b32.xlu0 %v1020, 64
        %v1023 = vpop.permute.xlu0 %1022
        %v1025 = vadd.f32 %v930, %v1023
        %v1026 = vtanh.pop %v1025
        %v1027 = vsub.f32 1.0, %v1014
        %1029 = vrot.lane.b32.xlu0 %v1026, 96
        %v1030 = vpop.permute.xlu0 %1029
        %v1032 = vmul.f32 %v1027, %v1030
        %v1033 = vmul.f32 %v1014, %v758
        %v1034 = vadd.f32 %v1032, %v1033
        %s1035 = scalar_lea.vmem %s385, 16 [#allocation3]
        %v1036 = vld [vmem:[%s1035] sm:$0xff]
        %1037 = vmatprep.subr.mxu0 0.0
        %1038 = vmatpush1.msra.mxu0 %v448
        %1039 = vmatprep.subr.mxu0 0.0
        %1040 = vmatpush1.msra.mxu0 %v449
        %1041 = vmatprep.subr.mxu0 0.0
        %1042 = vmatpush1.msra.mxu0 %v450
        %1043 = vmatprep.subr.mxu0 0.0
        %1044 = vmatpush1.msra.mxu0 %v451
        %1045 = vmatprep.subr.mxu0 0.0
        %1046 = vmatpush1.msra.mxu0 0.0
        %1047 = vmatprep.subr.mxu0 0.0
        %1048 = vmatpush1.msra.mxu0 0.0
        %1049 = vmatprep.subr.mxu0 0.0
        %1050 = vmatpush1.msra.mxu0 0.0
        %1051 = vmatprep.subr.mxu0 0.0
        %1052 = vmatpush1.msra.mxu0 0.0
        %1053 = vmatprep.subr.mxu0 0.0
        %1054 = vmatpush1.msra.mxu0 0.0
        %1055 = vmatprep.subr.mxu0 0.0
        %1056 = vmatpush1.msra.mxu0 0.0
        %1057 = vmatprep.subr.mxu0 0.0
        %1058 = vmatpush1.msra.mxu0 0.0
        %1059 = vmatprep.subr.mxu0 0.0
        %1060 = vmatpush1.msra.mxu0 0.0
        %1061 = vmatprep.subr.mxu0 0.0
        %1062 = vmatpush1.msra.mxu0 0.0
        %1063 = vmatprep.subr.mxu0 0.0
        %1064 = vmatpush1.msra.mxu0 0.0
        %1065 = vmatprep.subr.mxu0 0.0
        %1066 = vmatpush1.msra.mxu0 0.0
        %1067 = vmatprep.subr.mxu0 0.0
        %1068 = vmatpush1.msra.mxu0 0.0
        %1069 = vmatprep.subr.mxu0 0.0
        %1070 = vmatpush1.msra.mxu0 0.0
        %1071 = vmatprep.subr.mxu0 0.0
        %1072 = vmatpush1.msra.mxu0 0.0
        %1073 = vmatprep.subr.mxu0 0.0
        %1074 = vmatpush1.msra.mxu0 0.0
        %1075 = vmatprep.subr.mxu0 0.0
        %1076 = vmatpush1.msra.mxu0 0.0
        %1077 = vmatprep.subr.mxu0 0.0
        %1078 = vmatpush1.msra.mxu0 0.0
        %1079 = vmatprep.subr.mxu0 0.0
        %1080 = vmatpush1.msra.mxu0 0.0
        %1081 = vmatprep.subr.mxu0 0.0
        %1082 = vmatpush1.msra.mxu0 0.0
        %1083 = vmatprep.subr.mxu0 0.0
        %1084 = vmatpush1.msra.mxu0 0.0
        %1085 = vmatprep.subr.mxu0 0.0
        %1086 = vmatpush1.msra.mxu0 0.0
        %1087 = vmatprep.subr.mxu0 0.0
        %1088 = vmatpush1.msra.mxu0 0.0
        %1089 = vmatprep.subr.mxu0 0.0
        %1090 = vmatpush1.msra.mxu0 0.0
        %1091 = vmatprep.subr.mxu0 0.0
        %1092 = vmatpush1.msra.mxu0 0.0
        %1093 = vmatprep.subr.mxu0 0.0
        %1094 = vmatpush1.msra.mxu0 0.0
        %1095 = vmatprep.subr.mxu0 0.0
        %1096 = vmatpush1.msra.mxu0 0.0
        %1097 = vmatprep.subr.mxu0 0.0
        %1098 = vmatpush1.msra.mxu0 0.0
        %1099 = vmatprep.subr.mxu0 0.0
        %1100 = vmatpush1.msra.mxu0 0.0
        %1101 = vmatprep.mubr.f32.mxu0 0.0
        %1102 = vmatmul.mubr.f32.gmra.mrb[0].mxu0 %v861
        %v1103 = vpop.f32.mrb[0].mxu0
        %v1104 = vadd.f32 0.0, %v1103
        %v1105 = vpop.f32.mrb[0].mxu0
        %1106 = vdwg.mxu0
        %v1107 = vadd.f32 %v1036, %v1104
        %v1108 = vxor.u32 %v1107, 2147483648
        %v1109 = vmul.f32 %v1108, 1.442695
        %v1110 = vpow.pop %v1109
        %v1111 = vadd.f32 %v1110, 1.0
        %v1112 = vrcp.pop %v1111
        %v1113 = vmul.f32 1.0, %v1112
        %v1114 = vadd.f32 %v1104, %v562
        %1116 = vrot.lane.b32.xlu0 %v1114, 64
        %v1117 = vpop.permute.xlu0 %1116
        %v1119 = vmul.f32 %v1113, %v1117
        %1121 = vrot.lane.b32.xlu0 %v1119, 64
        %v1122 = vpop.permute.xlu0 %1121
        %v1124 = vadd.f32 %v1036, %v1122
        %v1125 = vtanh.pop %v1124
        %v1126 = vsub.f32 1.0, %v1113
        %1128 = vrot.lane.b32.xlu0 %v1125, 96
        %v1129 = vpop.permute.xlu0 %1128
        %v1131 = vmul.f32 %v1126, %v1129
        %v1132 = vmul.f32 %v1113, %v857
        %v1133 = vadd.f32 %v1131, %v1132
        %1135 = vrot.lane.b32.xlu0 %v1133, 96
        %v1136 = vpop.permute.xlu0 %1135
        %v1137 = vsel %vm480, %v1136, 0
        %1139 = vmatprep.subr.mxu0 0.0
        %1140 = vmatpush1.msra.mxu0 %v456
        %1141 = vmatprep.subr.mxu0 0.0
        %1142 = vmatpush1.msra.mxu0 %v457
        %1143 = vmatprep.subr.mxu0 0.0
        %1144 = vmatpush1.msra.mxu0 %v458
        %1145 = vmatprep.subr.mxu0 0.0
        %1146 = vmatpush1.msra.mxu0 %v459
        %1147 = vmatprep.subr.mxu0 0.0
        %1148 = vmatpush1.msra.mxu0 0.0
        %1149 = vmatprep.subr.mxu0 0.0
        %1150 = vmatpush1.msra.mxu0 0.0
        %1151 = vmatprep.subr.mxu0 0.0
        %1152 = vmatpush1.msra.mxu0 0.0
        %1153 = vmatprep.subr.mxu0 0.0
        %1154 = vmatpush1.msra.mxu0 0.0
        %1155 = vmatprep.subr.mxu0 0.0
        %1156 = vmatpush1.msra.mxu0 0.0
        %1157 = vmatprep.subr.mxu0 0.0
        %1158 = vmatpush1.msra.mxu0 0.0
        %1159 = vmatprep.subr.mxu0 0.0
        %1160 = vmatpush1.msra.mxu0 0.0
        %1161 = vmatprep.subr.mxu0 0.0
        %1162 = vmatpush1.msra.mxu0 0.0
        %1163 = vmatprep.subr.mxu0 0.0
        %1164 = vmatpush1.msra.mxu0 0.0
        %1165 = vmatprep.subr.mxu0 0.0
        %1166 = vmatpush1.msra.mxu0 0.0
        %1167 = vmatprep.subr.mxu0 0.0
        %1168 = vmatpush1.msra.mxu0 0.0
        %1169 = vmatprep.subr.mxu0 0.0
        %1170 = vmatpush1.msra.mxu0 0.0
        %1171 = vmatprep.subr.mxu0 0.0
        %1172 = vmatpush1.msra.mxu0 0.0
        %1173 = vmatprep.subr.mxu0 0.0
        %1174 = vmatpush1.msra.mxu0 0.0
        %1175 = vmatprep.subr.mxu0 0.0
        %1176 = vmatpush1.msra.mxu0 0.0
        %1177 = vmatprep.subr.mxu0 0.0
        %1178 = vmatpush1.msra.mxu0 0.0
        %1179 = vmatprep.subr.mxu0 0.0
        %1180 = vmatpush1.msra.mxu0 0.0
        %1181 = vmatprep.subr.mxu0 0.0
        %1182 = vmatpush1.msra.mxu0 0.0
        %1183 = vmatprep.subr.mxu0 0.0
        %1184 = vmatpush1.msra.mxu0 0.0
        %1185 = vmatprep.subr.mxu0 0.0
        %1186 = vmatpush1.msra.mxu0 0.0
        %1187 = vmatprep.subr.mxu0 0.0
        %1188 = vmatpush1.msra.mxu0 0.0
        %1189 = vmatprep.subr.mxu0 0.0
        %1190 = vmatpush1.msra.mxu0 0.0
        %1191 = vmatprep.subr.mxu0 0.0
        %1192 = vmatpush1.msra.mxu0 0.0
        %1193 = vmatprep.subr.mxu0 0.0
        %1194 = vmatpush1.msra.mxu0 0.0
        %1195 = vmatprep.subr.mxu0 0.0
        %1196 = vmatpush1.msra.mxu0 0.0
        %1197 = vmatprep.subr.mxu0 0.0
        %1198 = vmatpush1.msra.mxu0 0.0
        %1199 = vmatprep.subr.mxu0 0.0
        %1200 = vmatpush1.msra.mxu0 0.0
        %1201 = vmatprep.subr.mxu0 0.0
        %1202 = vmatpush1.msra.mxu0 0.0
        %1203 = vmatprep.mubr.f32.mxu0 0.0
        %1204 = vmatmul.mubr.f32.gmra.mrb[0].mxu0 %v1137
        %v1205 = vpop.f32.mrb[0].mxu0
        %v1206 = vadd.f32 %v465, %v1205
        %v1207 = vpop.f32.mrb[0].mxu0
        %1208 = vdwg.mxu0
        %1210 = vrot.lane.b32.xlu0 %v1034, 96
        %v1211 = vpop.permute.xlu0 %1210
        %v1212 = vsel %vm480, %v1211, 0
        %1214 = vmatprep.subr.mxu0 0.0
        %1215 = vmatpush1.msra.mxu0 %v452
        %1216 = vmatprep.subr.mxu0 0.0
        %1217 = vmatpush1.msra.mxu0 %v453
        %1218 = vmatprep.subr.mxu0 0.0
        %1219 = vmatpush1.msra.mxu0 %v454
        %1220 = vmatprep.subr.mxu0 0.0
        %1221 = vmatpush1.msra.mxu0 %v455
        %1222 = vmatprep.subr.mxu0 0.0
        %1223 = vmatpush1.msra.mxu0 0.0
        %1224 = vmatprep.subr.mxu0 0.0
        %1225 = vmatpush1.msra.mxu0 0.0
        %1226 = vmatprep.subr.mxu0 0.0
        %1227 = vmatpush1.msra.mxu0 0.0
        %1228 = vmatprep.subr.mxu0 0.0
        %1229 = vmatpush1.msra.mxu0 0.0
        %1230 = vmatprep.subr.mxu0 0.0
        %1231 = vmatpush1.msra.mxu0 0.0
        %1232 = vmatprep.subr.mxu0 0.0
        %1233 = vmatpush1.msra.mxu0 0.0
        %1234 = vmatprep.subr.mxu0 0.0
        %1235 = vmatpush1.msra.mxu0 0.0
        %1236 = vmatprep.subr.mxu0 0.0
        %1237 = vmatpush1.msra.mxu0 0.0
        %1238 = vmatprep.subr.mxu0 0.0
        %1239 = vmatpush1.msra.mxu0 0.0
        %1240 = vmatprep.subr.mxu0 0.0
        %1241 = vmatpush1.msra.mxu0 0.0
        %1242 = vmatprep.subr.mxu0 0.0
        %1243 = vmatpush1.msra.mxu0 0.0
        %1244 = vmatprep.subr.mxu0 0.0
        %1245 = vmatpush1.msra.mxu0 0.0
        %1246 = vmatprep.subr.mxu0 0.0
        %1247 = vmatpush1.msra.mxu0 0.0
        %1248 = vmatprep.subr.mxu0 0.0
        %1249 = vmatpush1.msra.mxu0 0.0
        %1250 = vmatprep.subr.mxu0 0.0
        %1251 = vmatpush1.msra.mxu0 0.0
        %1252 = vmatprep.subr.mxu0 0.0
        %1253 = vmatpush1.msra.mxu0 0.0
        %1254 = vmatprep.subr.mxu0 0.0
        %1255 = vmatpush1.msra.mxu0 0.0
        %1256 = vmatprep.subr.mxu0 0.0
        %1257 = vmatpush1.msra.mxu0 0.0
        %1258 = vmatprep.subr.mxu0 0.0
        %1259 = vmatpush1.msra.mxu0 0.0
        %1260 = vmatprep.subr.mxu0 0.0
        %1261 = vmatpush1.msra.mxu0 0.0
        %1262 = vmatprep.subr.mxu0 0.0
        %1263 = vmatpush1.msra.mxu0 0.0
        %1264 = vmatprep.subr.mxu0 0.0
        %1265 = vmatpush1.msra.mxu0 0.0
        %1266 = vmatprep.subr.mxu0 0.0
        %1267 = vmatpush1.msra.mxu0 0.0
        %1268 = vmatprep.subr.mxu0 0.0
        %1269 = vmatpush1.msra.mxu0 0.0
        %1270 = vmatprep.subr.mxu0 0.0
        %1271 = vmatpush1.msra.mxu0 0.0
        %1272 = vmatprep.subr.mxu0 0.0
        %1273 = vmatpush1.msra.mxu0 0.0
        %1274 = vmatprep.subr.mxu0 0.0
        %1275 = vmatpush1.msra.mxu0 0.0
        %1276 = vmatprep.subr.mxu0 0.0
        %1277 = vmatpush1.msra.mxu0 0.0
        %1278 = vmatprep.mubr.f32.mxu0 0.0
        %1279 = vmatmul.mubr.f32.gmra.mrb[0].mxu0 %v1212
        %v1280 = vpop.f32.mrb[0].mxu0
        %v1281 = vadd.f32 0.0, %v1280
        %v1282 = vpop.f32.mrb[0].mxu0
        %1283 = vdwg.mxu0
        %v1284 = vadd.f32 %v1206, %v1281
        %v1285 = vxor.u32 %v1284, 2147483648
        %v1286 = vmul.f32 %v1285, 1.442695
        %v1287 = vpow.pop %v1286
        %v1288 = vadd.f32 %v1287, 1.0
        %v1289 = vrcp.pop %v1288
        %v1290 = vmul.f32 1.0, %v1289
        %v1291 = vadd.f32 %v1281, %v737
        %1293 = vrot.lane.b32.xlu0 %v1291, 64
        %v1294 = vpop.permute.xlu0 %1293
        %v1296 = vmul.f32 %v1290, %v1294
        %1298 = vrot.lane.b32.xlu0 %v1296, 64
        %v1299 = vpop.permute.xlu0 %1298
        %v1301 = vadd.f32 %v1206, %v1299
        %v1302 = vtanh.pop %v1301
        %v1303 = vsub.f32 1.0, %v1290
        %1305 = vrot.lane.b32.xlu0 %v1302, 96
        %v1306 = vpop.permute.xlu0 %1305
        %v1308 = vmul.f32 %v1303, %v1306
        %v1309 = vmul.f32 %v1290, %v1034
        %v1310 = vadd.f32 %v1308, %v1309
        %s1311 = scalar_lea.vmem %s385, 24 [#allocation3]
        %v1312 = vld [vmem:[%s1311] sm:$0xff]
        %1313 = vmatprep.subr.mxu0 0.0
        %1314 = vmatpush1.msra.mxu0 %v448
        %1315 = vmatprep.subr.mxu0 0.0
        %1316 = vmatpush1.msra.mxu0 %v449
        %1317 = vmatprep.subr.mxu0 0.0
        %1318 = vmatpush1.msra.mxu0 %v450
        %1319 = vmatprep.subr.mxu0 0.0
        %1320 = vmatpush1.msra.mxu0 %v451
        %1321 = vmatprep.subr.mxu0 0.0
        %1322 = vmatpush1.msra.mxu0 0.0
        %1323 = vmatprep.subr.mxu0 0.0
        %1324 = vmatpush1.msra.mxu0 0.0
        %1325 = vmatprep.subr.mxu0 0.0
        %1326 = vmatpush1.msra.mxu0 0.0
        %1327 = vmatprep.subr.mxu0 0.0
        %1328 = vmatpush1.msra.mxu0 0.0
        %1329 = vmatprep.subr.mxu0 0.0
        %1330 = vmatpush1.msra.mxu0 0.0
        %1331 = vmatprep.subr.mxu0 0.0
        %1332 = vmatpush1.msra.mxu0 0.0
        %1333 = vmatprep.subr.mxu0 0.0
        %1334 = vmatpush1.msra.mxu0 0.0
        %1335 = vmatprep.subr.mxu0 0.0
        %1336 = vmatpush1.msra.mxu0 0.0
        %1337 = vmatprep.subr.mxu0 0.0
        %1338 = vmatpush1.msra.mxu0 0.0
        %1339 = vmatprep.subr.mxu0 0.0
        %1340 = vmatpush1.msra.mxu0 0.0
        %1341 = vmatprep.subr.mxu0 0.0
        %1342 = vmatpush1.msra.mxu0 0.0
        %1343 = vmatprep.subr.mxu0 0.0
        %1344 = vmatpush1.msra.mxu0 0.0
        %1345 = vmatprep.subr.mxu0 0.0
        %1346 = vmatpush1.msra.mxu0 0.0
        %1347 = vmatprep.subr.mxu0 0.0
        %1348 = vmatpush1.msra.mxu0 0.0
        %1349 = vmatprep.subr.mxu0 0.0
        %1350 = vmatpush1.msra.mxu0 0.0
        %1351 = vmatprep.subr.mxu0 0.0
        %1352 = vmatpush1.msra.mxu0 0.0
        %1353 = vmatprep.subr.mxu0 0.0
        %1354 = vmatpush1.msra.mxu0 0.0
        %1355 = vmatprep.subr.mxu0 0.0
        %1356 = vmatpush1.msra.mxu0 0.0
        %1357 = vmatprep.subr.mxu0 0.0
        %1358 = vmatpush1.msra.mxu0 0.0
        %1359 = vmatprep.subr.mxu0 0.0
        %1360 = vmatpush1.msra.mxu0 0.0
        %1361 = vmatprep.subr.mxu0 0.0
        %1362 = vmatpush1.msra.mxu0 0.0
        %1363 = vmatprep.subr.mxu0 0.0
        %1364 = vmatpush1.msra.mxu0 0.0
        %1365 = vmatprep.subr.mxu0 0.0
        %1366 = vmatpush1.msra.mxu0 0.0
        %1367 = vmatprep.subr.mxu0 0.0
        %1368 = vmatpush1.msra.mxu0 0.0
        %1369 = vmatprep.subr.mxu0 0.0
        %1370 = vmatpush1.msra.mxu0 0.0
        %1371 = vmatprep.subr.mxu0 0.0
        %1372 = vmatpush1.msra.mxu0 0.0
        %1373 = vmatprep.subr.mxu0 0.0
        %1374 = vmatpush1.msra.mxu0 0.0
        %1375 = vmatprep.subr.mxu0 0.0
        %1376 = vmatpush1.msra.mxu0 0.0
        %1377 = vmatprep.mubr.f32.mxu0 0.0
        %1378 = vmatmul.mubr.f32.gmra.mrb[0].mxu0 %v1137
        %v1379 = vpop.f32.mrb[0].mxu0
        %v1380 = vadd.f32 0.0, %v1379
        %v1381 = vpop.f32.mrb[0].mxu0
        %1382 = vdwg.mxu0
        %v1383 = vadd.f32 %v1312, %v1380
        %v1384 = vxor.u32 %v1383, 2147483648
        %v1385 = vmul.f32 %v1384, 1.442695
        %v1386 = vpow.pop %v1385
        %v1387 = vadd.f32 %v1386, 1.0
        %v1388 = vrcp.pop %v1387
        %v1389 = vmul.f32 1.0, %v1388
        %v1390 = vadd.f32 %v1380, %v562
        %1392 = vrot.lane.b32.xlu0 %v1390, 64
        %v1393 = vpop.permute.xlu0 %1392
        %v1395 = vmul.f32 %v1389, %v1393
        %1397 = vrot.lane.b32.xlu0 %v1395, 64
        %v1398 = vpop.permute.xlu0 %1397
        %v1400 = vadd.f32 %v1312, %v1398
        %v1401 = vtanh.pop %v1400
        %v1402 = vsub.f32 1.0, %v1389
        %1404 = vrot.lane.b32.xlu0 %v1401, 96
        %v1405 = vpop.permute.xlu0 %1404
        %v1407 = vmul.f32 %v1402, %v1405
        %v1408 = vmul.f32 %v1389, %v1133
        %v1409 = vadd.f32 %v1407, %v1408
        %1411 = vrot.lane.b32.xlu0 %v1409, 96
        %v1412 = vpop.permute.xlu0 %1411
        %v1413 = vsel %vm480, %v1412, 0
        %1415 = vmatprep.subr.mxu0 0.0
        %1416 = vmatpush1.msra.mxu0 %v456
        %1417 = vmatprep.subr.mxu0 0.0
        %1418 = vmatpush1.msra.mxu0 %v457
        %1419 = vmatprep.subr.mxu0 0.0
        %1420 = vmatpush1.msra.mxu0 %v458
        %1421 = vmatprep.subr.mxu0 0.0
        %1422 = vmatpush1.msra.mxu0 %v459
        %1423 = vmatprep.subr.mxu0 0.0
        %1424 = vmatpush1.msra.mxu0 0.0
        %1425 = vmatprep.subr.mxu0 0.0
        %1426 = vmatpush1.msra.mxu0 0.0
        %1427 = vmatprep.subr.mxu0 0.0
        %1428 = vmatpush1.msra.mxu0 0.0
        %1429 = vmatprep.subr.mxu0 0.0
        %1430 = vmatpush1.msra.mxu0 0.0
        %1431 = vmatprep.subr.mxu0 0.0
        %1432 = vmatpush1.msra.mxu0 0.0
        %1433 = vmatprep.subr.mxu0 0.0
        %1434 = vmatpush1.msra.mxu0 0.0
        %1435 = vmatprep.subr.mxu0 0.0
        %1436 = vmatpush1.msra.mxu0 0.0
        %1437 = vmatprep.subr.mxu0 0.0
        %1438 = vmatpush1.msra.mxu0 0.0
        %1439 = vmatprep.subr.mxu0 0.0
        %1440 = vmatpush1.msra.mxu0 0.0
        %1441 = vmatprep.subr.mxu0 0.0
        %1442 = vmatpush1.msra.mxu0 0.0
        %1443 = vmatprep.subr.mxu0 0.0
        %1444 = vmatpush1.msra.mxu0 0.0
        %1445 = vmatprep.subr.mxu0 0.0
        %1446 = vmatpush1.msra.mxu0 0.0
        %1447 = vmatprep.subr.mxu0 0.0
        %1448 = vmatpush1.msra.mxu0 0.0
        %1449 = vmatprep.subr.mxu0 0.0
        %1450 = vmatpush1.msra.mxu0 0.0
        %1451 = vmatprep.subr.mxu0 0.0
        %1452 = vmatpush1.msra.mxu0 0.0
        %1453 = vmatprep.subr.mxu0 0.0
        %1454 = vmatpush1.msra.mxu0 0.0
        %1455 = vmatprep.subr.mxu0 0.0
        %1456 = vmatpush1.msra.mxu0 0.0
        %1457 = vmatprep.subr.mxu0 0.0
        %1458 = vmatpush1.msra.mxu0 0.0
        %1459 = vmatprep.subr.mxu0 0.0
        %1460 = vmatpush1.msra.mxu0 0.0
        %1461 = vmatprep.subr.mxu0 0.0
        %1462 = vmatpush1.msra.mxu0 0.0
        %1463 = vmatprep.subr.mxu0 0.0
        %1464 = vmatpush1.msra.mxu0 0.0
        %1465 = vmatprep.subr.mxu0 0.0
        %1466 = vmatpush1.msra.mxu0 0.0
        %1467 = vmatprep.subr.mxu0 0.0
        %1468 = vmatpush1.msra.mxu0 0.0
        %1469 = vmatprep.subr.mxu0 0.0
        %1470 = vmatpush1.msra.mxu0 0.0
        %1471 = vmatprep.subr.mxu0 0.0
        %1472 = vmatpush1.msra.mxu0 0.0
        %1473 = vmatprep.subr.mxu0 0.0
        %1474 = vmatpush1.msra.mxu0 0.0
        %1475 = vmatprep.subr.mxu0 0.0
        %1476 = vmatpush1.msra.mxu0 0.0
        %1477 = vmatprep.subr.mxu0 0.0
        %1478 = vmatpush1.msra.mxu0 0.0
        %1479 = vmatprep.mubr.f32.mxu0 0.0
        %1480 = vmatmul.mubr.f32.gmra.mrb[0].mxu0 %v1413
        %v1481 = vpop.f32.mrb[0].mxu0
        %v1482 = vadd.f32 %v465, %v1481
        %v1483 = vpop.f32.mrb[0].mxu0
        %1484 = vdwg.mxu0
        %1486 = vrot.lane.b32.xlu0 %v1310, 96
        %v1487 = vpop.permute.xlu0 %1486
        %v1488 = vsel %vm480, %v1487, 0
        %1490 = vmatprep.subr.mxu0 0.0
        %1491 = vmatpush1.msra.mxu0 %v452
        %1492 = vmatprep.subr.mxu0 0.0
        %1493 = vmatpush1.msra.mxu0 %v453
        %1494 = vmatprep.subr.mxu0 0.0
        %1495 = vmatpush1.msra.mxu0 %v454
        %1496 = vmatprep.subr.mxu0 0.0
        %1497 = vmatpush1.msra.mxu0 %v455
        %1498 = vmatprep.subr.mxu0 0.0
        %1499 = vmatpush1.msra.mxu0 0.0
        %1500 = vmatprep.subr.mxu0 0.0
        %1501 = vmatpush1.msra.mxu0 0.0
        %1502 = vmatprep.subr.mxu0 0.0
        %1503 = vmatpush1.msra.mxu0 0.0
        %1504 = vmatprep.subr.mxu0 0.0
        %1505 = vmatpush1.msra.mxu0 0.0
        %1506 = vmatprep.subr.mxu0 0.0
        %1507 = vmatpush1.msra.mxu0 0.0
        %1508 = vmatprep.subr.mxu0 0.0
        %1509 = vmatpush1.msra.mxu0 0.0
        %1510 = vmatprep.subr.mxu0 0.0
        %1511 = vmatpush1.msra.mxu0 0.0
        %1512 = vmatprep.subr.mxu0 0.0
        %1513 = vmatpush1.msra.mxu0 0.0
        %1514 = vmatprep.subr.mxu0 0.0
        %1515 = vmatpush1.msra.mxu0 0.0
        %1516 = vmatprep.subr.mxu0 0.0
        %1517 = vmatpush1.msra.mxu0 0.0
        %1518 = vmatprep.subr.mxu0 0.0
        %1519 = vmatpush1.msra.mxu0 0.0
        %1520 = vmatprep.subr.mxu0 0.0
        %1521 = vmatpush1.msra.mxu0 0.0
        %1522 = vmatprep.subr.mxu0 0.0
        %1523 = vmatpush1.msra.mxu0 0.0
        %1524 = vmatprep.subr.mxu0 0.0
        %1525 = vmatpush1.msra.mxu0 0.0
        %1526 = vmatprep.subr.mxu0 0.0
        %1527 = vmatpush1.msra.mxu0 0.0
        %1528 = vmatprep.subr.mxu0 0.0
        %1529 = vmatpush1.msra.mxu0 0.0
        %1530 = vmatprep.subr.mxu0 0.0
        %1531 = vmatpush1.msra.mxu0 0.0
        %1532 = vmatprep.subr.mxu0 0.0
        %1533 = vmatpush1.msra.mxu0 0.0
        %1534 = vmatprep.subr.mxu0 0.0
        %1535 = vmatpush1.msra.mxu0 0.0
        %1536 = vmatprep.subr.mxu0 0.0
        %1537 = vmatpush1.msra.mxu0 0.0
        %1538 = vmatprep.subr.mxu0 0.0
        %1539 = vmatpush1.msra.mxu0 0.0
        %1540 = vmatprep.subr.mxu0 0.0
        %1541 = vmatpush1.msra.mxu0 0.0
        %1542 = vmatprep.subr.mxu0 0.0
        %1543 = vmatpush1.msra.mxu0 0.0
        %1544 = vmatprep.subr.mxu0 0.0
        %1545 = vmatpush1.msra.mxu0 0.0
        %1546 = vmatprep.subr.mxu0 0.0
        %1547 = vmatpush1.msra.mxu0 0.0
        %1548 = vmatprep.subr.mxu0 0.0
        %1549 = vmatpush1.msra.mxu0 0.0
        %1550 = vmatprep.subr.mxu0 0.0
        %1551 = vmatpush1.msra.mxu0 0.0
        %1552 = vmatprep.subr.mxu0 0.0
        %1553 = vmatpush1.msra.mxu0 0.0
        %1554 = vmatprep.mubr.f32.mxu0 0.0
        %1555 = vmatmul.mubr.f32.gmra.mrb[0].mxu0 %v1488
        %v1556 = vpop.f32.mrb[0].mxu0
        %v1557 = vadd.f32 0.0, %v1556
        %v1558 = vpop.f32.mrb[0].mxu0
        %1559 = vdwg.mxu0
        %v1560 = vadd.f32 %v1482, %v1557
        %v1561 = vxor.u32 %v1560, 2147483648
        %v1562 = vmul.f32 %v1561, 1.442695
        %v1563 = vpow.pop %v1562
        %v1564 = vadd.f32 %v1563, 1.0
        %v1565 = vrcp.pop %v1564
        %v1566 = vmul.f32 1.0, %v1565
        %v1567 = vadd.f32 %v1557, %v737
        %1569 = vrot.lane.b32.xlu0 %v1567, 64
        %v1570 = vpop.permute.xlu0 %1569
        %v1572 = vmul.f32 %v1566, %v1570
        %1574 = vrot.lane.b32.xlu0 %v1572, 64
        %v1575 = vpop.permute.xlu0 %1574
        %v1577 = vadd.f32 %v1482, %v1575
        %v1578 = vtanh.pop %v1577
        %v1579 = vsub.f32 1.0, %v1566
        %1581 = vrot.lane.b32.xlu0 %v1578, 96
        %v1582 = vpop.permute.xlu0 %1581
        %v1584 = vmul.f32 %v1579, %v1582
        %v1585 = vmul.f32 %v1566, %v1310
        %v1586 = vadd.f32 %v1584, %v1585
        %s1587 = scalar_lea.vmem %s385, 32 [#allocation3]
        %v1588 = vld [vmem:[%s1587] sm:$0xff]
        %1589 = vmatprep.subr.mxu0 0.0
        %1590 = vmatpush1.msra.mxu0 %v448
        %1591 = vmatprep.subr.mxu0 0.0
        %1592 = vmatpush1.msra.mxu0 %v449
        %1593 = vmatprep.subr.mxu0 0.0
        %1594 = vmatpush1.msra.mxu0 %v450
        %1595 = vmatprep.subr.mxu0 0.0
        %1596 = vmatpush1.msra.mxu0 %v451
        %1597 = vmatprep.subr.mxu0 0.0
        %1598 = vmatpush1.msra.mxu0 0.0
        %1599 = vmatprep.subr.mxu0 0.0
        %1600 = vmatpush1.msra.mxu0 0.0
        %1601 = vmatprep.subr.mxu0 0.0
        %1602 = vmatpush1.msra.mxu0 0.0
        %1603 = vmatprep.subr.mxu0 0.0
        %1604 = vmatpush1.msra.mxu0 0.0
        %1605 = vmatprep.subr.mxu0 0.0
        %1606 = vmatpush1.msra.mxu0 0.0
        %1607 = vmatprep.subr.mxu0 0.0
        %1608 = vmatpush1.msra.mxu0 0.0
        %1609 = vmatprep.subr.mxu0 0.0
        %1610 = vmatpush1.msra.mxu0 0.0
        %1611 = vmatprep.subr.mxu0 0.0
        %1612 = vmatpush1.msra.mxu0 0.0
        %1613 = vmatprep.subr.mxu0 0.0
        %1614 = vmatpush1.msra.mxu0 0.0
        %1615 = vmatprep.subr.mxu0 0.0
        %1616 = vmatpush1.msra.mxu0 0.0
        %1617 = vmatprep.subr.mxu0 0.0
        %1618 = vmatpush1.msra.mxu0 0.0
        %1619 = vmatprep.subr.mxu0 0.0
        %1620 = vmatpush1.msra.mxu0 0.0
        %1621 = vmatprep.subr.mxu0 0.0
        %1622 = vmatpush1.msra.mxu0 0.0
        %1623 = vmatprep.subr.mxu0 0.0
        %1624 = vmatpush1.msra.mxu0 0.0
        %1625 = vmatprep.subr.mxu0 0.0
        %1626 = vmatpush1.msra.mxu0 0.0
        %1627 = vmatprep.subr.mxu0 0.0
        %1628 = vmatpush1.msra.mxu0 0.0
        %1629 = vmatprep.subr.mxu0 0.0
        %1630 = vmatpush1.msra.mxu0 0.0
        %1631 = vmatprep.subr.mxu0 0.0
        %1632 = vmatpush1.msra.mxu0 0.0
        %1633 = vmatprep.subr.mxu0 0.0
        %1634 = vmatpush1.msra.mxu0 0.0
        %1635 = vmatprep.subr.mxu0 0.0
        %1636 = vmatpush1.msra.mxu0 0.0
        %1637 = vmatprep.subr.mxu0 0.0
        %1638 = vmatpush1.msra.mxu0 0.0
        %1639 = vmatprep.subr.mxu0 0.0
        %1640 = vmatpush1.msra.mxu0 0.0
        %1641 = vmatprep.subr.mxu0 0.0
        %1642 = vmatpush1.msra.mxu0 0.0
        %1643 = vmatprep.subr.mxu0 0.0
        %1644 = vmatpush1.msra.mxu0 0.0
        %1645 = vmatprep.subr.mxu0 0.0
        %1646 = vmatpush1.msra.mxu0 0.0
        %1647 = vmatprep.subr.mxu0 0.0
        %1648 = vmatpush1.msra.mxu0 0.0
        %1649 = vmatprep.subr.mxu0 0.0
        %1650 = vmatpush1.msra.mxu0 0.0
        %1651 = vmatprep.subr.mxu0 0.0
        %1652 = vmatpush1.msra.mxu0 0.0
        %1653 = vmatprep.mubr.f32.mxu0 0.0
        %1654 = vmatmul.mubr.f32.gmra.mrb[0].mxu0 %v1413
        %v1655 = vpop.f32.mrb[0].mxu0
        %v1656 = vadd.f32 0.0, %v1655
        %v1657 = vpop.f32.mrb[0].mxu0
        %1658 = vdwg.mxu0
        %v1659 = vadd.f32 %v1588, %v1656
        %v1660 = vxor.u32 %v1659, 2147483648
        %v1661 = vmul.f32 %v1660, 1.442695
        %v1662 = vpow.pop %v1661
        %v1663 = vadd.f32 %v1662, 1.0
        %v1664 = vrcp.pop %v1663
        %v1665 = vmul.f32 1.0, %v1664
        %v1666 = vadd.f32 %v1656, %v562
        %1668 = vrot.lane.b32.xlu0 %v1666, 64
        %v1669 = vpop.permute.xlu0 %1668
        %v1671 = vmul.f32 %v1665, %v1669
        %1673 = vrot.lane.b32.xlu0 %v1671, 64
        %v1674 = vpop.permute.xlu0 %1673
        %v1676 = vadd.f32 %v1588, %v1674
        %v1677 = vtanh.pop %v1676
        %v1678 = vsub.f32 1.0, %v1665
        %1680 = vrot.lane.b32.xlu0 %v1677, 96
        %v1681 = vpop.permute.xlu0 %1680
        %v1683 = vmul.f32 %v1678, %v1681
        %v1684 = vmul.f32 %v1665, %v1409
        %v1685 = vadd.f32 %v1683, %v1684
        %1687 = vrot.lane.b32.xlu0 %v1685, 96
        %v1688 = vpop.permute.xlu0 %1687
        %v1689 = vsel %vm480, %v1688, 0
        %1691 = vmatprep.subr.mxu0 0.0
        %1692 = vmatpush1.msra.mxu0 %v456
        %1693 = vmatprep.subr.mxu0 0.0
        %1694 = vmatpush1.msra.mxu0 %v457
        %1695 = vmatprep.subr.mxu0 0.0
        %1696 = vmatpush1.msra.mxu0 %v458
        %1697 = vmatprep.subr.mxu0 0.0
        %1698 = vmatpush1.msra.mxu0 %v459
        %1699 = vmatprep.subr.mxu0 0.0
        %1700 = vmatpush1.msra.mxu0 0.0
        %1701 = vmatprep.subr.mxu0 0.0
        %1702 = vmatpush1.msra.mxu0 0.0
        %1703 = vmatprep.subr.mxu0 0.0
        %1704 = vmatpush1.msra.mxu0 0.0
        %1705 = vmatprep.subr.mxu0 0.0
        %1706 = vmatpush1.msra.mxu0 0.0
        %1707 = vmatprep.subr.mxu0 0.0
        %1708 = vmatpush1.msra.mxu0 0.0
        %1709 = vmatprep.subr.mxu0 0.0
        %1710 = vmatpush1.msra.mxu0 0.0
        %1711 = vmatprep.subr.mxu0 0.0
        %1712 = vmatpush1.msra.mxu0 0.0
        %1713 = vmatprep.subr.mxu0 0.0
        %1714 = vmatpush1.msra.mxu0 0.0
        %1715 = vmatprep.subr.mxu0 0.0
        %1716 = vmatpush1.msra.mxu0 0.0
        %1717 = vmatprep.subr.mxu0 0.0
        %1718 = vmatpush1.msra.mxu0 0.0
        %1719 = vmatprep.subr.mxu0 0.0
        %1720 = vmatpush1.msra.mxu0 0.0
        %1721 = vmatprep.subr.mxu0 0.0
        %1722 = vmatpush1.msra.mxu0 0.0
        %1723 = vmatprep.subr.mxu0 0.0
        %1724 = vmatpush1.msra.mxu0 0.0
        %1725 = vmatprep.subr.mxu0 0.0
        %1726 = vmatpush1.msra.mxu0 0.0
        %1727 = vmatprep.subr.mxu0 0.0
        %1728 = vmatpush1.msra.mxu0 0.0
        %1729 = vmatprep.subr.mxu0 0.0
        %1730 = vmatpush1.msra.mxu0 0.0
        %1731 = vmatprep.subr.mxu0 0.0
        %1732 = vmatpush1.msra.mxu0 0.0
        %1733 = vmatprep.subr.mxu0 0.0
        %1734 = vmatpush1.msra.mxu0 0.0
        %1735 = vmatprep.subr.mxu0 0.0
        %1736 = vmatpush1.msra.mxu0 0.0
        %1737 = vmatprep.subr.mxu0 0.0
        %1738 = vmatpush1.msra.mxu0 0.0
        %1739 = vmatprep.subr.mxu0 0.0
        %1740 = vmatpush1.msra.mxu0 0.0
        %1741 = vmatprep.subr.mxu0 0.0
        %1742 = vmatpush1.msra.mxu0 0.0
        %1743 = vmatprep.subr.mxu0 0.0
        %1744 = vmatpush1.msra.mxu0 0.0
        %1745 = vmatprep.subr.mxu0 0.0
        %1746 = vmatpush1.msra.mxu0 0.0
        %1747 = vmatprep.subr.mxu0 0.0
        %1748 = vmatpush1.msra.mxu0 0.0
        %1749 = vmatprep.subr.mxu0 0.0
        %1750 = vmatpush1.msra.mxu0 0.0
        %1751 = vmatprep.subr.mxu0 0.0
        %1752 = vmatpush1.msra.mxu0 0.0
        %1753 = vmatprep.subr.mxu0 0.0
        %1754 = vmatpush1.msra.mxu0 0.0
        %1755 = vmatprep.mubr.f32.mxu0 0.0
        %1756 = vmatmul.mubr.f32.gmra.mrb[0].mxu0 %v1689
        %v1757 = vpop.f32.mrb[0].mxu0
        %v1758 = vadd.f32 %v465, %v1757
        %v1759 = vpop.f32.mrb[0].mxu0
        %1760 = vdwg.mxu0
        %1762 = vrot.lane.b32.xlu0 %v1586, 96
        %v1763 = vpop.permute.xlu0 %1762
        %v1764 = vsel %vm480, %v1763, 0
        %1766 = vmatprep.subr.mxu0 0.0
        %1767 = vmatpush1.msra.mxu0 %v452
        %1768 = vmatprep.subr.mxu0 0.0
        %1769 = vmatpush1.msra.mxu0 %v453
        %1770 = vmatprep.subr.mxu0 0.0
        %1771 = vmatpush1.msra.mxu0 %v454
        %1772 = vmatprep.subr.mxu0 0.0
        %1773 = vmatpush1.msra.mxu0 %v455
        %1774 = vmatprep.subr.mxu0 0.0
        %1775 = vmatpush1.msra.mxu0 0.0
        %1776 = vmatprep.subr.mxu0 0.0
        %1777 = vmatpush1.msra.mxu0 0.0
        %1778 = vmatprep.subr.mxu0 0.0
        %1779 = vmatpush1.msra.mxu0 0.0
        %1780 = vmatprep.subr.mxu0 0.0
        %1781 = vmatpush1.msra.mxu0 0.0
        %1782 = vmatprep.subr.mxu0 0.0
        %1783 = vmatpush1.msra.mxu0 0.0
        %1784 = vmatprep.subr.mxu0 0.0
        %1785 = vmatpush1.msra.mxu0 0.0
        %1786 = vmatprep.subr.mxu0 0.0
        %1787 = vmatpush1.msra.mxu0 0.0
        %1788 = vmatprep.subr.mxu0 0.0
        %1789 = vmatpush1.msra.mxu0 0.0
        %1790 = vmatprep.subr.mxu0 0.0
        %1791 = vmatpush1.msra.mxu0 0.0
        %1792 = vmatprep.subr.mxu0 0.0
        %1793 = vmatpush1.msra.mxu0 0.0
        %1794 = vmatprep.subr.mxu0 0.0
        %1795 = vmatpush1.msra.mxu0 0.0
        %1796 = vmatprep.subr.mxu0 0.0
        %1797 = vmatpush1.msra.mxu0 0.0
        %1798 = vmatprep.subr.mxu0 0.0
        %1799 = vmatpush1.msra.mxu0 0.0
        %1800 = vmatprep.subr.mxu0 0.0
        %1801 = vmatpush1.msra.mxu0 0.0
        %1802 = vmatprep.subr.mxu0 0.0
        %1803 = vmatpush1.msra.mxu0 0.0
        %1804 = vmatprep.subr.mxu0 0.0
        %1805 = vmatpush1.msra.mxu0 0.0
        %1806 = vmatprep.subr.mxu0 0.0
        %1807 = vmatpush1.msra.mxu0 0.0
        %1808 = vmatprep.subr.mxu0 0.0
        %1809 = vmatpush1.msra.mxu0 0.0
        %1810 = vmatprep.subr.mxu0 0.0
        %1811 = vmatpush1.msra.mxu0 0.0
        %1812 = vmatprep.subr.mxu0 0.0
        %1813 = vmatpush1.msra.mxu0 0.0
        %1814 = vmatprep.subr.mxu0 0.0
        %1815 = vmatpush1.msra.mxu0 0.0
        %1816 = vmatprep.subr.mxu0 0.0
        %1817 = vmatpush1.msra.mxu0 0.0
        %1818 = vmatprep.subr.mxu0 0.0
        %1819 = vmatpush1.msra.mxu0 0.0
        %1820 = vmatprep.subr.mxu0 0.0
        %1821 = vmatpush1.msra.mxu0 0.0
        %1822 = vmatprep.subr.mxu0 0.0
        %1823 = vmatpush1.msra.mxu0 0.0
        %1824 = vmatprep.subr.mxu0 0.0
        %1825 = vmatpush1.msra.mxu0 0.0
        %1826 = vmatprep.subr.mxu0 0.0
        %1827 = vmatpush1.msra.mxu0 0.0
        %1828 = vmatprep.subr.mxu0 0.0
        %1829 = vmatpush1.msra.mxu0 0.0
        %1830 = vmatprep.mubr.f32.mxu0 0.0
        %1831 = vmatmul.mubr.f32.gmra.mrb[0].mxu0 %v1764
        %v1832 = vpop.f32.mrb[0].mxu0
        %v1833 = vadd.f32 0.0, %v1832
        %v1834 = vpop.f32.mrb[0].mxu0
        %1835 = vdwg.mxu0
        %v1836 = vadd.f32 %v1758, %v1833
        %v1837 = vxor.u32 %v1836, 2147483648
        %v1838 = vmul.f32 %v1837, 1.442695
        %v1839 = vpow.pop %v1838
        %v1840 = vadd.f32 %v1839, 1.0
        %v1841 = vrcp.pop %v1840
        %v1842 = vmul.f32 1.0, %v1841
        %v1843 = vadd.f32 %v1833, %v737
        %1845 = vrot.lane.b32.xlu0 %v1843, 64
        %v1846 = vpop.permute.xlu0 %1845
        %v1848 = vmul.f32 %v1842, %v1846
        %1850 = vrot.lane.b32.xlu0 %v1848, 64
        %v1851 = vpop.permute.xlu0 %1850
        %v1853 = vadd.f32 %v1758, %v1851
        %v1854 = vtanh.pop %v1853
        %v1855 = vsub.f32 1.0, %v1842
        %1857 = vrot.lane.b32.xlu0 %v1854, 96
        %v1858 = vpop.permute.xlu0 %1857
        %v1860 = vmul.f32 %v1855, %v1858
        %v1861 = vmul.f32 %v1842, %v1586
        %v1862 = vadd.f32 %v1860, %v1861
        %s1863 = scalar_lea.vmem %s385, 40 [#allocation3]
        %v1864 = vld [vmem:[%s1863] sm:$0xff]
        %1865 = vmatprep.subr.mxu0 0.0
        %1866 = vmatpush1.msra.mxu0 %v448
        %1867 = vmatprep.subr.mxu0 0.0
        %1868 = vmatpush1.msra.mxu0 %v449
        %1869 = vmatprep.subr.mxu0 0.0
        %1870 = vmatpush1.msra.mxu0 %v450
        %1871 = vmatprep.subr.mxu0 0.0
        %1872 = vmatpush1.msra.mxu0 %v451
        %1873 = vmatprep.subr.mxu0 0.0
        %1874 = vmatpush1.msra.mxu0 0.0
        %1875 = vmatprep.subr.mxu0 0.0
        %1876 = vmatpush1.msra.mxu0 0.0
        %1877 = vmatprep.subr.mxu0 0.0
        %1878 = vmatpush1.msra.mxu0 0.0
        %1879 = vmatprep.subr.mxu0 0.0
        %1880 = vmatpush1.msra.mxu0 0.0
        %1881 = vmatprep.subr.mxu0 0.0
        %1882 = vmatpush1.msra.mxu0 0.0
        %1883 = vmatprep.subr.mxu0 0.0
        %1884 = vmatpush1.msra.mxu0 0.0
        %1885 = vmatprep.subr.mxu0 0.0
        %1886 = vmatpush1.msra.mxu0 0.0
        %1887 = vmatprep.subr.mxu0 0.0
        %1888 = vmatpush1.msra.mxu0 0.0
        %1889 = vmatprep.subr.mxu0 0.0
        %1890 = vmatpush1.msra.mxu0 0.0
        %1891 = vmatprep.subr.mxu0 0.0
        %1892 = vmatpush1.msra.mxu0 0.0
        %1893 = vmatprep.subr.mxu0 0.0
        %1894 = vmatpush1.msra.mxu0 0.0
        %1895 = vmatprep.subr.mxu0 0.0
        %1896 = vmatpush1.msra.mxu0 0.0
        %1897 = vmatprep.subr.mxu0 0.0
        %1898 = vmatpush1.msra.mxu0 0.0
        %1899 = vmatprep.subr.mxu0 0.0
        %1900 = vmatpush1.msra.mxu0 0.0
        %1901 = vmatprep.subr.mxu0 0.0
        %1902 = vmatpush1.msra.mxu0 0.0
        %1903 = vmatprep.subr.mxu0 0.0
        %1904 = vmatpush1.msra.mxu0 0.0
        %1905 = vmatprep.subr.mxu0 0.0
        %1906 = vmatpush1.msra.mxu0 0.0
        %1907 = vmatprep.subr.mxu0 0.0
        %1908 = vmatpush1.msra.mxu0 0.0
        %1909 = vmatprep.subr.mxu0 0.0
        %1910 = vmatpush1.msra.mxu0 0.0
        %1911 = vmatprep.subr.mxu0 0.0
        %1912 = vmatpush1.msra.mxu0 0.0
        %1913 = vmatprep.subr.mxu0 0.0
        %1914 = vmatpush1.msra.mxu0 0.0
        %1915 = vmatprep.subr.mxu0 0.0
        %1916 = vmatpush1.msra.mxu0 0.0
        %1917 = vmatprep.subr.mxu0 0.0
        %1918 = vmatpush1.msra.mxu0 0.0
        %1919 = vmatprep.subr.mxu0 0.0
        %1920 = vmatpush1.msra.mxu0 0.0
        %1921 = vmatprep.subr.mxu0 0.0
        %1922 = vmatpush1.msra.mxu0 0.0
        %1923 = vmatprep.subr.mxu0 0.0
        %1924 = vmatpush1.msra.mxu0 0.0
        %1925 = vmatprep.subr.mxu0 0.0
        %1926 = vmatpush1.msra.mxu0 0.0
        %1927 = vmatprep.subr.mxu0 0.0
        %1928 = vmatpush1.msra.mxu0 0.0
        %1929 = vmatprep.mubr.f32.mxu0 0.0
        %1930 = vmatmul.mubr.f32.gmra.mrb[0].mxu0 %v1689
        %v1931 = vpop.f32.mrb[0].mxu0
        %v1932 = vadd.f32 0.0, %v1931
        %v1933 = vpop.f32.mrb[0].mxu0
        %1934 = vdwg.mxu0
        %v1935 = vadd.f32 %v1864, %v1932
        %v1936 = vxor.u32 %v1935, 2147483648
        %v1937 = vmul.f32 %v1936, 1.442695
        %v1938 = vpow.pop %v1937
        %v1939 = vadd.f32 %v1938, 1.0
        %v1940 = vrcp.pop %v1939
        %v1941 = vmul.f32 1.0, %v1940
        %v1942 = vadd.f32 %v1932, %v562
        %1944 = vrot.lane.b32.xlu0 %v1942, 64
        %v1945 = vpop.permute.xlu0 %1944
        %v1947 = vmul.f32 %v1941, %v1945
        %1949 = vrot.lane.b32.xlu0 %v1947, 64
        %v1950 = vpop.permute.xlu0 %1949
        %v1952 = vadd.f32 %v1864, %v1950
        %v1953 = vtanh.pop %v1952
        %v1954 = vsub.f32 1.0, %v1941
        %1956 = vrot.lane.b32.xlu0 %v1953, 96
        %v1957 = vpop.permute.xlu0 %1956
        %v1959 = vmul.f32 %v1954, %v1957
        %v1960 = vmul.f32 %v1941, %v1685
        %v1961 = vadd.f32 %v1959, %v1960
        %1963 = vrot.lane.b32.xlu0 %v1961, 96
        %v1964 = vpop.permute.xlu0 %1963
        %v1965 = vsel %vm480, %v1964, 0
        %1967 = vmatprep.subr.mxu0 0.0
        %1968 = vmatpush1.msra.mxu0 %v456
        %1969 = vmatprep.subr.mxu0 0.0
        %1970 = vmatpush1.msra.mxu0 %v457
        %1971 = vmatprep.subr.mxu0 0.0
        %1972 = vmatpush1.msra.mxu0 %v458
        %1973 = vmatprep.subr.mxu0 0.0
        %1974 = vmatpush1.msra.mxu0 %v459
        %1975 = vmatprep.subr.mxu0 0.0
        %1976 = vmatpush1.msra.mxu0 0.0
        %1977 = vmatprep.subr.mxu0 0.0
        %1978 = vmatpush1.msra.mxu0 0.0
        %1979 = vmatprep.subr.mxu0 0.0
        %1980 = vmatpush1.msra.mxu0 0.0
        %1981 = vmatprep.subr.mxu0 0.0
        %1982 = vmatpush1.msra.mxu0 0.0
        %1983 = vmatprep.subr.mxu0 0.0
        %1984 = vmatpush1.msra.mxu0 0.0
        %1985 = vmatprep.subr.mxu0 0.0
        %1986 = vmatpush1.msra.mxu0 0.0
        %1987 = vmatprep.subr.mxu0 0.0
        %1988 = vmatpush1.msra.mxu0 0.0
        %1989 = vmatprep.subr.mxu0 0.0
        %1990 = vmatpush1.msra.mxu0 0.0
        %1991 = vmatprep.subr.mxu0 0.0
        %1992 = vmatpush1.msra.mxu0 0.0
        %1993 = vmatprep.subr.mxu0 0.0
        %1994 = vmatpush1.msra.mxu0 0.0
        %1995 = vmatprep.subr.mxu0 0.0
        %1996 = vmatpush1.msra.mxu0 0.0
        %1997 = vmatprep.subr.mxu0 0.0
        %1998 = vmatpush1.msra.mxu0 0.0
        %1999 = vmatprep.subr.mxu0 0.0
        %2000 = vmatpush1.msra.mxu0 0.0
        %2001 = vmatprep.subr.mxu0 0.0
        %2002 = vmatpush1.msra.mxu0 0.0
        %2003 = vmatprep.subr.mxu0 0.0
        %2004 = vmatpush1.msra.mxu0 0.0
        %2005 = vmatprep.subr.mxu0 0.0
        %2006 = vmatpush1.msra.mxu0 0.0
        %2007 = vmatprep.subr.mxu0 0.0
        %2008 = vmatpush1.msra.mxu0 0.0
        %2009 = vmatprep.subr.mxu0 0.0
        %2010 = vmatpush1.msra.mxu0 0.0
        %2011 = vmatprep.subr.mxu0 0.0
        %2012 = vmatpush1.msra.mxu0 0.0
        %2013 = vmatprep.subr.mxu0 0.0
        %2014 = vmatpush1.msra.mxu0 0.0
        %2015 = vmatprep.subr.mxu0 0.0
        %2016 = vmatpush1.msra.mxu0 0.0
        %2017 = vmatprep.subr.mxu0 0.0
        %2018 = vmatpush1.msra.mxu0 0.0
        %2019 = vmatprep.subr.mxu0 0.0
        %2020 = vmatpush1.msra.mxu0 0.0
        %2021 = vmatprep.subr.mxu0 0.0
        %2022 = vmatpush1.msra.mxu0 0.0
        %2023 = vmatprep.subr.mxu0 0.0
        %2024 = vmatpush1.msra.mxu0 0.0
        %2025 = vmatprep.subr.mxu0 0.0
        %2026 = vmatpush1.msra.mxu0 0.0
        %2027 = vmatprep.subr.mxu0 0.0
        %2028 = vmatpush1.msra.mxu0 0.0
        %2029 = vmatprep.subr.mxu0 0.0
        %2030 = vmatpush1.msra.mxu0 0.0
        %2031 = vmatprep.mubr.f32.mxu0 0.0
        %2032 = vmatmul.mubr.f32.gmra.mrb[0].mxu0 %v1965
        %v2033 = vpop.f32.mrb[0].mxu0
        %v2034 = vadd.f32 %v465, %v2033
        %v2035 = vpop.f32.mrb[0].mxu0
        %2036 = vdwg.mxu0
        %2038 = vrot.lane.b32.xlu0 %v1862, 96
        %v2039 = vpop.permute.xlu0 %2038
        %v2040 = vsel %vm480, %v2039, 0
        %2042 = vmatprep.subr.mxu0 0.0
        %2043 = vmatpush1.msra.mxu0 %v452
        %2044 = vmatprep.subr.mxu0 0.0
        %2045 = vmatpush1.msra.mxu0 %v453
        %2046 = vmatprep.subr.mxu0 0.0
        %2047 = vmatpush1.msra.mxu0 %v454
        %2048 = vmatprep.subr.mxu0 0.0
        %2049 = vmatpush1.msra.mxu0 %v455
        %2050 = vmatprep.subr.mxu0 0.0
        %2051 = vmatpush1.msra.mxu0 0.0
        %2052 = vmatprep.subr.mxu0 0.0
        %2053 = vmatpush1.msra.mxu0 0.0
        %2054 = vmatprep.subr.mxu0 0.0
        %2055 = vmatpush1.msra.mxu0 0.0
        %2056 = vmatprep.subr.mxu0 0.0
        %2057 = vmatpush1.msra.mxu0 0.0
        %2058 = vmatprep.subr.mxu0 0.0
        %2059 = vmatpush1.msra.mxu0 0.0
        %2060 = vmatprep.subr.mxu0 0.0
        %2061 = vmatpush1.msra.mxu0 0.0
        %2062 = vmatprep.subr.mxu0 0.0
        %2063 = vmatpush1.msra.mxu0 0.0
        %2064 = vmatprep.subr.mxu0 0.0
        %2065 = vmatpush1.msra.mxu0 0.0
        %2066 = vmatprep.subr.mxu0 0.0
        %2067 = vmatpush1.msra.mxu0 0.0
        %2068 = vmatprep.subr.mxu0 0.0
        %2069 = vmatpush1.msra.mxu0 0.0
        %2070 = vmatprep.subr.mxu0 0.0
        %2071 = vmatpush1.msra.mxu0 0.0
        %2072 = vmatprep.subr.mxu0 0.0
        %2073 = vmatpush1.msra.mxu0 0.0
        %2074 = vmatprep.subr.mxu0 0.0
        %2075 = vmatpush1.msra.mxu0 0.0
        %2076 = vmatprep.subr.mxu0 0.0
        %2077 = vmatpush1.msra.mxu0 0.0
        %2078 = vmatprep.subr.mxu0 0.0
        %2079 = vmatpush1.msra.mxu0 0.0
        %2080 = vmatprep.subr.mxu0 0.0
        %2081 = vmatpush1.msra.mxu0 0.0
        %2082 = vmatprep.subr.mxu0 0.0
        %2083 = vmatpush1.msra.mxu0 0.0
        %2084 = vmatprep.subr.mxu0 0.0
        %2085 = vmatpush1.msra.mxu0 0.0
        %2086 = vmatprep.subr.mxu0 0.0
        %2087 = vmatpush1.msra.mxu0 0.0
        %2088 = vmatprep.subr.mxu0 0.0
        %2089 = vmatpush1.msra.mxu0 0.0
        %2090 = vmatprep.subr.mxu0 0.0
        %2091 = vmatpush1.msra.mxu0 0.0
        %2092 = vmatprep.subr.mxu0 0.0
        %2093 = vmatpush1.msra.mxu0 0.0
        %2094 = vmatprep.subr.mxu0 0.0
        %2095 = vmatpush1.msra.mxu0 0.0
        %2096 = vmatprep.subr.mxu0 0.0
        %2097 = vmatpush1.msra.mxu0 0.0
        %2098 = vmatprep.subr.mxu0 0.0
        %2099 = vmatpush1.msra.mxu0 0.0
        %2100 = vmatprep.subr.mxu0 0.0
        %2101 = vmatpush1.msra.mxu0 0.0
        %2102 = vmatprep.subr.mxu0 0.0
        %2103 = vmatpush1.msra.mxu0 0.0
        %2104 = vmatprep.subr.mxu0 0.0
        %2105 = vmatpush1.msra.mxu0 0.0
        %2106 = vmatprep.mubr.f32.mxu0 0.0
        %2107 = vmatmul.mubr.f32.gmra.mrb[0].mxu0 %v2040
        %v2108 = vpop.f32.mrb[0].mxu0
        %v2109 = vadd.f32 0.0, %v2108
        %v2110 = vpop.f32.mrb[0].mxu0
        %2111 = vdwg.mxu0
        %v2112 = vadd.f32 %v2034, %v2109
        %v2113 = vxor.u32 %v2112, 2147483648
        %v2114 = vmul.f32 %v2113, 1.442695
        %v2115 = vpow.pop %v2114
        %v2116 = vadd.f32 %v2115, 1.0
        %v2117 = vrcp.pop %v2116
        %v2118 = vmul.f32 1.0, %v2117
        %v2119 = vadd.f32 %v2109, %v737
        %2121 = vrot.lane.b32.xlu0 %v2119, 64
        %v2122 = vpop.permute.xlu0 %2121
        %v2124 = vmul.f32 %v2118, %v2122
        %2126 = vrot.lane.b32.xlu0 %v2124, 64
        %v2127 = vpop.permute.xlu0 %2126
        %v2129 = vadd.f32 %v2034, %v2127
        %v2130 = vtanh.pop %v2129
        %v2131 = vsub.f32 1.0, %v2118
        %2133 = vrot.lane.b32.xlu0 %v2130, 96
        %v2134 = vpop.permute.xlu0 %2133
        %v2136 = vmul.f32 %v2131, %v2134
        %v2137 = vmul.f32 %v2118, %v1862
        %v2138 = vadd.f32 %v2136, %v2137
        %s2139 = scalar_lea.vmem %s385, 48 [#allocation3]
        %v2140 = vld [vmem:[%s2139] sm:$0xff]
        %2141 = vmatprep.subr.mxu0 0.0
        %2142 = vmatpush1.msra.mxu0 %v448
        %2143 = vmatprep.subr.mxu0 0.0
        %2144 = vmatpush1.msra.mxu0 %v449
        %2145 = vmatprep.subr.mxu0 0.0
        %2146 = vmatpush1.msra.mxu0 %v450
        %2147 = vmatprep.subr.mxu0 0.0
        %2148 = vmatpush1.msra.mxu0 %v451
        %2149 = vmatprep.subr.mxu0 0.0
        %2150 = vmatpush1.msra.mxu0 0.0
        %2151 = vmatprep.subr.mxu0 0.0
        %2152 = vmatpush1.msra.mxu0 0.0
        %2153 = vmatprep.subr.mxu0 0.0
        %2154 = vmatpush1.msra.mxu0 0.0
        %2155 = vmatprep.subr.mxu0 0.0
        %2156 = vmatpush1.msra.mxu0 0.0
        %2157 = vmatprep.subr.mxu0 0.0
        %2158 = vmatpush1.msra.mxu0 0.0
        %2159 = vmatprep.subr.mxu0 0.0
        %2160 = vmatpush1.msra.mxu0 0.0
        %2161 = vmatprep.subr.mxu0 0.0
        %2162 = vmatpush1.msra.mxu0 0.0
        %2163 = vmatprep.subr.mxu0 0.0
        %2164 = vmatpush1.msra.mxu0 0.0
        %2165 = vmatprep.subr.mxu0 0.0
        %2166 = vmatpush1.msra.mxu0 0.0
        %2167 = vmatprep.subr.mxu0 0.0
        %2168 = vmatpush1.msra.mxu0 0.0
        %2169 = vmatprep.subr.mxu0 0.0
        %2170 = vmatpush1.msra.mxu0 0.0
        %2171 = vmatprep.subr.mxu0 0.0
        %2172 = vmatpush1.msra.mxu0 0.0
        %2173 = vmatprep.subr.mxu0 0.0
        %2174 = vmatpush1.msra.mxu0 0.0
        %2175 = vmatprep.subr.mxu0 0.0
        %2176 = vmatpush1.msra.mxu0 0.0
        %2177 = vmatprep.subr.mxu0 0.0
        %2178 = vmatpush1.msra.mxu0 0.0
        %2179 = vmatprep.subr.mxu0 0.0
        %2180 = vmatpush1.msra.mxu0 0.0
        %2181 = vmatprep.subr.mxu0 0.0
        %2182 = vmatpush1.msra.mxu0 0.0
        %2183 = vmatprep.subr.mxu0 0.0
        %2184 = vmatpush1.msra.mxu0 0.0
        %2185 = vmatprep.subr.mxu0 0.0
        %2186 = vmatpush1.msra.mxu0 0.0
        %2187 = vmatprep.subr.mxu0 0.0
        %2188 = vmatpush1.msra.mxu0 0.0
        %2189 = vmatprep.subr.mxu0 0.0
        %2190 = vmatpush1.msra.mxu0 0.0
        %2191 = vmatprep.subr.mxu0 0.0
        %2192 = vmatpush1.msra.mxu0 0.0
        %2193 = vmatprep.subr.mxu0 0.0
        %2194 = vmatpush1.msra.mxu0 0.0
        %2195 = vmatprep.subr.mxu0 0.0
        %2196 = vmatpush1.msra.mxu0 0.0
        %2197 = vmatprep.subr.mxu0 0.0
        %2198 = vmatpush1.msra.mxu0 0.0
        %2199 = vmatprep.subr.mxu0 0.0
        %2200 = vmatpush1.msra.mxu0 0.0
        %2201 = vmatprep.subr.mxu0 0.0
        %2202 = vmatpush1.msra.mxu0 0.0
        %2203 = vmatprep.subr.mxu0 0.0
        %2204 = vmatpush1.msra.mxu0 0.0
        %2205 = vmatprep.mubr.f32.mxu0 0.0
        %2206 = vmatmul.mubr.f32.gmra.mrb[0].mxu0 %v1965
        %v2207 = vpop.f32.mrb[0].mxu0
        %v2208 = vadd.f32 0.0, %v2207
        %v2209 = vpop.f32.mrb[0].mxu0
        %2210 = vdwg.mxu0
        %v2211 = vadd.f32 %v2140, %v2208
        %v2212 = vxor.u32 %v2211, 2147483648
        %v2213 = vmul.f32 %v2212, 1.442695
        %v2214 = vpow.pop %v2213
        %v2215 = vadd.f32 %v2214, 1.0
        %v2216 = vrcp.pop %v2215
        %v2217 = vmul.f32 1.0, %v2216
        %v2218 = vadd.f32 %v2208, %v562
        %2220 = vrot.lane.b32.xlu0 %v2218, 64
        %v2221 = vpop.permute.xlu0 %2220
        %v2223 = vmul.f32 %v2217, %v2221
        %2225 = vrot.lane.b32.xlu0 %v2223, 64
        %v2226 = vpop.permute.xlu0 %2225
        %v2228 = vadd.f32 %v2140, %v2226
        %v2229 = vtanh.pop %v2228
        %v2230 = vsub.f32 1.0, %v2217
        %2232 = vrot.lane.b32.xlu0 %v2229, 96
        %v2233 = vpop.permute.xlu0 %2232
        %v2235 = vmul.f32 %v2230, %v2233
        %v2236 = vmul.f32 %v2217, %v1961
        %v2237 = vadd.f32 %v2235, %v2236
        %2239 = vrot.lane.b32.xlu0 %v2237, 96
        %v2240 = vpop.permute.xlu0 %2239
        %v2241 = vsel %vm480, %v2240, 0
        %2243 = vmatprep.subr.mxu0 0.0
        %2244 = vmatpush1.msra.mxu0 %v456
        %2245 = vmatprep.subr.mxu0 0.0
        %2246 = vmatpush1.msra.mxu0 %v457
        %2247 = vmatprep.subr.mxu0 0.0
        %2248 = vmatpush1.msra.mxu0 %v458
        %2249 = vmatprep.subr.mxu0 0.0
        %2250 = vmatpush1.msra.mxu0 %v459
        %2251 = vmatprep.subr.mxu0 0.0
        %2252 = vmatpush1.msra.mxu0 0.0
        %2253 = vmatprep.subr.mxu0 0.0
        %2254 = vmatpush1.msra.mxu0 0.0
        %2255 = vmatprep.subr.mxu0 0.0
        %2256 = vmatpush1.msra.mxu0 0.0
        %2257 = vmatprep.subr.mxu0 0.0
        %2258 = vmatpush1.msra.mxu0 0.0
        %2259 = vmatprep.subr.mxu0 0.0
        %2260 = vmatpush1.msra.mxu0 0.0
        %2261 = vmatprep.subr.mxu0 0.0
        %2262 = vmatpush1.msra.mxu0 0.0
        %2263 = vmatprep.subr.mxu0 0.0
        %2264 = vmatpush1.msra.mxu0 0.0
        %2265 = vmatprep.subr.mxu0 0.0
        %2266 = vmatpush1.msra.mxu0 0.0
        %2267 = vmatprep.subr.mxu0 0.0
        %2268 = vmatpush1.msra.mxu0 0.0
        %2269 = vmatprep.subr.mxu0 0.0
        %2270 = vmatpush1.msra.mxu0 0.0
        %2271 = vmatprep.subr.mxu0 0.0
        %2272 = vmatpush1.msra.mxu0 0.0
        %2273 = vmatprep.subr.mxu0 0.0
        %2274 = vmatpush1.msra.mxu0 0.0
        %2275 = vmatprep.subr.mxu0 0.0
        %2276 = vmatpush1.msra.mxu0 0.0
        %2277 = vmatprep.subr.mxu0 0.0
        %2278 = vmatpush1.msra.mxu0 0.0
        %2279 = vmatprep.subr.mxu0 0.0
        %2280 = vmatpush1.msra.mxu0 0.0
        %2281 = vmatprep.subr.mxu0 0.0
        %2282 = vmatpush1.msra.mxu0 0.0
        %2283 = vmatprep.subr.mxu0 0.0
        %2284 = vmatpush1.msra.mxu0 0.0
        %2285 = vmatprep.subr.mxu0 0.0
        %2286 = vmatpush1.msra.mxu0 0.0
        %2287 = vmatprep.subr.mxu0 0.0
        %2288 = vmatpush1.msra.mxu0 0.0
        %2289 = vmatprep.subr.mxu0 0.0
        %2290 = vmatpush1.msra.mxu0 0.0
        %2291 = vmatprep.subr.mxu0 0.0
        %2292 = vmatpush1.msra.mxu0 0.0
        %2293 = vmatprep.subr.mxu0 0.0
        %2294 = vmatpush1.msra.mxu0 0.0
        %2295 = vmatprep.subr.mxu0 0.0
        %2296 = vmatpush1.msra.mxu0 0.0
        %2297 = vmatprep.subr.mxu0 0.0
        %2298 = vmatpush1.msra.mxu0 0.0
        %2299 = vmatprep.subr.mxu0 0.0
        %2300 = vmatpush1.msra.mxu0 0.0
        %2301 = vmatprep.subr.mxu0 0.0
        %2302 = vmatpush1.msra.mxu0 0.0
        %2303 = vmatprep.subr.mxu0 0.0
        %2304 = vmatpush1.msra.mxu0 0.0
        %2305 = vmatprep.subr.mxu0 0.0
        %2306 = vmatpush1.msra.mxu0 0.0
        %2307 = vmatprep.mubr.f32.mxu0 0.0
        %2308 = vmatmul.mubr.f32.gmra.mrb[0].mxu0 %v2241
        %v2309 = vpop.f32.mrb[0].mxu0
        %v2310 = vadd.f32 %v465, %v2309
        %v2311 = vpop.f32.mrb[0].mxu0
        %2312 = vdwg.mxu0
        %2314 = vrot.lane.b32.xlu0 %v2138, 96
        %v2315 = vpop.permute.xlu0 %2314
        %v2316 = vsel %vm480, %v2315, 0
        %2318 = vmatprep.subr.mxu0 0.0
        %2319 = vmatpush1.msra.mxu0 %v452
        %2320 = vmatprep.subr.mxu0 0.0
        %2321 = vmatpush1.msra.mxu0 %v453
        %2322 = vmatprep.subr.mxu0 0.0
        %2323 = vmatpush1.msra.mxu0 %v454
        %2324 = vmatprep.subr.mxu0 0.0
        %2325 = vmatpush1.msra.mxu0 %v455
        %2326 = vmatprep.subr.mxu0 0.0
        %2327 = vmatpush1.msra.mxu0 0.0
        %2328 = vmatprep.subr.mxu0 0.0
        %2329 = vmatpush1.msra.mxu0 0.0
        %2330 = vmatprep.subr.mxu0 0.0
        %2331 = vmatpush1.msra.mxu0 0.0
        %2332 = vmatprep.subr.mxu0 0.0
        %2333 = vmatpush1.msra.mxu0 0.0
        %2334 = vmatprep.subr.mxu0 0.0
        %2335 = vmatpush1.msra.mxu0 0.0
        %2336 = vmatprep.subr.mxu0 0.0
        %2337 = vmatpush1.msra.mxu0 0.0
        %2338 = vmatprep.subr.mxu0 0.0
        %2339 = vmatpush1.msra.mxu0 0.0
        %2340 = vmatprep.subr.mxu0 0.0
        %2341 = vmatpush1.msra.mxu0 0.0
        %2342 = vmatprep.subr.mxu0 0.0
        %2343 = vmatpush1.msra.mxu0 0.0
        %2344 = vmatprep.subr.mxu0 0.0
        %2345 = vmatpush1.msra.mxu0 0.0
        %2346 = vmatprep.subr.mxu0 0.0
        %2347 = vmatpush1.msra.mxu0 0.0
        %2348 = vmatprep.subr.mxu0 0.0
        %2349 = vmatpush1.msra.mxu0 0.0
        %2350 = vmatprep.subr.mxu0 0.0
        %2351 = vmatpush1.msra.mxu0 0.0
        %2352 = vmatprep.subr.mxu0 0.0
        %2353 = vmatpush1.msra.mxu0 0.0
        %2354 = vmatprep.subr.mxu0 0.0
        %2355 = vmatpush1.msra.mxu0 0.0
        %2356 = vmatprep.subr.mxu0 0.0
        %2357 = vmatpush1.msra.mxu0 0.0
        %2358 = vmatprep.subr.mxu0 0.0
        %2359 = vmatpush1.msra.mxu0 0.0
        %2360 = vmatprep.subr.mxu0 0.0
        %2361 = vmatpush1.msra.mxu0 0.0
        %2362 = vmatprep.subr.mxu0 0.0
        %2363 = vmatpush1.msra.mxu0 0.0
        %2364 = vmatprep.subr.mxu0 0.0
        %2365 = vmatpush1.msra.mxu0 0.0
        %2366 = vmatprep.subr.mxu0 0.0
        %2367 = vmatpush1.msra.mxu0 0.0
        %2368 = vmatprep.subr.mxu0 0.0
        %2369 = vmatpush1.msra.mxu0 0.0
        %2370 = vmatprep.subr.mxu0 0.0
        %2371 = vmatpush1.msra.mxu0 0.0
        %2372 = vmatprep.subr.mxu0 0.0
        %2373 = vmatpush1.msra.mxu0 0.0
        %2374 = vmatprep.subr.mxu0 0.0
        %2375 = vmatpush1.msra.mxu0 0.0
        %2376 = vmatprep.subr.mxu0 0.0
        %2377 = vmatpush1.msra.mxu0 0.0
        %2378 = vmatprep.subr.mxu0 0.0
        %2379 = vmatpush1.msra.mxu0 0.0
        %2380 = vmatprep.subr.mxu0 0.0
        %2381 = vmatpush1.msra.mxu0 0.0
        %2382 = vmatprep.mubr.f32.mxu0 0.0
        %2383 = vmatmul.mubr.f32.gmra.mrb[0].mxu0 %v2316
        %v2384 = vpop.f32.mrb[0].mxu0
        %v2385 = vadd.f32 0.0, %v2384
        %v2386 = vpop.f32.mrb[0].mxu0
        %2387 = vdwg.mxu0
        %v2388 = vadd.f32 %v2310, %v2385
        %v2389 = vxor.u32 %v2388, 2147483648
        %v2390 = vmul.f32 %v2389, 1.442695
        %v2391 = vpow.pop %v2390
        %v2392 = vadd.f32 %v2391, 1.0
        %v2393 = vrcp.pop %v2392
        %v2394 = vmul.f32 1.0, %v2393
        %v2395 = vadd.f32 %v2385, %v737
        %2397 = vrot.lane.b32.xlu0 %v2395, 64
        %v2398 = vpop.permute.xlu0 %2397
        %v2400 = vmul.f32 %v2394, %v2398
        %2402 = vrot.lane.b32.xlu0 %v2400, 64
        %v2403 = vpop.permute.xlu0 %2402
        %v2405 = vadd.f32 %v2310, %v2403
        %v2406 = vtanh.pop %v2405
        %v2407 = vsub.f32 1.0, %v2394
        %2409 = vrot.lane.b32.xlu0 %v2406, 96
        %v2410 = vpop.permute.xlu0 %2409
        %v2412 = vmul.f32 %v2407, %v2410
        %v2413 = vmul.f32 %v2394, %v2138
        %v2414 = vadd.f32 %v2412, %v2413
        %s2415 = scalar_lea.vmem %s385, 56 [#allocation3]
        %v2416 = vld [vmem:[%s2415] sm:$0xff]
        %2417 = vmatprep.subr.mxu0 0.0
        %2418 = vmatpush1.msra.mxu0 %v448
        %2419 = vmatprep.subr.mxu0 0.0
        %2420 = vmatpush1.msra.mxu0 %v449
        %2421 = vmatprep.subr.mxu0 0.0
        %2422 = vmatpush1.msra.mxu0 %v450
        %2423 = vmatprep.subr.mxu0 0.0
        %2424 = vmatpush1.msra.mxu0 %v451
        %2425 = vmatprep.subr.mxu0 0.0
        %2426 = vmatpush1.msra.mxu0 0.0
        %2427 = vmatprep.subr.mxu0 0.0
        %2428 = vmatpush1.msra.mxu0 0.0
        %2429 = vmatprep.subr.mxu0 0.0
        %2430 = vmatpush1.msra.mxu0 0.0
        %2431 = vmatprep.subr.mxu0 0.0
        %2432 = vmatpush1.msra.mxu0 0.0
        %2433 = vmatprep.subr.mxu0 0.0
        %2434 = vmatpush1.msra.mxu0 0.0
        %2435 = vmatprep.subr.mxu0 0.0
        %2436 = vmatpush1.msra.mxu0 0.0
        %2437 = vmatprep.subr.mxu0 0.0
        %2438 = vmatpush1.msra.mxu0 0.0
        %2439 = vmatprep.subr.mxu0 0.0
        %2440 = vmatpush1.msra.mxu0 0.0
        %2441 = vmatprep.subr.mxu0 0.0
        %2442 = vmatpush1.msra.mxu0 0.0
        %2443 = vmatprep.subr.mxu0 0.0
        %2444 = vmatpush1.msra.mxu0 0.0
        %2445 = vmatprep.subr.mxu0 0.0
        %2446 = vmatpush1.msra.mxu0 0.0
        %2447 = vmatprep.subr.mxu0 0.0
        %2448 = vmatpush1.msra.mxu0 0.0
        %2449 = vmatprep.subr.mxu0 0.0
        %2450 = vmatpush1.msra.mxu0 0.0
        %2451 = vmatprep.subr.mxu0 0.0
        %2452 = vmatpush1.msra.mxu0 0.0
        %2453 = vmatprep.subr.mxu0 0.0
        %2454 = vmatpush1.msra.mxu0 0.0
        %2455 = vmatprep.subr.mxu0 0.0
        %2456 = vmatpush1.msra.mxu0 0.0
        %2457 = vmatprep.subr.mxu0 0.0
        %2458 = vmatpush1.msra.mxu0 0.0
        %2459 = vmatprep.subr.mxu0 0.0
        %2460 = vmatpush1.msra.mxu0 0.0
        %2461 = vmatprep.subr.mxu0 0.0
        %2462 = vmatpush1.msra.mxu0 0.0
        %2463 = vmatprep.subr.mxu0 0.0
        %2464 = vmatpush1.msra.mxu0 0.0
        %2465 = vmatprep.subr.mxu0 0.0
        %2466 = vmatpush1.msra.mxu0 0.0
        %2467 = vmatprep.subr.mxu0 0.0
        %2468 = vmatpush1.msra.mxu0 0.0
        %2469 = vmatprep.subr.mxu0 0.0
        %2470 = vmatpush1.msra.mxu0 0.0
        %2471 = vmatprep.subr.mxu0 0.0
        %2472 = vmatpush1.msra.mxu0 0.0
        %2473 = vmatprep.subr.mxu0 0.0
        %2474 = vmatpush1.msra.mxu0 0.0
        %2475 = vmatprep.subr.mxu0 0.0
        %2476 = vmatpush1.msra.mxu0 0.0
        %2477 = vmatprep.subr.mxu0 0.0
        %2478 = vmatpush1.msra.mxu0 0.0
        %2479 = vmatprep.subr.mxu0 0.0
        %2480 = vmatpush1.msra.mxu0 0.0
        %2481 = vmatprep.mubr.f32.mxu0 0.0
        %2482 = vmatmul.mubr.f32.gmra.mrb[0].mxu0 %v2241
        %v2483 = vpop.f32.mrb[0].mxu0
        %v2484 = vadd.f32 0.0, %v2483
        %v2485 = vpop.f32.mrb[0].mxu0
        %2486 = vdwg.mxu0
        %v2487 = vadd.f32 %v2416, %v2484
        %v2488 = vxor.u32 %v2487, 2147483648
        %v2489 = vmul.f32 %v2488, 1.442695
        %v2490 = vpow.pop %v2489
        %v2491 = vadd.f32 %v2490, 1.0
        %v2492 = vrcp.pop %v2491
        %v2493 = vmul.f32 1.0, %v2492
        %v2494 = vadd.f32 %v2484, %v562
        %2496 = vrot.lane.b32.xlu0 %v2494, 64
        %v2497 = vpop.permute.xlu0 %2496
        %v2499 = vmul.f32 %v2493, %v2497
        %2501 = vrot.lane.b32.xlu0 %v2499, 64
        %v2502 = vpop.permute.xlu0 %2501
        %v2504 = vadd.f32 %v2416, %v2502
        %v2505 = vtanh.pop %v2504
        %v2506 = vsub.f32 1.0, %v2493
        %2508 = vrot.lane.b32.xlu0 %v2505, 96
        %v2509 = vpop.permute.xlu0 %2508
        %v2511 = vmul.f32 %v2506, %v2509
        %v2512 = vmul.f32 %v2493, %v2237
        %v2513 = vadd.f32 %v2511, %v2512
        %2515 = vrot.lane.b32.xlu0 %v2513, 96
        %v2516 = vpop.permute.xlu0 %2515
        %v2517 = vsel %vm480, %v2516, 0
        %2519 = vmatprep.subr.mxu0 0.0
        %2520 = vmatpush1.msra.mxu0 %v456
        %2521 = vmatprep.subr.mxu0 0.0
        %2522 = vmatpush1.msra.mxu0 %v457
        %2523 = vmatprep.subr.mxu0 0.0
        %2524 = vmatpush1.msra.mxu0 %v458
        %2525 = vmatprep.subr.mxu0 0.0
        %2526 = vmatpush1.msra.mxu0 %v459
        %2527 = vmatprep.subr.mxu0 0.0
        %2528 = vmatpush1.msra.mxu0 0.0
        %2529 = vmatprep.subr.mxu0 0.0
        %2530 = vmatpush1.msra.mxu0 0.0
        %2531 = vmatprep.subr.mxu0 0.0
        %2532 = vmatpush1.msra.mxu0 0.0
        %2533 = vmatprep.subr.mxu0 0.0
        %2534 = vmatpush1.msra.mxu0 0.0
        %2535 = vmatprep.subr.mxu0 0.0
        %2536 = vmatpush1.msra.mxu0 0.0
        %2537 = vmatprep.subr.mxu0 0.0
        %2538 = vmatpush1.msra.mxu0 0.0
        %2539 = vmatprep.subr.mxu0 0.0
        %2540 = vmatpush1.msra.mxu0 0.0
        %2541 = vmatprep.subr.mxu0 0.0
        %2542 = vmatpush1.msra.mxu0 0.0
        %2543 = vmatprep.subr.mxu0 0.0
        %2544 = vmatpush1.msra.mxu0 0.0
        %2545 = vmatprep.subr.mxu0 0.0
        %2546 = vmatpush1.msra.mxu0 0.0
        %2547 = vmatprep.subr.mxu0 0.0
        %2548 = vmatpush1.msra.mxu0 0.0
        %2549 = vmatprep.subr.mxu0 0.0
        %2550 = vmatpush1.msra.mxu0 0.0
        %2551 = vmatprep.subr.mxu0 0.0
        %2552 = vmatpush1.msra.mxu0 0.0
        %2553 = vmatprep.subr.mxu0 0.0
        %2554 = vmatpush1.msra.mxu0 0.0
        %2555 = vmatprep.subr.mxu0 0.0
        %2556 = vmatpush1.msra.mxu0 0.0
        %2557 = vmatprep.subr.mxu0 0.0
        %2558 = vmatpush1.msra.mxu0 0.0
        %2559 = vmatprep.subr.mxu0 0.0
        %2560 = vmatpush1.msra.mxu0 0.0
        %2561 = vmatprep.subr.mxu0 0.0
        %2562 = vmatpush1.msra.mxu0 0.0
        %2563 = vmatprep.subr.mxu0 0.0
        %2564 = vmatpush1.msra.mxu0 0.0
        %2565 = vmatprep.subr.mxu0 0.0
        %2566 = vmatpush1.msra.mxu0 0.0
        %2567 = vmatprep.subr.mxu0 0.0
        %2568 = vmatpush1.msra.mxu0 0.0
        %2569 = vmatprep.subr.mxu0 0.0
        %2570 = vmatpush1.msra.mxu0 0.0
        %2571 = vmatprep.subr.mxu0 0.0
        %2572 = vmatpush1.msra.mxu0 0.0
        %2573 = vmatprep.subr.mxu0 0.0
        %2574 = vmatpush1.msra.mxu0 0.0
        %2575 = vmatprep.subr.mxu0 0.0
        %2576 = vmatpush1.msra.mxu0 0.0
        %2577 = vmatprep.subr.mxu0 0.0
        %2578 = vmatpush1.msra.mxu0 0.0
        %2579 = vmatprep.subr.mxu0 0.0
        %2580 = vmatpush1.msra.mxu0 0.0
        %2581 = vmatprep.subr.mxu0 0.0
        %2582 = vmatpush1.msra.mxu0 0.0
        %2583 = vmatprep.mubr.f32.mxu0 0.0
        %2584 = vmatmul.mubr.f32.gmra.mrb[0].mxu0 %v2517
        %v2585 = vpop.f32.mrb[0].mxu0
        %v2586 = vadd.f32 %v465, %v2585
        %v2587 = vpop.f32.mrb[0].mxu0
        %2588 = vdwg.mxu0
        %2590 = vrot.lane.b32.xlu0 %v2414, 96
        %v2591 = vpop.permute.xlu0 %2590
        %v2592 = vsel %vm480, %v2591, 0
        %2594 = vmatprep.subr.mxu0 0.0
        %2595 = vmatpush1.msra.mxu0 %v452
        %2596 = vmatprep.subr.mxu0 0.0
        %2597 = vmatpush1.msra.mxu0 %v453
        %2598 = vmatprep.subr.mxu0 0.0
        %2599 = vmatpush1.msra.mxu0 %v454
        %2600 = vmatprep.subr.mxu0 0.0
        %2601 = vmatpush1.msra.mxu0 %v455
        %2602 = vmatprep.subr.mxu0 0.0
        %2603 = vmatpush1.msra.mxu0 0.0
        %2604 = vmatprep.subr.mxu0 0.0
        %2605 = vmatpush1.msra.mxu0 0.0
        %2606 = vmatprep.subr.mxu0 0.0
        %2607 = vmatpush1.msra.mxu0 0.0
        %2608 = vmatprep.subr.mxu0 0.0
        %2609 = vmatpush1.msra.mxu0 0.0
        %2610 = vmatprep.subr.mxu0 0.0
        %2611 = vmatpush1.msra.mxu0 0.0
        %2612 = vmatprep.subr.mxu0 0.0
        %2613 = vmatpush1.msra.mxu0 0.0
        %2614 = vmatprep.subr.mxu0 0.0
        %2615 = vmatpush1.msra.mxu0 0.0
        %2616 = vmatprep.subr.mxu0 0.0
        %2617 = vmatpush1.msra.mxu0 0.0
        %2618 = vmatprep.subr.mxu0 0.0
        %2619 = vmatpush1.msra.mxu0 0.0
        %2620 = vmatprep.subr.mxu0 0.0
        %2621 = vmatpush1.msra.mxu0 0.0
        %2622 = vmatprep.subr.mxu0 0.0
        %2623 = vmatpush1.msra.mxu0 0.0
        %2624 = vmatprep.subr.mxu0 0.0
        %2625 = vmatpush1.msra.mxu0 0.0
        %2626 = vmatprep.subr.mxu0 0.0
        %2627 = vmatpush1.msra.mxu0 0.0
        %2628 = vmatprep.subr.mxu0 0.0
        %2629 = vmatpush1.msra.mxu0 0.0
        %2630 = vmatprep.subr.mxu0 0.0
        %2631 = vmatpush1.msra.mxu0 0.0
        %2632 = vmatprep.subr.mxu0 0.0
        %2633 = vmatpush1.msra.mxu0 0.0
        %2634 = vmatprep.subr.mxu0 0.0
        %2635 = vmatpush1.msra.mxu0 0.0
        %2636 = vmatprep.subr.mxu0 0.0
        %2637 = vmatpush1.msra.mxu0 0.0
        %2638 = vmatprep.subr.mxu0 0.0
        %2639 = vmatpush1.msra.mxu0 0.0
        %2640 = vmatprep.subr.mxu0 0.0
        %2641 = vmatpush1.msra.mxu0 0.0
        %2642 = vmatprep.subr.mxu0 0.0
        %2643 = vmatpush1.msra.mxu0 0.0
        %2644 = vmatprep.subr.mxu0 0.0
        %2645 = vmatpush1.msra.mxu0 0.0
        %2646 = vmatprep.subr.mxu0 0.0
        %2647 = vmatpush1.msra.mxu0 0.0
        %2648 = vmatprep.subr.mxu0 0.0
        %2649 = vmatpush1.msra.mxu0 0.0
        %2650 = vmatprep.subr.mxu0 0.0
        %2651 = vmatpush1.msra.mxu0 0.0
        %2652 = vmatprep.subr.mxu0 0.0
        %2653 = vmatpush1.msra.mxu0 0.0
        %2654 = vmatprep.subr.mxu0 0.0
        %2655 = vmatpush1.msra.mxu0 0.0
        %2656 = vmatprep.subr.mxu0 0.0
        %2657 = vmatpush1.msra.mxu0 0.0
        %2658 = vmatprep.mubr.f32.mxu0 0.0
        %2659 = vmatmul.mubr.f32.gmra.mrb[0].mxu0 %v2592
        %v2660 = vpop.f32.mrb[0].mxu0
        %v2661 = vadd.f32 0.0, %v2660
        %v2662 = vpop.f32.mrb[0].mxu0
        %2663 = vdwg.mxu0
        %v2664 = vadd.f32 %v2586, %v2661
        %v2665 = vxor.u32 %v2664, 2147483648
        %v2666 = vmul.f32 %v2665, 1.442695
        %v2667 = vpow.pop %v2666
        %v2668 = vadd.f32 %v2667, 1.0
        %v2669 = vrcp.pop %v2668
        %v2670 = vmul.f32 1.0, %v2669
        %v2671 = vadd.f32 %v2661, %v737
        %2673 = vrot.lane.b32.xlu0 %v2671, 64
        %v2674 = vpop.permute.xlu0 %2673
        %v2676 = vmul.f32 %v2670, %v2674
        %2678 = vrot.lane.b32.xlu0 %v2676, 64
        %v2679 = vpop.permute.xlu0 %2678
        %v2681 = vadd.f32 %v2586, %v2679
        %v2682 = vtanh.pop %v2681
        %v2683 = vsub.f32 1.0, %v2670
        %2685 = vrot.lane.b32.xlu0 %v2682, 96
        %v2686 = vpop.permute.xlu0 %2685
        %v2688 = vmul.f32 %v2683, %v2686
        %v2689 = vmul.f32 %v2670, %v2414
        %v2690 = vadd.f32 %v2688, %v2689
        %v2691 = vld [vmem:[#allocation15] sm:$0xff]
        %v2692 = vld [vmem:[#allocation15 + $0x8] sm:$0xff]
        %v2693 = vld [vmem:[#allocation15 + $0x10] sm:$0xff]
        %v2694 = vld [vmem:[#allocation15 + $0x18] sm:$0xff]
        %v2695 = vld [vmem:[#allocation2] sm:$0x1]
        %v2697 = vlaneseq
        %v2698 = vshrl.u32 %v2697, 7
        %v2699 = vsub.s32 0, %v2698
        %v2700 = vrot.slane %v2695, %v2699
        %2703 = vrot.lane.b32.xlu0 %v2690, 96
        %v2704 = vpop.permute.xlu0 %2703
        %v2705 = vsel %vm480, %v2704, 0
        %2707 = vmatprep.subr.mxu0 0.0
        %2708 = vmatpush1.msra.mxu0 %v2691
        %2709 = vmatprep.subr.mxu0 0.0
        %2710 = vmatpush1.msra.mxu0 %v2692
        %2711 = vmatprep.subr.mxu0 0.0
        %2712 = vmatpush1.msra.mxu0 %v2693
        %2713 = vmatprep.subr.mxu0 0.0
        %2714 = vmatpush1.msra.mxu0 %v2694
        %2715 = vmatprep.subr.mxu0 0.0
        %2716 = vmatpush1.msra.mxu0 0.0
        %2717 = vmatprep.subr.mxu0 0.0
        %2718 = vmatpush1.msra.mxu0 0.0
        %2719 = vmatprep.subr.mxu0 0.0
        %2720 = vmatpush1.msra.mxu0 0.0
        %2721 = vmatprep.subr.mxu0 0.0
        %2722 = vmatpush1.msra.mxu0 0.0
        %2723 = vmatprep.subr.mxu0 0.0
        %2724 = vmatpush1.msra.mxu0 0.0
        %2725 = vmatprep.subr.mxu0 0.0
        %2726 = vmatpush1.msra.mxu0 0.0
        %2727 = vmatprep.subr.mxu0 0.0
        %2728 = vmatpush1.msra.mxu0 0.0
        %2729 = vmatprep.subr.mxu0 0.0
        %2730 = vmatpush1.msra.mxu0 0.0
        %2731 = vmatprep.subr.mxu0 0.0
        %2732 = vmatpush1.msra.mxu0 0.0
        %2733 = vmatprep.subr.mxu0 0.0
        %2734 = vmatpush1.msra.mxu0 0.0
        %2735 = vmatprep.subr.mxu0 0.0
        %2736 = vmatpush1.msra.mxu0 0.0
        %2737 = vmatprep.subr.mxu0 0.0
        %2738 = vmatpush1.msra.mxu0 0.0
        %2739 = vmatprep.subr.mxu0 0.0
        %2740 = vmatpush1.msra.mxu0 0.0
        %2741 = vmatprep.subr.mxu0 0.0
        %2742 = vmatpush1.msra.mxu0 0.0
        %2743 = vmatprep.subr.mxu0 0.0
        %2744 = vmatpush1.msra.mxu0 0.0
        %2745 = vmatprep.subr.mxu0 0.0
        %2746 = vmatpush1.msra.mxu0 0.0
        %2747 = vmatprep.subr.mxu0 0.0
        %2748 = vmatpush1.msra.mxu0 0.0
        %2749 = vmatprep.subr.mxu0 0.0
        %2750 = vmatpush1.msra.mxu0 0.0
        %2751 = vmatprep.subr.mxu0 0.0
        %2752 = vmatpush1.msra.mxu0 0.0
        %2753 = vmatprep.subr.mxu0 0.0
        %2754 = vmatpush1.msra.mxu0 0.0
        %2755 = vmatprep.subr.mxu0 0.0
        %2756 = vmatpush1.msra.mxu0 0.0
        %2757 = vmatprep.subr.mxu0 0.0
        %2758 = vmatpush1.msra.mxu0 0.0
        %2759 = vmatprep.subr.mxu0 0.0
        %2760 = vmatpush1.msra.mxu0 0.0
        %2761 = vmatprep.subr.mxu0 0.0
        %2762 = vmatpush1.msra.mxu0 0.0
        %2763 = vmatprep.subr.mxu0 0.0
        %2764 = vmatpush1.msra.mxu0 0.0
        %2765 = vmatprep.subr.mxu0 0.0
        %2766 = vmatpush1.msra.mxu0 0.0
        %2767 = vmatprep.subr.mxu0 0.0
        %2768 = vmatpush1.msra.mxu0 0.0
        %2769 = vmatprep.subr.mxu0 0.0
        %2770 = vmatpush1.msra.mxu0 0.0
        %2771 = vmatprep.mubr.f32.mxu0 0.0
        %2772 = vmatmul.mubr.f32.gmra.mrb[0].mxu0 %v2705
        %v2773 = vpop.f32.mrb[0].mxu0
        %v2774 = vadd.f32 %v2700, %v2773
        %v2775 = vpop.f32.mrb[0].mxu0
        %2776 = vdwg.mxu0
        %vm2777 = vcmask 7168
        %2778 = vst.msk [vmem:[%s447] sm:$0xff] %vm2777, %v2774
        %s2779 = sand.u32 %s234, 1
        %s2780 = scalar_lea.sflag [#allocation5], %s2779
        %s2781 = sand.u32 %s234, 1
        %s2782 = smul.addr %s2781, 8
        %s2783 = scalar_lea.vmem [#allocation17], %s2782
        // Predicated region
        $region89: #{tpu_custom_call.1} parent=55 // pred_check
          %p2784 = pneg %p244
        $region90: #{tpu_custom_call.1} parent=55 // pred_check_branch
          %2786 = sbr.rel (%p2784) target = $region92
        $region91: #{tpu_custom_call.1} parent=55 // pred_region
          %s2788 = ssub.s32 128, 128
          %2789 = vsyncadd %s2780, %s2788
          %s2790 = smul.addr %s32, 128
          %s2791 = scalar_lea.hbm %s9, %s2790
          %s2793 = sshll.u32 %s2783, 4
          %s2794 = int_to_ptr.vmem [resolvable:$true] %s2793
          %2796 = dma.vmem_to_hbm [thread:$0]  %s2794, 128, %s2791, %s2780
        $region92: #{tpu_custom_call.1} parent=55 // pred_fallthru
          _
      $region56: #{tpu_custom_call.1} parent=5 // pred_fallthru
        _
      %p2797 = scmp.le.s32.totalorder 2, %s27
      // Predicated region
      $region93: #{tpu_custom_call.1} parent=5 // pred_check
        %p2798 = pneg %p2797
      $region94: #{tpu_custom_call.1} parent=5 // pred_check_branch
        %2800 = sbr.rel (%p2798) target = $region96
      $region95: #{tpu_custom_call.1} parent=5 // pred_region
        %s2801 = ssub.s32 %s27, 2
        // Predicated region
        $region97: #{tpu_custom_call.1} parent=95 // pred_check
          %p2802 = pneg %p250
        $region98: #{tpu_custom_call.1} parent=95 // pred_check_branch
          %2804 = sbr.rel (%p2802) target = $region100
        $region99: #{tpu_custom_call.1} parent=95 // pred_region
          %s2805 = sand.u32 %s235, 1
          %s2806 = scalar_lea.sflag [#allocation5], %s2805
          %s2807 = sand.u32 %s235, 1
          %s2808 = smul.addr %s2807, 8
          %s2809 = scalar_lea.vmem [#allocation17], %s2808
          %2810 = dma.done %s2806, 128
        $region100: #{tpu_custom_call.1} parent=95 // pred_fallthru
          _
      $region96: #{tpu_custom_call.1} parent=5 // pred_fallthru
        _
    $region6: #{tpu_custom_call.1} parent=1 // loop_footer
      %s31 = sadd.s32 1, %s27
    $region7: #{tpu_custom_call.1} parent=1 // loop_footer_branch
      %26 = sbr.rel target = $region3
    $region8: #{tpu_custom_call.1} parent=1 // loop_exit
      _
    %2811 = vsyncpa [#allocation4], 1
    %s2812 = scalar_lea.sflag [#allocation4], 1
    %2813 = vsyncpa %s2812, 1
    %2814 = vsyncpa [#allocation7], 1
    %2815 = vsyncpa [#allocation10], 1
    %2816 = vsyncpa [#allocation13], 1
    %2817 = vsyncpa [#allocation16], 1
    %2818 = vsyncpa [#allocation5], 1
    %s2819 = scalar_lea.sflag [#allocation5], 1
    %2820 = vsyncpa %s2819, 1

</llo_original>
